<compile_context>
chip_gen: v7x
topology: tpu7x:2x2x1
jax: 0.10.0
libtpu: 0.0.40
codegen_flags: <defaults>
</compile_context>

<pallas_src>
import jax
import jax.numpy as jnp
import numpy as np
from jax.experimental import pallas as pl
from jax.experimental.pallas import tpu as pltpu


# ---------------------------------------------------------------------------
# Synthetic YOLO body config (mirrors IntermediateLayerGetter semantics)
#   f == -1 : apply the layer to the previous output
#   f  >  0 : x = concat([x, y[sorted(save_list).index(f)]], channel dim)
# ---------------------------------------------------------------------------
LAYER_CFG = [
    dict(type="conv", f=-1, k=3, s=2, cin=4,  cout=8),    # 0: 16x16 -> 8x8
    dict(type="conv", f=-1, k=3, s=2, cin=8,  cout=16),   # 1: 8x8  -> 4x4   (saved, 'feat0')
    dict(type="conv", f=-1, k=1, s=1, cin=16, cout=16),   # 2: 4x4  -> 4x4
    dict(type="concat", f=1),                             # 3: cat with y[0] -> 32ch (saved)
    dict(type="conv", f=-1, k=3, s=1, cin=32, cout=32),   # 4: 4x4  -> 4x4   ('feat1')
]
SAVE_LIST = [1, 3]
RETURN_LAYERS = {1: "feat0", 4: "feat1"}
OUT_CHANNELS = [16, 32]

GRID = 4  # every tensor inside the kernel lives on a 4x4 spatial grid


def init_params(key):
    params = []
    for cfg in LAYER_CFG:
        if cfg["type"] != "conv":
            params.append(None)
            continue
        key, kw_, kb_ = jax.random.split(key, 3)
        w = 0.1 * jax.random.normal(
            kw_, (cfg["k"], cfg["k"], cfg["cin"], cfg["cout"]), jnp.float32
        )
        b = 0.01 * jax.random.normal(kb_, (cfg["cout"],), jnp.float32)
        params.append((w, b))
    return params


# ---------------------------------------------------------------------------
# Weight rearrangement (wrapper-side, tiny, done once per call)
# ---------------------------------------------------------------------------
def _block_diag(w, n):
    """Block-diagonal with n copies of w -> applies w independently per column block."""
    cin, cout = w.shape
    eye = jnp.eye(n, dtype=w.dtype)
    return (eye[:, None, :, None] * w[None, :, None, :]).reshape(n * cin, n * cout)


def _s2_weight_in4(w):
    """(3,3,Cin,Cout) stride-2 pad-1 conv weight -> 2x2 block taps acting on an input in
    space-to-depth-by-4 layout (channel (rh*4+rw)*Cin+c), producing output in
    space-to-depth-by-2 layout (channel (eh*2+ew)*Cout+co)."""
    _, _, cin, cout = w.shape
    wb = jnp.zeros((2, 2, 16 * cin, 4 * cout), w.dtype)
    for eh in range(2):
        for kh in range(3):
            t = 2 * eh + kh - 1
            bh, rh = (0, 3) if t < 0 else (1, t)
            for ew in range(2):
                for kw in range(3):
                    s = 2 * ew + kw - 1
                    bw, rw = (0, 3) if s < 0 else (1, s)
                    r0 = (rh * 4 + rw) * cin
                    c0 = (eh * 2 + ew) * cout
                    wb = wb.at[bh, bw, r0:r0 + cin, c0:c0 + cout].set(w[kh, kw])
    return wb


def _s2_weight_in2(w):
    """(3,3,Cin,Cout) stride-2 pad-1 conv weight -> 2x2 block taps acting on an input in
    space-to-depth-by-2 layout (channel (dh*2+dw)*Cin+c); plain output channels."""
    _, _, cin, cout = w.shape
    wb = jnp.zeros((2, 2, 4 * cin, cout), w.dtype)
    par = {0: (0, 1), 1: (1, 0), 2: (1, 1)}  # k -> (block tap, sub-position)
    for kh in range(3):
        bh, dh = par[kh]
        for kw in range(3):
            bw, dw = par[kw]
            r0 = (dh * 2 + dw) * cin
            wb = wb.at[bh, bw, r0:r0 + cin, :].set(w[kh, kw])
    return wb


def _col_bias(b, width):
    """Per-channel bias tiled along the (W*C) column layout, as a (1, width) f32 row."""
    return jnp.tile(b, width // b.shape[0]).reshape(1, width).astype(jnp.float32)


def _prepare_kernel_params(params):
    (w0, b0), (w1, b1), (w2, b2), _, (w4, b4) = params
    G, bf16 = GRID, jnp.bfloat16

    w0b = _s2_weight_in4(w0)                                                 # (2,2,64,32)
    w0bd = jnp.stack([_block_diag(w0b[i, j], G)
                      for i in range(2) for j in range(2)]).astype(bf16)     # (4,256,128)
    w1b = _s2_weight_in2(w1)                                                 # (2,2,32,16)
    w1bd = jnp.stack([_block_diag(w1b[i, j], G)
                      for i in range(2) for j in range(2)]).astype(bf16)     # (4,128,64)
    w2bd = _block_diag(w2[0, 0], G).astype(bf16)                             # (64,64)
    w4bd = jnp.stack([_block_diag(w4[i, j], G)
                      for i in range(3) for j in range(3)]).astype(bf16)     # (9,128,128)

    b0c = _col_bias(b0, G * 32)   # (1,128)  layer-0 out is s2d-by-2: 4*8 ch per block
    b1c = _col_bias(b1, G * 16)   # (1,64)
    b2c = _col_bias(b2, G * 16)   # (1,64)
    b4c = _col_bias(b4, G * 32)   # (1,128)
    return w0bd, b0c, w1bd, b1c, w2bd, b2c, w4bd, b4c


# ---------------------------------------------------------------------------
# The fused Pallas kernel: full 5-layer body for one image per grid step
# ---------------------------------------------------------------------------
def _yolo_body_kernel(x_ref, w0_ref, b0_ref, w1_ref, b1_ref, w2_ref, b2_ref,
                      w4_ref, b4_ref, f0_ref, f1_ref, sp, op0, p4):
    G = GRID
    bf16 = jnp.bfloat16

    # Zero the padded scratches; the untouched borders are the convs' zero padding.
    sp[...] = jnp.zeros(sp.shape, sp.dtype)
    op0[...] = jnp.zeros(op0.shape, op0.dtype)
    p4[...] = jnp.zeros(p4.shape, p4.dtype)

    # Interior of layer-0's padded input <- space-to-depth-by-4 packed image (4, 256).
    sp[1:1 + G, 64:(1 + G) * 64] = x_ref[0].astype(sp.dtype)

    def silu(a):
        return a * jax.nn.sigmoid(a)

    # ---- layer 0: Conv(k3, s2, 4->8) + SiLU   (2x2 block conv on the s2d grid) ----
    acc = jnp.zeros((G, G * 32), jnp.float32)
    for bh in range(2):
        for bw in range(2):
            lhs = sp[bh:bh + G, bw * 64:(bw + G) * 64].astype(bf16)
            acc += jnp.dot(lhs, w0_ref[bh * 2 + bw],
                           preferred_element_type=jnp.float32)
    o0 = silu(acc + b0_ref[...])
    op0[1:1 + G, 32:(1 + G) * 32] = o0          # s2d-by-2 layout, padded for layer 1

    # ---- layer 1: Conv(k3, s2, 8->16) + SiLU  (2x2 block conv) ----
    acc = jnp.zeros((G, G * 16), jnp.float32)
    for bh in range(2):
        for bw in range(2):
            lhs = op0[bh:bh + G, bw * 32:(bw + G) * 32].astype(bf16)
            acc += jnp.dot(lhs, w1_ref[bh * 2 + bw],
                           preferred_element_type=jnp.float32)
    o1 = silu(acc + b1_ref[...])                # == feat0 and saved y[0]
    f0_ref[0] = o1

    # layer 3 (channel concat) realized as channel-slice writes into layer 4's padded
    # input: per spatial block, channels [0:16) <- layer-2 out, [16:32) <- saved y[0].
    for j in range(G):
        p4[1:1 + G, 32 + j * 32 + 16:32 + j * 32 + 32] = o1[:, j * 16:(j + 1) * 16]

    # ---- layer 2: Conv(k1, s1, 16->16) + SiLU (pointwise) ----
    acc = jnp.dot(o1.astype(bf16), w2_ref[...], preferred_element_type=jnp.float32)
    o2 = silu(acc + b2_ref[...])
    for j in range(G):
        p4[1:1 + G, 32 + j * 32:32 + j * 32 + 16] = o2[:, j * 16:(j + 1) * 16]

    # ---- layer 4: Conv(k3, s1, 32->32) + SiLU on the concatenated 32-channel map ----
    acc = jnp.zeros((G, G * 32), jnp.float32)
    for kh in range(3):
        for kw in range(3):
            lhs = p4[kh:kh + G, kw * 32:(kw + G) * 32].astype(bf16)
            acc += jnp.dot(lhs, w4_ref[kh * 3 + kw],
                           preferred_element_type=jnp.float32)
    f1_ref[0] = silu(acc + b4_ref[...])          # == feat1, 128-lane-wide store


# ---------------------------------------------------------------------------
# Public wrapper: NCHW in, list of NCHW feature maps out (PyTorch semantics)
# ---------------------------------------------------------------------------
def yolo_backbone_forward(x_nchw, params):
    N, C, H, W = x_nchw.shape
    G = GRID
    assert (H, W) == (4 * G, 4 * G) and C == LAYER_CFG[0]["cin"]

    # Space-to-depth by 4 (replaces the plain NCHW->NHWC transpose):
    # column layout  j*(16*C) + rh*(4*C) + rw*C + c .
    x2 = (x_nchw.reshape(N, C, G, 4, G, 4)
                .transpose(0, 2, 4, 3, 5, 1)
                .reshape(N, G, G * 16 * C)
                .astype(jnp.bfloat16))

    w0bd, b0c, w1bd, b1c, w2bd, b2c, w4bd, b4c = _prepare_kernel_params(params)

    f0, f1 = pl.pallas_call(
        _yolo_body_kernel,
        out_shape=(jax.ShapeDtypeStruct((N, G, G * 16), jnp.float32),   # feat0 slab
                   jax.ShapeDtypeStruct((N, G, G * 32), jnp.float32)),  # feat1 slab
        grid=(N,),
        in_specs=[
            pl.BlockSpec((1, G, G * 16 * C), lambda n: (n, 0, 0)),
            pl.BlockSpec(w0bd.shape, lambda n: (0, 0, 0)),
            pl.BlockSpec(b0c.shape, lambda n: (0, 0)),
            pl.BlockSpec(w1bd.shape, lambda n: (0, 0, 0)),
            pl.BlockSpec(b1c.shape, lambda n: (0, 0)),
            pl.BlockSpec(w2bd.shape, lambda n: (0, 0)),
            pl.BlockSpec(b2c.shape, lambda n: (0, 0)),
            pl.BlockSpec(w4bd.shape, lambda n: (0, 0, 0)),
            pl.BlockSpec(b4c.shape, lambda n: (0, 0)),
        ],
        out_specs=(pl.BlockSpec((1, G, G * 16), lambda n: (n, 0, 0)),
                   pl.BlockSpec((1, G, G * 32), lambda n: (n, 0, 0))),
        scratch_shapes=[
            pltpu.VMEM((G + 1, (G + 1) * 16 * C), jnp.float32),  # padded s2d-by-4 input
            pltpu.VMEM((G + 1, (G + 1) * 32), jnp.float32),      # padded layer-0 output
            pltpu.VMEM((G + 2, (G + 2) * 32), jnp.float32),      # padded concat (layer-4 in)
        ],
        compiler_params=pltpu.CompilerParams(
            dimension_semantics=("parallel",),
        ),
    )(x2, w0bd, b0c, w1bd, b1c, w2bd, b2c, w4bd, b4c)

    # Unpack the lane-dense (H, W*C) slabs back to NCHW to match the PyTorch module.
    feat0 = f0.reshape(N, G, G, 16).transpose(0, 3, 1, 2)
    feat1 = f1.reshape(N, G, G, 32).transpose(0, 3, 1, 2)
    return [feat0, feat1]


# ---------------------------------------------------------------------------
# Pure-JAX f32 reference (replicates IntermediateLayerGetter.forward exactly)
# ---------------------------------------------------------------------------
def _ref_conv_silu(x_nhwc, w, b, *, stride, pad):
    y = jax.lax.conv_general_dilated(
        x_nhwc.astype(jnp.float32), w.astype(jnp.float32),
        window_strides=(stride, stride), padding=[(pad, pad), (pad, pad)],
        dimension_numbers=("NHWC", "HWIO", "NHWC"))
    y = y + b.reshape(1, 1, 1, -1)
    return y * jax.nn.sigmoid(y)


def _body_forward(x_nhwc, params, conv_fn):
    out, y = {}, []
    sorted_save = sorted(SAVE_LIST)
    for i, cfg in enumerate(LAYER_CFG):
        if cfg["f"] > 0:
            # torch.cat([x, y[...]], dim=1) in NCHW == concat on last dim in NHWC
            x_nhwc = jnp.concatenate([x_nhwc, y[sorted_save.index(cfg["f"])]], axis=-1)
        else:
            w, b = params[i]
            x_nhwc = conv_fn(x_nhwc, w, b, stride=cfg["s"], pad=cfg["k"] // 2)
        if i in SAVE_LIST:
            y.append(x_nhwc)
        if i in RETURN_LAYERS:
            out[RETURN_LAYERS[i]] = x_nhwc
    return out


def ref_backbone_forward(x_nchw, params):
    x_nhwc = jnp.transpose(x_nchw, (0, 2, 3, 1))
    out = _body_forward(x_nhwc, params, _ref_conv_silu)
    return [jnp.transpose(feat, (0, 3, 1, 2)) for feat in out.values()]


# ---------------------------------------------------------------------------
if __name__ == "__main__":
    key = jax.random.PRNGKey(0)
    key, kx = jax.random.split(key)
    x = jax.random.normal(kx, (2, 4, 16, 16), jnp.float32)  # NCHW, like PyTorch

    params = init_params(key)

    feats = yolo_backbone_forward(x, params)
    feats = [jax.block_until_ready(f) for f in feats]

    ref_feats = ref_backbone_forward(x, params)

    expected_shapes = [(2, 16, 4, 4), (2, 32, 4, 4)]
    assert [tuple(f.shape) for f in feats] == expected_shapes, [f.shape for f in feats]
    # bf16 MXU operands -> compare against the f32 reference with a loosened tolerance.
    for f, r in zip(feats, ref_feats):
        np.testing.assert_allclose(np.asarray(f), np.asarray(r), rtol=5e-2, atol=5e-2)

    print("KERNEL_OK")
</pallas_src>

<mosaic_0001>
module attributes {stable_mosaic.version = 11 : i64} {
  func.func @_yolo_body_kernel(%arg0: i32, %arg1: memref<1x4x256xbf16, #tpu.memory_space<vmem>>, %arg2: memref<4x256x128xbf16, #tpu.memory_space<vmem>>, %arg3: memref<1x128xf32, #tpu.memory_space<vmem>>, %arg4: memref<4x128x64xbf16, #tpu.memory_space<vmem>>, %arg5: memref<1x64xf32, #tpu.memory_space<vmem>>, %arg6: memref<64x64xbf16, #tpu.memory_space<vmem>>, %arg7: memref<1x64xf32, #tpu.memory_space<vmem>>, %arg8: memref<9x128x128xbf16, #tpu.memory_space<vmem>>, %arg9: memref<1x128xf32, #tpu.memory_space<vmem>>, %arg10: memref<1x4x64xf32, #tpu.memory_space<vmem>>, %arg11: memref<1x4x128xf32, #tpu.memory_space<vmem>>, %arg12: memref<5x320xf32, #tpu.memory_space<vmem>>, %arg13: memref<5x160xf32, #tpu.memory_space<vmem>>, %arg14: memref<6x192xf32, #tpu.memory_space<vmem>>) attributes {dimension_semantics = [#tpu.dimension_semantics<parallel>], iteration_bounds = array<i64: 2>, scalar_prefetch = 0 : i64, scratch_operands = 3 : i64, tpu.core_type = #tpu.core_type<tc>, window_params = [{transform_indices = @transform_0, window_bounds = array<i64: 1, 4, 256>}, {pipeline_mode = #tpu.pipeline_mode<synchronous>, transform_indices = @transform_1, window_bounds = array<i64: 4, 256, 128>}, {pipeline_mode = #tpu.pipeline_mode<synchronous>, transform_indices = @transform_2, window_bounds = array<i64: 1, 128>}, {pipeline_mode = #tpu.pipeline_mode<synchronous>, transform_indices = @transform_3, window_bounds = array<i64: 4, 128, 64>}, {pipeline_mode = #tpu.pipeline_mode<synchronous>, transform_indices = @transform_4, window_bounds = array<i64: 1, 64>}, {pipeline_mode = #tpu.pipeline_mode<synchronous>, transform_indices = @transform_5, window_bounds = array<i64: 64, 64>}, {pipeline_mode = #tpu.pipeline_mode<synchronous>, transform_indices = @transform_6, window_bounds = array<i64: 1, 64>}, {pipeline_mode = #tpu.pipeline_mode<synchronous>, transform_indices = @transform_7, window_bounds = array<i64: 9, 128, 128>}, {pipeline_mode = #tpu.pipeline_mode<synchronous>, transform_indices = @transform_8, window_bounds = array<i64: 1, 128>}, {transform_indices = @transform_9, window_bounds = array<i64: 1, 4, 64>}, {transform_indices = @transform_10, window_bounds = array<i64: 1, 4, 128>}]} {
    %cst = arith.constant 0.000000e+00 : f32
    %0 = vector.broadcast %cst : f32 to vector<5x320xf32>
    %c0 = arith.constant 0 : index
    %c0_0 = arith.constant 0 : index
    %1 = vector.load %arg12[%c0, %c0_0] : memref<5x320xf32, #tpu.memory_space<vmem>>, vector<5x320xf32>
    tpu.vector_store %arg12[%c0, %c0_0], %0 {strides = array<i32>} : memref<5x320xf32, #tpu.memory_space<vmem>>, vector<5x320xf32>,
    %cst_1 = arith.constant 0.000000e+00 : f32
    %2 = vector.broadcast %cst_1 : f32 to vector<5x160xf32>
    %c0_2 = arith.constant 0 : index
    %c0_3 = arith.constant 0 : index
    %3 = vector.load %arg13[%c0_2, %c0_3] : memref<5x160xf32, #tpu.memory_space<vmem>>, vector<5x160xf32>
    tpu.vector_store %arg13[%c0_2, %c0_3], %2 {strides = array<i32>} : memref<5x160xf32, #tpu.memory_space<vmem>>, vector<5x160xf32>,
    %cst_4 = arith.constant 0.000000e+00 : f32
    %4 = vector.broadcast %cst_4 : f32 to vector<6x192xf32>
    %c0_5 = arith.constant 0 : index
    %c0_6 = arith.constant 0 : index
    %5 = vector.load %arg14[%c0_5, %c0_6] : memref<6x192xf32, #tpu.memory_space<vmem>>, vector<6x192xf32>
    tpu.vector_store %arg14[%c0_5, %c0_6], %4 {strides = array<i32>} : memref<6x192xf32, #tpu.memory_space<vmem>>, vector<6x192xf32>,
    %c0_7 = arith.constant 0 : index
    %c0_8 = arith.constant 0 : index
    %c0_9 = arith.constant 0 : index
    %6 = vector.load %arg1[%c0_7, %c0_8, %c0_9] : memref<1x4x256xbf16, #tpu.memory_space<vmem>>, vector<1x4x256xbf16>
    %7 = vector.shape_cast %6 : vector<1x4x256xbf16> to vector<4x256xbf16>
    %8 = arith.extf %7 : vector<4x256xbf16> to vector<4x256xf32>
    %c1 = arith.constant 1 : index
    %c64 = arith.constant 64 : index
    %9 = vector.load %arg12[%c1, %c64] : memref<5x320xf32, #tpu.memory_space<vmem>>, vector<4x256xf32>
    tpu.vector_store %arg12[%c1, %c64], %8 {strides = array<i32>} : memref<5x320xf32, #tpu.memory_space<vmem>>, vector<4x256xf32>,
    %cst_10 = arith.constant 0.000000e+00 : f32
    %10 = vector.broadcast %cst_10 : f32 to vector<4x128xf32>
    %c0_11 = arith.constant 0 : index
    %c0_12 = arith.constant 0 : index
    %11 = vector.load %arg12[%c0_11, %c0_12] : memref<5x320xf32, #tpu.memory_space<vmem>>, vector<4x256xf32>
    %12 = arith.truncf %11 : vector<4x256xf32> to vector<4x256xbf16>
    %c0_13 = arith.constant 0 : index
    %c0_14 = arith.constant 0 : index
    %c0_15 = arith.constant 0 : index
    %13 = vector.load %arg2[%c0_13, %c0_14, %c0_15] : memref<4x256x128xbf16, #tpu.memory_space<vmem>>, vector<1x256x128xbf16>
    %14 = vector.shape_cast %13 : vector<1x256x128xbf16> to vector<256x128xbf16>
    %cst_16 = arith.constant dense<0.000000e+00> : vector<4x128xf32>
    %15 = tpu.matmul %12, %14, %cst_16 {dimension_numbers = #tpu.dot_dimension_numbers<[1], [0], [0], [1], [0, 0, 1, 1], [], []>} : vector<4x256xbf16>, vector<256x128xbf16>, vector<4x128xf32> -> vector<4x128xf32>
    %16 = arith.addf %10, %15 : vector<4x128xf32>
    %c0_17 = arith.constant 0 : index
    %c64_18 = arith.constant 64 : index
    %17 = vector.load %arg12[%c0_17, %c64_18] : memref<5x320xf32, #tpu.memory_space<vmem>>, vector<4x256xf32>
    %18 = arith.truncf %17 : vector<4x256xf32> to vector<4x256xbf16>
    %c1_19 = arith.constant 1 : index
    %c0_20 = arith.constant 0 : index
    %c0_21 = arith.constant 0 : index
    %19 = vector.load %arg2[%c1_19, %c0_20, %c0_21] : memref<4x256x128xbf16, #tpu.memory_space<vmem>>, vector<1x256x128xbf16>
    %20 = vector.shape_cast %19 : vector<1x256x128xbf16> to vector<256x128xbf16>
    %cst_22 = arith.constant dense<0.000000e+00> : vector<4x128xf32>
    %21 = tpu.matmul %18, %20, %cst_22 {dimension_numbers = #tpu.dot_dimension_numbers<[1], [0], [0], [1], [0, 0, 1, 1], [], []>} : vector<4x256xbf16>, vector<256x128xbf16>, vector<4x128xf32> -> vector<4x128xf32>
    %22 = arith.addf %16, %21 : vector<4x128xf32>
    %c1_23 = arith.constant 1 : index
    %c0_24 = arith.constant 0 : index
    %23 = vector.load %arg12[%c1_23, %c0_24] : memref<5x320xf32, #tpu.memory_space<vmem>>, vector<4x256xf32>
    %24 = arith.truncf %23 : vector<4x256xf32> to vector<4x256xbf16>
    %c2 = arith.constant 2 : index
    %c0_25 = arith.constant 0 : index
    %c0_26 = arith.constant 0 : index
    %25 = vector.load %arg2[%c2, %c0_25, %c0_26] : memref<4x256x128xbf16, #tpu.memory_space<vmem>>, vector<1x256x128xbf16>
    %26 = vector.shape_cast %25 : vector<1x256x128xbf16> to vector<256x128xbf16>
    %cst_27 = arith.constant dense<0.000000e+00> : vector<4x128xf32>
    %27 = tpu.matmul %24, %26, %cst_27 {dimension_numbers = #tpu.dot_dimension_numbers<[1], [0], [0], [1], [0, 0, 1, 1], [], []>} : vector<4x256xbf16>, vector<256x128xbf16>, vector<4x128xf32> -> vector<4x128xf32>
    %28 = arith.addf %22, %27 : vector<4x128xf32>
    %c1_28 = arith.constant 1 : index
    %c64_29 = arith.constant 64 : index
    %29 = vector.load %arg12[%c1_28, %c64_29] : memref<5x320xf32, #tpu.memory_space<vmem>>, vector<4x256xf32>
    %30 = arith.truncf %29 : vector<4x256xf32> to vector<4x256xbf16>
    %c3 = arith.constant 3 : index
    %c0_30 = arith.constant 0 : index
    %c0_31 = arith.constant 0 : index
    %31 = vector.load %arg2[%c3, %c0_30, %c0_31] : memref<4x256x128xbf16, #tpu.memory_space<vmem>>, vector<1x256x128xbf16>
    %32 = vector.shape_cast %31 : vector<1x256x128xbf16> to vector<256x128xbf16>
    %cst_32 = arith.constant dense<0.000000e+00> : vector<4x128xf32>
    %33 = tpu.matmul %30, %32, %cst_32 {dimension_numbers = #tpu.dot_dimension_numbers<[1], [0], [0], [1], [0, 0, 1, 1], [], []>} : vector<4x256xbf16>, vector<256x128xbf16>, vector<4x128xf32> -> vector<4x128xf32>
    %34 = arith.addf %28, %33 : vector<4x128xf32>
    %c0_33 = arith.constant 0 : index
    %c0_34 = arith.constant 0 : index
    %35 = vector.load %arg3[%c0_33, %c0_34] : memref<1x128xf32, #tpu.memory_space<vmem>>, vector<1x128xf32>
    %36 = vector.broadcast %35 : vector<1x128xf32> to vector<4x128xf32>
    %37 = arith.addf %34, %36 : vector<4x128xf32>
    %38 = arith.negf %37 : vector<4x128xf32>
    %39 = math.exp %38 : vector<4x128xf32>
    %cst_35 = arith.constant 1.000000e+00 : f32
    %40 = vector.broadcast %cst_35 : f32 to vector<4x128xf32>
    %41 = arith.addf %40, %39 : vector<4x128xf32>
    %42 = arith.divf %40, %41 : vector<4x128xf32>
    %43 = arith.mulf %37, %42 : vector<4x128xf32>
    %c1_36 = arith.constant 1 : index
    %c32 = arith.constant 32 : index
    %44 = vector.load %arg13[%c1_36, %c32] : memref<5x160xf32, #tpu.memory_space<vmem>>, vector<4x128xf32>
    tpu.vector_store %arg13[%c1_36, %c32], %43 {strides = array<i32>} : memref<5x160xf32, #tpu.memory_space<vmem>>, vector<4x128xf32>,
    %cst_37 = arith.constant 0.000000e+00 : f32
    %45 = vector.broadcast %cst_37 : f32 to vector<4x64xf32>
    %c0_38 = arith.constant 0 : index
    %c0_39 = arith.constant 0 : index
    %46 = vector.load %arg13[%c0_38, %c0_39] : memref<5x160xf32, #tpu.memory_space<vmem>>, vector<4x128xf32>
    %47 = arith.truncf %46 : vector<4x128xf32> to vector<4x128xbf16>
    %c0_40 = arith.constant 0 : index
    %c0_41 = arith.constant 0 : index
    %c0_42 = arith.constant 0 : index
    %48 = vector.load %arg4[%c0_40, %c0_41, %c0_42] : memref<4x128x64xbf16, #tpu.memory_space<vmem>>, vector<1x128x64xbf16>
    %49 = vector.shape_cast %48 : vector<1x128x64xbf16> to vector<128x64xbf16>
    %cst_43 = arith.constant dense<0.000000e+00> : vector<4x64xf32>
    %50 = tpu.matmul %47, %49, %cst_43 {dimension_numbers = #tpu.dot_dimension_numbers<[1], [0], [0], [1], [0, 0, 1, 1], [], []>} : vector<4x128xbf16>, vector<128x64xbf16>, vector<4x64xf32> -> vector<4x64xf32>
    %51 = arith.addf %45, %50 : vector<4x64xf32>
    %c0_44 = arith.constant 0 : index
    %c32_45 = arith.constant 32 : index
    %52 = vector.load %arg13[%c0_44, %c32_45] : memref<5x160xf32, #tpu.memory_space<vmem>>, vector<4x128xf32>
    %53 = arith.truncf %52 : vector<4x128xf32> to vector<4x128xbf16>
    %c1_46 = arith.constant 1 : index
    %c0_47 = arith.constant 0 : index
    %c0_48 = arith.constant 0 : index
    %54 = vector.load %arg4[%c1_46, %c0_47, %c0_48] : memref<4x128x64xbf16, #tpu.memory_space<vmem>>, vector<1x128x64xbf16>
    %55 = vector.shape_cast %54 : vector<1x128x64xbf16> to vector<128x64xbf16>
    %cst_49 = arith.constant dense<0.000000e+00> : vector<4x64xf32>
    %56 = tpu.matmul %53, %55, %cst_49 {dimension_numbers = #tpu.dot_dimension_numbers<[1], [0], [0], [1], [0, 0, 1, 1], [], []>} : vector<4x128xbf16>, vector<128x64xbf16>, vector<4x64xf32> -> vector<4x64xf32>
    %57 = arith.addf %51, %56 : vector<4x64xf32>
    %c1_50 = arith.constant 1 : index
    %c0_51 = arith.constant 0 : index
    %58 = vector.load %arg13[%c1_50, %c0_51] : memref<5x160xf32, #tpu.memory_space<vmem>>, vector<4x128xf32>
    %59 = arith.truncf %58 : vector<4x128xf32> to vector<4x128xbf16>
    %c2_52 = arith.constant 2 : index
    %c0_53 = arith.constant 0 : index
    %c0_54 = arith.constant 0 : index
    %60 = vector.load %arg4[%c2_52, %c0_53, %c0_54] : memref<4x128x64xbf16, #tpu.memory_space<vmem>>, vector<1x128x64xbf16>
    %61 = vector.shape_cast %60 : vector<1x128x64xbf16> to vector<128x64xbf16>
    %cst_55 = arith.constant dense<0.000000e+00> : vector<4x64xf32>
    %62 = tpu.matmul %59, %61, %cst_55 {dimension_numbers = #tpu.dot_dimension_numbers<[1], [0], [0], [1], [0, 0, 1, 1], [], []>} : vector<4x128xbf16>, vector<128x64xbf16>, vector<4x64xf32> -> vector<4x64xf32>
    %63 = arith.addf %57, %62 : vector<4x64xf32>
    %c1_56 = arith.constant 1 : index
    %c32_57 = arith.constant 32 : index
    %64 = vector.load %arg13[%c1_56, %c32_57] : memref<5x160xf32, #tpu.memory_space<vmem>>, vector<4x128xf32>
    %65 = arith.truncf %64 : vector<4x128xf32> to vector<4x128xbf16>
    %c3_58 = arith.constant 3 : index
    %c0_59 = arith.constant 0 : index
    %c0_60 = arith.constant 0 : index
    %66 = vector.load %arg4[%c3_58, %c0_59, %c0_60] : memref<4x128x64xbf16, #tpu.memory_space<vmem>>, vector<1x128x64xbf16>
    %67 = vector.shape_cast %66 : vector<1x128x64xbf16> to vector<128x64xbf16>
    %cst_61 = arith.constant dense<0.000000e+00> : vector<4x64xf32>
    %68 = tpu.matmul %65, %67, %cst_61 {dimension_numbers = #tpu.dot_dimension_numbers<[1], [0], [0], [1], [0, 0, 1, 1], [], []>} : vector<4x128xbf16>, vector<128x64xbf16>, vector<4x64xf32> -> vector<4x64xf32>
    %69 = arith.addf %63, %68 : vector<4x64xf32>
    %c0_62 = arith.constant 0 : index
    %c0_63 = arith.constant 0 : index
    %70 = vector.load %arg5[%c0_62, %c0_63] : memref<1x64xf32, #tpu.memory_space<vmem>>, vector<1x64xf32>
    %71 = vector.broadcast %70 : vector<1x64xf32> to vector<4x64xf32>
    %72 = arith.addf %69, %71 : vector<4x64xf32>
    %73 = arith.negf %72 : vector<4x64xf32>
    %74 = math.exp %73 : vector<4x64xf32>
    %cst_64 = arith.constant 1.000000e+00 : f32
    %75 = vector.broadcast %cst_64 : f32 to vector<4x64xf32>
    %76 = arith.addf %75, %74 : vector<4x64xf32>
    %77 = arith.divf %75, %76 : vector<4x64xf32>
    %78 = arith.mulf %72, %77 : vector<4x64xf32>
    %c0_65 = arith.constant 0 : index
    %c0_66 = arith.constant 0 : index
    %c0_67 = arith.constant 0 : index
    %79 = vector.load %arg10[%c0_65, %c0_66, %c0_67] : memref<1x4x64xf32, #tpu.memory_space<vmem>>, vector<1x4x64xf32>
    %80 = vector.shape_cast %79 : vector<1x4x64xf32> to vector<4x64xf32>
    %81 = vector.shape_cast %78 : vector<4x64xf32> to vector<1x4x64xf32>
    tpu.vector_store %arg10[%c0_65, %c0_66, %c0_67], %81 {strides = array<i32>} : memref<1x4x64xf32, #tpu.memory_space<vmem>>, vector<1x4x64xf32>,
    %82 = vector.extract_strided_slice %78 {offsets = [0, 0], sizes = [4, 16], strides = [1, 1]} : vector<4x64xf32> to vector<4x16xf32>
    %c1_68 = arith.constant 1 : index
    %c48 = arith.constant 48 : index
    %83 = vector.load %arg14[%c1_68, %c48] : memref<6x192xf32, #tpu.memory_space<vmem>>, vector<4x16xf32>
    tpu.vector_store %arg14[%c1_68, %c48], %82 {strides = array<i32>} : memref<6x192xf32, #tpu.memory_space<vmem>>, vector<4x16xf32>,
    %84 = vector.extract_strided_slice %78 {offsets = [0, 16], sizes = [4, 16], strides = [1, 1]} : vector<4x64xf32> to vector<4x16xf32>
    %c1_69 = arith.constant 1 : index
    %c80 = arith.constant 80 : index
    %85 = vector.load %arg14[%c1_69, %c80] : memref<6x192xf32, #tpu.memory_space<vmem>>, vector<4x16xf32>
    tpu.vector_store %arg14[%c1_69, %c80], %84 {strides = array<i32>} : memref<6x192xf32, #tpu.memory_space<vmem>>, vector<4x16xf32>,
    %86 = vector.extract_strided_slice %78 {offsets = [0, 32], sizes = [4, 16], strides = [1, 1]} : vector<4x64xf32> to vector<4x16xf32>
    %c1_70 = arith.constant 1 : index
    %c112 = arith.constant 112 : index
    %87 = vector.load %arg14[%c1_70, %c112] : memref<6x192xf32, #tpu.memory_space<vmem>>, vector<4x16xf32>
    tpu.vector_store %arg14[%c1_70, %c112], %86 {strides = array<i32>} : memref<6x192xf32, #tpu.memory_space<vmem>>, vector<4x16xf32>,
    %88 = vector.extract_strided_slice %78 {offsets = [0, 48], sizes = [4, 16], strides = [1, 1]} : vector<4x64xf32> to vector<4x16xf32>
    %c1_71 = arith.constant 1 : index
    %c144 = arith.constant 144 : index
    %89 = vector.load %arg14[%c1_71, %c144] : memref<6x192xf32, #tpu.memory_space<vmem>>, vector<4x16xf32>
    tpu.vector_store %arg14[%c1_71, %c144], %88 {strides = array<i32>} : memref<6x192xf32, #tpu.memory_space<vmem>>, vector<4x16xf32>,
    %90 = arith.truncf %78 : vector<4x64xf32> to vector<4x64xbf16>
    %c0_72 = arith.constant 0 : index
    %c0_73 = arith.constant 0 : index
    %91 = vector.load %arg6[%c0_72, %c0_73] : memref<64x64xbf16, #tpu.memory_space<vmem>>, vector<64x64xbf16>
    %cst_74 = arith.constant dense<0.000000e+00> : vector<4x64xf32>
    %92 = tpu.matmul %90, %91, %cst_74 {dimension_numbers = #tpu.dot_dimension_numbers<[1], [0], [0], [1], [0, 0, 1, 1], [], []>} : vector<4x64xbf16>, vector<64x64xbf16>, vector<4x64xf32> -> vector<4x64xf32>
    %c0_75 = arith.constant 0 : index
    %c0_76 = arith.constant 0 : index
    %93 = vector.load %arg7[%c0_75, %c0_76] : memref<1x64xf32, #tpu.memory_space<vmem>>, vector<1x64xf32>
    %94 = vector.broadcast %93 : vector<1x64xf32> to vector<4x64xf32>
    %95 = arith.addf %92, %94 : vector<4x64xf32>
    %96 = arith.negf %95 : vector<4x64xf32>
    %97 = math.exp %96 : vector<4x64xf32>
    %cst_77 = arith.constant 1.000000e+00 : f32
    %98 = vector.broadcast %cst_77 : f32 to vector<4x64xf32>
    %99 = arith.addf %98, %97 : vector<4x64xf32>
    %100 = arith.divf %98, %99 : vector<4x64xf32>
    %101 = arith.mulf %95, %100 : vector<4x64xf32>
    %102 = vector.extract_strided_slice %101 {offsets = [0, 0], sizes = [4, 16], strides = [1, 1]} : vector<4x64xf32> to vector<4x16xf32>
    %c1_78 = arith.constant 1 : index
    %c32_79 = arith.constant 32 : index
    %103 = vector.load %arg14[%c1_78, %c32_79] : memref<6x192xf32, #tpu.memory_space<vmem>>, vector<4x16xf32>
    tpu.vector_store %arg14[%c1_78, %c32_79], %102 {strides = array<i32>} : memref<6x192xf32, #tpu.memory_space<vmem>>, vector<4x16xf32>,
    %104 = vector.extract_strided_slice %101 {offsets = [0, 16], sizes = [4, 16], strides = [1, 1]} : vector<4x64xf32> to vector<4x16xf32>
    %c1_80 = arith.constant 1 : index
    %c64_81 = arith.constant 64 : index
    %105 = vector.load %arg14[%c1_80, %c64_81] : memref<6x192xf32, #tpu.memory_space<vmem>>, vector<4x16xf32>
    tpu.vector_store %arg14[%c1_80, %c64_81], %104 {strides = array<i32>} : memref<6x192xf32, #tpu.memory_space<vmem>>, vector<4x16xf32>,
    %106 = vector.extract_strided_slice %101 {offsets = [0, 32], sizes = [4, 16], strides = [1, 1]} : vector<4x64xf32> to vector<4x16xf32>
    %c1_82 = arith.constant 1 : index
    %c96 = arith.constant 96 : index
    %107 = vector.load %arg14[%c1_82, %c96] : memref<6x192xf32, #tpu.memory_space<vmem>>, vector<4x16xf32>
    tpu.vector_store %arg14[%c1_82, %c96], %106 {strides = array<i32>} : memref<6x192xf32, #tpu.memory_space<vmem>>, vector<4x16xf32>,
    %108 = vector.extract_strided_slice %101 {offsets = [0, 48], sizes = [4, 16], strides = [1, 1]} : vector<4x64xf32> to vector<4x16xf32>
    %c1_83 = arith.constant 1 : index
    %c128 = arith.constant 128 : index
    %109 = vector.load %arg14[%c1_83, %c128] : memref<6x192xf32, #tpu.memory_space<vmem>>, vector<4x16xf32>
    tpu.vector_store %arg14[%c1_83, %c128], %108 {strides = array<i32>} : memref<6x192xf32, #tpu.memory_space<vmem>>, vector<4x16xf32>,
    %cst_84 = arith.constant 0.000000e+00 : f32
    %110 = vector.broadcast %cst_84 : f32 to vector<4x128xf32>
    %c0_85 = arith.constant 0 : index
    %c0_86 = arith.constant 0 : index
    %111 = vector.load %arg14[%c0_85, %c0_86] : memref<6x192xf32, #tpu.memory_space<vmem>>, vector<4x128xf32>
    %112 = arith.truncf %111 : vector<4x128xf32> to vector<4x128xbf16>
    %c0_87 = arith.constant 0 : index
    %c0_88 = arith.constant 0 : index
    %c0_89 = arith.constant 0 : index
    %113 = vector.load %arg8[%c0_87, %c0_88, %c0_89] : memref<9x128x128xbf16, #tpu.memory_space<vmem>>, vector<1x128x128xbf16>
    %114 = vector.shape_cast %113 : vector<1x128x128xbf16> to vector<128x128xbf16>
    %cst_90 = arith.constant dense<0.000000e+00> : vector<4x128xf32>
    %115 = tpu.matmul %112, %114, %cst_90 {dimension_numbers = #tpu.dot_dimension_numbers<[1], [0], [0], [1], [0, 0, 1, 1], [], []>} : vector<4x128xbf16>, vector<128x128xbf16>, vector<4x128xf32> -> vector<4x128xf32>
    %116 = arith.addf %110, %115 : vector<4x128xf32>
    %c0_91 = arith.constant 0 : index
    %c32_92 = arith.constant 32 : index
    %117 = vector.load %arg14[%c0_91, %c32_92] : memref<6x192xf32, #tpu.memory_space<vmem>>, vector<4x128xf32>
    %118 = arith.truncf %117 : vector<4x128xf32> to vector<4x128xbf16>
    %c1_93 = arith.constant 1 : index
    %c0_94 = arith.constant 0 : index
    %c0_95 = arith.constant 0 : index
    %119 = vector.load %arg8[%c1_93, %c0_94, %c0_95] : memref<9x128x128xbf16, #tpu.memory_space<vmem>>, vector<1x128x128xbf16>
    %120 = vector.shape_cast %119 : vector<1x128x128xbf16> to vector<128x128xbf16>
    %cst_96 = arith.constant dense<0.000000e+00> : vector<4x128xf32>
    %121 = tpu.matmul %118, %120, %cst_96 {dimension_numbers = #tpu.dot_dimension_numbers<[1], [0], [0], [1], [0, 0, 1, 1], [], []>} : vector<4x128xbf16>, vector<128x128xbf16>, vector<4x128xf32> -> vector<4x128xf32>
    %122 = arith.addf %116, %121 : vector<4x128xf32>
    %c0_97 = arith.constant 0 : index
    %c64_98 = arith.constant 64 : index
    %123 = vector.load %arg14[%c0_97, %c64_98] : memref<6x192xf32, #tpu.memory_space<vmem>>, vector<4x128xf32>
    %124 = arith.truncf %123 : vector<4x128xf32> to vector<4x128xbf16>
    %c2_99 = arith.constant 2 : index
    %c0_100 = arith.constant 0 : index
    %c0_101 = arith.constant 0 : index
    %125 = vector.load %arg8[%c2_99, %c0_100, %c0_101] : memref<9x128x128xbf16, #tpu.memory_space<vmem>>, vector<1x128x128xbf16>
    %126 = vector.shape_cast %125 : vector<1x128x128xbf16> to vector<128x128xbf16>
    %cst_102 = arith.constant dense<0.000000e+00> : vector<4x128xf32>
    %127 = tpu.matmul %124, %126, %cst_102 {dimension_numbers = #tpu.dot_dimension_numbers<[1], [0], [0], [1], [0, 0, 1, 1], [], []>} : vector<4x128xbf16>, vector<128x128xbf16>, vector<4x128xf32> -> vector<4x128xf32>
    %128 = arith.addf %122, %127 : vector<4x128xf32>
    %c1_103 = arith.constant 1 : index
    %c0_104 = arith.constant 0 : index
    %129 = vector.load %arg14[%c1_103, %c0_104] : memref<6x192xf32, #tpu.memory_space<vmem>>, vector<4x128xf32>
    %130 = arith.truncf %129 : vector<4x128xf32> to vector<4x128xbf16>
    %c3_105 = arith.constant 3 : index
    %c0_106 = arith.constant 0 : index
    %c0_107 = arith.constant 0 : index
    %131 = vector.load %arg8[%c3_105, %c0_106, %c0_107] : memref<9x128x128xbf16, #tpu.memory_space<vmem>>, vector<1x128x128xbf16>
    %132 = vector.shape_cast %131 : vector<1x128x128xbf16> to vector<128x128xbf16>
    %cst_108 = arith.constant dense<0.000000e+00> : vector<4x128xf32>
    %133 = tpu.matmul %130, %132, %cst_108 {dimension_numbers = #tpu.dot_dimension_numbers<[1], [0], [0], [1], [0, 0, 1, 1], [], []>} : vector<4x128xbf16>, vector<128x128xbf16>, vector<4x128xf32> -> vector<4x128xf32>
    %134 = arith.addf %128, %133 : vector<4x128xf32>
    %c1_109 = arith.constant 1 : index
    %c32_110 = arith.constant 32 : index
    %135 = vector.load %arg14[%c1_109, %c32_110] : memref<6x192xf32, #tpu.memory_space<vmem>>, vector<4x128xf32>
    %136 = arith.truncf %135 : vector<4x128xf32> to vector<4x128xbf16>
    %c4 = arith.constant 4 : index
    %c0_111 = arith.constant 0 : index
    %c0_112 = arith.constant 0 : index
    %137 = vector.load %arg8[%c4, %c0_111, %c0_112] : memref<9x128x128xbf16, #tpu.memory_space<vmem>>, vector<1x128x128xbf16>
    %138 = vector.shape_cast %137 : vector<1x128x128xbf16> to vector<128x128xbf16>
    %cst_113 = arith.constant dense<0.000000e+00> : vector<4x128xf32>
    %139 = tpu.matmul %136, %138, %cst_113 {dimension_numbers = #tpu.dot_dimension_numbers<[1], [0], [0], [1], [0, 0, 1, 1], [], []>} : vector<4x128xbf16>, vector<128x128xbf16>, vector<4x128xf32> -> vector<4x128xf32>
    %140 = arith.addf %134, %139 : vector<4x128xf32>
    %c1_114 = arith.constant 1 : index
    %c64_115 = arith.constant 64 : index
    %141 = vector.load %arg14[%c1_114, %c64_115] : memref<6x192xf32, #tpu.memory_space<vmem>>, vector<4x128xf32>
    %142 = arith.truncf %141 : vector<4x128xf32> to vector<4x128xbf16>
    %c5 = arith.constant 5 : index
    %c0_116 = arith.constant 0 : index
    %c0_117 = arith.constant 0 : index
    %143 = vector.load %arg8[%c5, %c0_116, %c0_117] : memref<9x128x128xbf16, #tpu.memory_space<vmem>>, vector<1x128x128xbf16>
    %144 = vector.shape_cast %143 : vector<1x128x128xbf16> to vector<128x128xbf16>
    %cst_118 = arith.constant dense<0.000000e+00> : vector<4x128xf32>
    %145 = tpu.matmul %142, %144, %cst_118 {dimension_numbers = #tpu.dot_dimension_numbers<[1], [0], [0], [1], [0, 0, 1, 1], [], []>} : vector<4x128xbf16>, vector<128x128xbf16>, vector<4x128xf32> -> vector<4x128xf32>
    %146 = arith.addf %140, %145 : vector<4x128xf32>
    %c2_119 = arith.constant 2 : index
    %c0_120 = arith.constant 0 : index
    %147 = vector.load %arg14[%c2_119, %c0_120] : memref<6x192xf32, #tpu.memory_space<vmem>>, vector<4x128xf32>
    %148 = arith.truncf %147 : vector<4x128xf32> to vector<4x128xbf16>
    %c6 = arith.constant 6 : index
    %c0_121 = arith.constant 0 : index
    %c0_122 = arith.constant 0 : index
    %149 = vector.load %arg8[%c6, %c0_121, %c0_122] : memref<9x128x128xbf16, #tpu.memory_space<vmem>>, vector<1x128x128xbf16>
    %150 = vector.shape_cast %149 : vector<1x128x128xbf16> to vector<128x128xbf16>
    %cst_123 = arith.constant dense<0.000000e+00> : vector<4x128xf32>
    %151 = tpu.matmul %148, %150, %cst_123 {dimension_numbers = #tpu.dot_dimension_numbers<[1], [0], [0], [1], [0, 0, 1, 1], [], []>} : vector<4x128xbf16>, vector<128x128xbf16>, vector<4x128xf32> -> vector<4x128xf32>
    %152 = arith.addf %146, %151 : vector<4x128xf32>
    %c2_124 = arith.constant 2 : index
    %c32_125 = arith.constant 32 : index
    %153 = vector.load %arg14[%c2_124, %c32_125] : memref<6x192xf32, #tpu.memory_space<vmem>>, vector<4x128xf32>
    %154 = arith.truncf %153 : vector<4x128xf32> to vector<4x128xbf16>
    %c7 = arith.constant 7 : index
    %c0_126 = arith.constant 0 : index
    %c0_127 = arith.constant 0 : index
    %155 = vector.load %arg8[%c7, %c0_126, %c0_127] : memref<9x128x128xbf16, #tpu.memory_space<vmem>>, vector<1x128x128xbf16>
    %156 = vector.shape_cast %155 : vector<1x128x128xbf16> to vector<128x128xbf16>
    %cst_128 = arith.constant dense<0.000000e+00> : vector<4x128xf32>
    %157 = tpu.matmul %154, %156, %cst_128 {dimension_numbers = #tpu.dot_dimension_numbers<[1], [0], [0], [1], [0, 0, 1, 1], [], []>} : vector<4x128xbf16>, vector<128x128xbf16>, vector<4x128xf32> -> vector<4x128xf32>
    %158 = arith.addf %152, %157 : vector<4x128xf32>
    %c2_129 = arith.constant 2 : index
    %c64_130 = arith.constant 64 : index
    %159 = vector.load %arg14[%c2_129, %c64_130] : memref<6x192xf32, #tpu.memory_space<vmem>>, vector<4x128xf32>
    %160 = arith.truncf %159 : vector<4x128xf32> to vector<4x128xbf16>
    %c8 = arith.constant 8 : index
    %c0_131 = arith.constant 0 : index
    %c0_132 = arith.constant 0 : index
    %161 = vector.load %arg8[%c8, %c0_131, %c0_132] : memref<9x128x128xbf16, #tpu.memory_space<vmem>>, vector<1x128x128xbf16>
    %162 = vector.shape_cast %161 : vector<1x128x128xbf16> to vector<128x128xbf16>
    %cst_133 = arith.constant dense<0.000000e+00> : vector<4x128xf32>
    %163 = tpu.matmul %160, %162, %cst_133 {dimension_numbers = #tpu.dot_dimension_numbers<[1], [0], [0], [1], [0, 0, 1, 1], [], []>} : vector<4x128xbf16>, vector<128x128xbf16>, vector<4x128xf32> -> vector<4x128xf32>
    %164 = arith.addf %158, %163 : vector<4x128xf32>
    %c0_134 = arith.constant 0 : index
    %c0_135 = arith.constant 0 : index
    %165 = vector.load %arg9[%c0_134, %c0_135] : memref<1x128xf32, #tpu.memory_space<vmem>>, vector<1x128xf32>
    %166 = vector.broadcast %165 : vector<1x128xf32> to vector<4x128xf32>
    %167 = arith.addf %164, %166 : vector<4x128xf32>
    %168 = arith.negf %167 : vector<4x128xf32>
    %169 = math.exp %168 : vector<4x128xf32>
    %cst_136 = arith.constant 1.000000e+00 : f32
    %170 = vector.broadcast %cst_136 : f32 to vector<4x128xf32>
    %171 = arith.addf %170, %169 : vector<4x128xf32>
    %172 = arith.divf %170, %171 : vector<4x128xf32>
    %173 = arith.mulf %167, %172 : vector<4x128xf32>
    %c0_137 = arith.constant 0 : index
    %c0_138 = arith.constant 0 : index
    %c0_139 = arith.constant 0 : index
    %174 = vector.load %arg11[%c0_137, %c0_138, %c0_139] : memref<1x4x128xf32, #tpu.memory_space<vmem>>, vector<1x4x128xf32>
    %175 = vector.shape_cast %174 : vector<1x4x128xf32> to vector<4x128xf32>
    %176 = vector.shape_cast %173 : vector<4x128xf32> to vector<1x4x128xf32>
    tpu.vector_store %arg11[%c0_137, %c0_138, %c0_139], %176 {strides = array<i32>} : memref<1x4x128xf32, #tpu.memory_space<vmem>>, vector<1x4x128xf32>,
    return
  }
  func.func @transform_0(%arg0: i32) -> (i32, i32, i32) {
    %c0_i32 = arith.constant 0 : i32
    %c0_i32_0 = arith.constant 0 : i32
    %c0_i32_1 = arith.constant 0 : i32
    return %arg0, %c0_i32, %c0_i32_0 : i32, i32, i32
  }
  func.func @transform_1(%arg0: i32) -> (i32, i32, i32) {
    %c0_i32 = arith.constant 0 : i32
    %c0_i32_0 = arith.constant 0 : i32
    %c0_i32_1 = arith.constant 0 : i32
    %c0_i32_2 = arith.constant 0 : i32
    return %c0_i32, %c0_i32_0, %c0_i32_1 : i32, i32, i32
  }
  func.func @transform_2(%arg0: i32) -> (i32, i32) {
    %c0_i32 = arith.constant 0 : i32
    %c0_i32_0 = arith.constant 0 : i32
    %c0_i32_1 = arith.constant 0 : i32
    return %c0_i32, %c0_i32_0 : i32, i32
  }
  func.func @transform_3(%arg0: i32) -> (i32, i32, i32) {
    %c0_i32 = arith.constant 0 : i32
    %c0_i32_0 = arith.constant 0 : i32
    %c0_i32_1 = arith.constant 0 : i32
    %c0_i32_2 = arith.constant 0 : i32
    return %c0_i32, %c0_i32_0, %c0_i32_1 : i32, i32, i32
  }
  func.func @transform_4(%arg0: i32) -> (i32, i32) {
    %c0_i32 = arith.constant 0 : i32
    %c0_i32_0 = arith.constant 0 : i32
    %c0_i32_1 = arith.constant 0 : i32
    return %c0_i32, %c0_i32_0 : i32, i32
  }
  func.func @transform_5(%arg0: i32) -> (i32, i32) {
    %c0_i32 = arith.constant 0 : i32
    %c0_i32_0 = arith.constant 0 : i32
    %c0_i32_1 = arith.constant 0 : i32
    return %c0_i32, %c0_i32_0 : i32, i32
  }
  func.func @transform_6(%arg0: i32) -> (i32, i32) {
    %c0_i32 = arith.constant 0 : i32
    %c0_i32_0 = arith.constant 0 : i32
    %c0_i32_1 = arith.constant 0 : i32
    return %c0_i32, %c0_i32_0 : i32, i32
  }
  func.func @transform_7(%arg0: i32) -> (i32, i32, i32) {
    %c0_i32 = arith.constant 0 : i32
    %c0_i32_0 = arith.constant 0 : i32
    %c0_i32_1 = arith.constant 0 : i32
    %c0_i32_2 = arith.constant 0 : i32
    return %c0_i32, %c0_i32_0, %c0_i32_1 : i32, i32, i32
  }
  func.func @transform_8(%arg0: i32) -> (i32, i32) {
    %c0_i32 = arith.constant 0 : i32
    %c0_i32_0 = arith.constant 0 : i32
    %c0_i32_1 = arith.constant 0 : i32
    return %c0_i32, %c0_i32_0 : i32, i32
  }
  func.func @transform_9(%arg0: i32) -> (i32, i32, i32) {
    %c0_i32 = arith.constant 0 : i32
    %c0_i32_0 = arith.constant 0 : i32
    %c0_i32_1 = arith.constant 0 : i32
    return %arg0, %c0_i32, %c0_i32_0 : i32, i32, i32
  }
  func.func @transform_10(%arg0: i32) -> (i32, i32, i32) {
    %c0_i32 = arith.constant 0 : i32
    %c0_i32_0 = arith.constant 0 : i32
    %c0_i32_1 = arith.constant 0 : i32
    return %arg0, %c0_i32, %c0_i32_0 : i32, i32, i32
  }
}

</mosaic_0001>

<llo_original>
// kernel: tpu_custom_call.1
$region0: #{tpu_custom_call.1}
  #allocation0 [shape = 'u32[]', space=smem, size = 0x4, offset = 0x4, fixed_abs, tag = 'smem constant byte address 0x4 - core index']
  #allocation1 [shape = 'u32[144,128]{1,0:T(1,128)}', space=vmem, size = 0x12000, scoped, tag = 'internal scratch']
  #allocation2 [shape = 'f32[5,320]{1,0:T(8,128)}', space=vmem, size = 0x3000, scoped, tag = 'scratch operand']
  #allocation3 [shape = 'f32[5,160]{1,0:T(8,128)}', space=vmem, size = 0x2000, scoped, tag = 'scratch operand']
  #allocation4 [shape = 'f32[6,192]{1,0:T(8,128)}', space=vmem, size = 0x2000, scoped, tag = 'scratch operand']
  %s0 = inlined_call_operand.vmem [shape: bf16[2,4,256], index: 0, kind: input, shape index: {}]
  %s1 = inlined_call_operand.hbm [shape: bf16[4,256,128], index: 1, kind: input, shape index: {}]
  %s2 = inlined_call_operand.vmem [shape: f32[1,128], index: 2, kind: input, shape index: {}]
  %s3 = inlined_call_operand.vmem [shape: bf16[4,128,64], index: 3, kind: input, shape index: {}]
  %s4 = inlined_call_operand.vmem [shape: f32[1,64], index: 4, kind: input, shape index: {}]
  %s5 = inlined_call_operand.vmem [shape: bf16[64,64], index: 5, kind: input, shape index: {}]
  %s6 = inlined_call_operand.vmem [shape: f32[1,64], index: 6, kind: input, shape index: {}]
  %s7 = inlined_call_operand.hbm [shape: bf16[9,128,128], index: 7, kind: input, shape index: {}]
  %s8 = inlined_call_operand.vmem [shape: f32[1,128], index: 8, kind: input, shape index: {}]
  %s9 = inlined_call_operand.hbm [shape: f32[2,4,64], index: 9, kind: output, shape index: {0}]
  %s10 = inlined_call_operand.hbm [shape: f32[2,4,128], index: 10, kind: output, shape index: {1}]
  %11 = xla_tuple %s9, %s10
  %s12 = sld [smem:[#allocation0]]
  $region85: #{tpu_custom_call.1} parent=0
    _
  %s14 = ssub.s32 1, %s12
  %s15 = scalar_select 0, %s14, %s12
  $region1: #{tpu_custom_call.1} parent=0
    #allocation5 [shape = 'u8[262144]{0}', space=vmem, size = 0x40000, scoped, tag = 'input window, operand 1, single buffered']
    #allocation6 [shape = 's32[2]{0}', space=sflag, size = 0x8, scoped, tag = 'scoped memory for tpu_custom_call.1']
    #allocation7 [shape = 's32[2]{0}', space=sflag, size = 0x8, scoped, tag = 'scoped memory for tpu_custom_call.1']
    #allocation8 [shape = 'u8[294912]{0}', space=vmem, size = 0x48000, scoped, tag = 'input window, operand 7, single buffered']
    #allocation9 [shape = 's32[1]{0}', space=sflag, size = 0x4, scoped, tag = 'scoped memory for tpu_custom_call.1']
    #allocation10 [shape = 'u8[4096]{0}', space=vmem, size = 0x1000, scoped, tag = 'output window, operand 0']
    #allocation11 [shape = 'u8[4096]{0}', space=vmem, size = 0x1000, scoped, tag = 'output window, operand 1']
    #allocation12 [shape = 's32[2]{0}', space=sflag, size = 0x8, scoped, tag = 'scoped memory for tpu_custom_call.1']
    %16 = vsyncpa [#allocation6], 0
    %17 = vsyncpa [#allocation9], 0
    %18 = vsyncpa [#allocation7], 0
    %s19 = scalar_lea.sflag [#allocation7], 1
    %20 = vsyncpa %s19, 0
    %21 = vsyncpa [#allocation12], 0
    %s22 = scalar_lea.sflag [#allocation12], 1
    %23 = vsyncpa %s22, 0
    loop: start=0, step=1, limit=4
    $region2: #{tpu_custom_call.1} parent=1 // loop_pre_header
      _
    $region3: #{tpu_custom_call.1} parent=1 // loop_header
      %s25 = sphi 0, %s29
      %p26 = scmp.ge.s32.totalorder %s25, 4
      %s35 = sphi 0, %s37
      %s38 = sphi 0, %s35
      %s39 = sphi 0, %s38
      %s55 = sphi 0, %s39
      %s59 = sphi 0, %s59
      %s61 = sphi 0, %s59
      %s62 = sphi 0, %s61
      %s76 = sphi 0, %s62
      %s80 = sphi 0, %s80
      %s82 = sphi 0, %s80
      %s83 = sphi 0, %s82
      %s97 = sphi 0, %s83
      %s101 = sphi 0, %s101
      %s103 = sphi 0, %s101
      %s104 = sphi 0, %s103
      %s118 = sphi 0, %s104
      %s122 = sphi 0, %s122
      %s124 = sphi 0, %s122
      %s125 = sphi 0, %s124
      %s139 = sphi 0, %s125
      %s143 = sphi 0, %s143
      %s145 = sphi 0, %s143
      %s146 = sphi 0, %s145
      %s160 = sphi 0, %s146
      %s164 = sphi 0, %s164
      %s166 = sphi 0, %s164
      %s167 = sphi 0, %s166
      %s181 = sphi 0, %s167
      %s185 = sphi 0, %s185
      %s187 = sphi 0, %s185
      %s188 = sphi 0, %s187
      %s202 = sphi 0, %s188
      %s206 = sphi 0, %s206
      %s208 = sphi 0, %s206
      %s209 = sphi 0, %s208
      %s223 = sphi 0, %s209
      %s229 = sphi 0, %s231
      %s232 = sphi 0, %s229
      %s233 = sphi 0, %s232
      %s249 = sphi 0, %s233
      %s255 = sphi 0, %s257
      %s258 = sphi 0, %s255
      %s259 = sphi 0, %s258
      %s275 = sphi 0, %s259
    $region4: #{tpu_custom_call.1} parent=1 // loop_header_branch
      %28 = sbr.rel (%p26) target = $region8
    $region5: #{tpu_custom_call.1} parent=1 // loop_body
      %s30 = ssub.s32 %s25, 1
      %s31 = ssub.s32 %s25, 2
      %s32 = sadd.s32 %s25, 1
      %s33 = ssub.s32 %s25, %s32
      %p34 = scmp.eq.s32.totalorder %s33, 0
      %s36 = sadd.s32 %s35, 1
      %s37 = scalar_select %p34, %s35, %s36
      %p40 = pneg %p34
      %p41 = scmp.eq.s32.totalorder %s25, 1
      %p42 = por %p40, %p41
      %p43 = scmp.ne.s32.totalorder %s35, %s38
      %p44 = scmp.eq.s32.totalorder %s25, 0
      %p45 = por %p43, %p44
      %p46 = scmp.ne.s32.totalorder %s35, %s38
      %p47 = scmp.eq.s32.totalorder %s30, 1
      %p48 = por %p46, %p47
      %p49 = scmp.ne.s32.totalorder %s38, %s39
      %p50 = scmp.eq.s32.totalorder %s30, 0
      %p51 = por %p49, %p50
      %p52 = scmp.ne.s32.totalorder %s38, %s39
      %p53 = scmp.eq.s32.totalorder %s31, 1
      %p54 = por %p52, %p53
      %p56 = scmp.ne.s32.totalorder %s39, %s55
      %p57 = scmp.eq.s32.totalorder %s31, 0
      %p58 = por %p56, %p57
      %s60 = sadd.s32 %s59, 1
      %p63 = scmp.eq.s32.totalorder %s25, 1
      %p64 = scmp.ne.s32.totalorder %s59, %s61
      %p65 = scmp.eq.s32.totalorder %s25, 0
      %p66 = por %p64, %p65
      %p67 = scmp.ne.s32.totalorder %s59, %s61
      %p68 = scmp.eq.s32.totalorder %s30, 1
      %p69 = por %p67, %p68
      %p70 = scmp.ne.s32.totalorder %s61, %s62
      %p71 = scmp.eq.s32.totalorder %s30, 0
      %p72 = por %p70, %p71
      %p73 = scmp.ne.s32.totalorder %s61, %s62
      %p74 = scmp.eq.s32.totalorder %s31, 1
      %p75 = por %p73, %p74
      %p77 = scmp.ne.s32.totalorder %s62, %s76
      %p78 = scmp.eq.s32.totalorder %s31, 0
      %p79 = por %p77, %p78
      %s81 = sadd.s32 %s80, 1
      %p84 = scmp.eq.s32.totalorder %s25, 1
      %p85 = scmp.ne.s32.totalorder %s80, %s82
      %p86 = scmp.eq.s32.totalorder %s25, 0
      %p87 = por %p85, %p86
      %p88 = scmp.ne.s32.totalorder %s80, %s82
      %p89 = scmp.eq.s32.totalorder %s30, 1
      %p90 = por %p88, %p89
      %p91 = scmp.ne.s32.totalorder %s82, %s83
      %p92 = scmp.eq.s32.totalorder %s30, 0
      %p93 = por %p91, %p92
      %p94 = scmp.ne.s32.totalorder %s82, %s83
      %p95 = scmp.eq.s32.totalorder %s31, 1
      %p96 = por %p94, %p95
      %p98 = scmp.ne.s32.totalorder %s83, %s97
      %p99 = scmp.eq.s32.totalorder %s31, 0
      %p100 = por %p98, %p99
      %s102 = sadd.s32 %s101, 1
      %p105 = scmp.eq.s32.totalorder %s25, 1
      %p106 = scmp.ne.s32.totalorder %s101, %s103
      %p107 = scmp.eq.s32.totalorder %s25, 0
      %p108 = por %p106, %p107
      %p109 = scmp.ne.s32.totalorder %s101, %s103
      %p110 = scmp.eq.s32.totalorder %s30, 1
      %p111 = por %p109, %p110
      %p112 = scmp.ne.s32.totalorder %s103, %s104
      %p113 = scmp.eq.s32.totalorder %s30, 0
      %p114 = por %p112, %p113
      %p115 = scmp.ne.s32.totalorder %s103, %s104
      %p116 = scmp.eq.s32.totalorder %s31, 1
      %p117 = por %p115, %p116
      %p119 = scmp.ne.s32.totalorder %s104, %s118
      %p120 = scmp.eq.s32.totalorder %s31, 0
      %p121 = por %p119, %p120
      %s123 = sadd.s32 %s122, 1
      %p126 = scmp.eq.s32.totalorder %s25, 1
      %p127 = scmp.ne.s32.totalorder %s122, %s124
      %p128 = scmp.eq.s32.totalorder %s25, 0
      %p129 = por %p127, %p128
      %p130 = scmp.ne.s32.totalorder %s122, %s124
      %p131 = scmp.eq.s32.totalorder %s30, 1
      %p132 = por %p130, %p131
      %p133 = scmp.ne.s32.totalorder %s124, %s125
      %p134 = scmp.eq.s32.totalorder %s30, 0
      %p135 = por %p133, %p134
      %p136 = scmp.ne.s32.totalorder %s124, %s125
      %p137 = scmp.eq.s32.totalorder %s31, 1
      %p138 = por %p136, %p137
      %p140 = scmp.ne.s32.totalorder %s125, %s139
      %p141 = scmp.eq.s32.totalorder %s31, 0
      %p142 = por %p140, %p141
      %s144 = sadd.s32 %s143, 1
      %p147 = scmp.eq.s32.totalorder %s25, 1
      %p148 = scmp.ne.s32.totalorder %s143, %s145
      %p149 = scmp.eq.s32.totalorder %s25, 0
      %p150 = por %p148, %p149
      %p151 = scmp.ne.s32.totalorder %s143, %s145
      %p152 = scmp.eq.s32.totalorder %s30, 1
      %p153 = por %p151, %p152
      %p154 = scmp.ne.s32.totalorder %s145, %s146
      %p155 = scmp.eq.s32.totalorder %s30, 0
      %p156 = por %p154, %p155
      %p157 = scmp.ne.s32.totalorder %s145, %s146
      %p158 = scmp.eq.s32.totalorder %s31, 1
      %p159 = por %p157, %p158
      %p161 = scmp.ne.s32.totalorder %s146, %s160
      %p162 = scmp.eq.s32.totalorder %s31, 0
      %p163 = por %p161, %p162
      %s165 = sadd.s32 %s164, 1
      %p168 = scmp.eq.s32.totalorder %s25, 1
      %p169 = scmp.ne.s32.totalorder %s164, %s166
      %p170 = scmp.eq.s32.totalorder %s25, 0
      %p171 = por %p169, %p170
      %p172 = scmp.ne.s32.totalorder %s164, %s166
      %p173 = scmp.eq.s32.totalorder %s30, 1
      %p174 = por %p172, %p173
      %p175 = scmp.ne.s32.totalorder %s166, %s167
      %p176 = scmp.eq.s32.totalorder %s30, 0
      %p177 = por %p175, %p176
      %p178 = scmp.ne.s32.totalorder %s166, %s167
      %p179 = scmp.eq.s32.totalorder %s31, 1
      %p180 = por %p178, %p179
      %p182 = scmp.ne.s32.totalorder %s167, %s181
      %p183 = scmp.eq.s32.totalorder %s31, 0
      %p184 = por %p182, %p183
      %s186 = sadd.s32 %s185, 1
      %p189 = scmp.eq.s32.totalorder %s25, 1
      %p190 = scmp.ne.s32.totalorder %s185, %s187
      %p191 = scmp.eq.s32.totalorder %s25, 0
      %p192 = por %p190, %p191
      %p193 = scmp.ne.s32.totalorder %s185, %s187
      %p194 = scmp.eq.s32.totalorder %s30, 1
      %p195 = por %p193, %p194
      %p196 = scmp.ne.s32.totalorder %s187, %s188
      %p197 = scmp.eq.s32.totalorder %s30, 0
      %p198 = por %p196, %p197
      %p199 = scmp.ne.s32.totalorder %s187, %s188
      %p200 = scmp.eq.s32.totalorder %s31, 1
      %p201 = por %p199, %p200
      %p203 = scmp.ne.s32.totalorder %s188, %s202
      %p204 = scmp.eq.s32.totalorder %s31, 0
      %p205 = por %p203, %p204
      %s207 = sadd.s32 %s206, 1
      %p210 = scmp.eq.s32.totalorder %s25, 1
      %p211 = scmp.ne.s32.totalorder %s206, %s208
      %p212 = scmp.eq.s32.totalorder %s25, 0
      %p213 = por %p211, %p212
      %p214 = scmp.ne.s32.totalorder %s206, %s208
      %p215 = scmp.eq.s32.totalorder %s30, 1
      %p216 = por %p214, %p215
      %p217 = scmp.ne.s32.totalorder %s208, %s209
      %p218 = scmp.eq.s32.totalorder %s30, 0
      %p219 = por %p217, %p218
      %p220 = scmp.ne.s32.totalorder %s208, %s209
      %p221 = scmp.eq.s32.totalorder %s31, 1
      %p222 = por %p220, %p221
      %p224 = scmp.ne.s32.totalorder %s209, %s223
      %p225 = scmp.eq.s32.totalorder %s31, 0
      %p226 = por %p224, %p225
      %s227 = ssub.s32 %s25, %s32
      %p228 = scmp.eq.s32.totalorder %s227, 0
      %s230 = sadd.s32 %s229, 1
      %s231 = scalar_select %p228, %s229, %s230
      %p234 = pneg %p228
      %p235 = scmp.eq.s32.totalorder %s25, 1
      %p236 = por %p234, %p235
      %p237 = scmp.ne.s32.totalorder %s229, %s232
      %p238 = scmp.eq.s32.totalorder %s25, 0
      %p239 = por %p237, %p238
      %p240 = scmp.ne.s32.totalorder %s229, %s232
      %p241 = scmp.eq.s32.totalorder %s30, 1
      %p242 = por %p240, %p241
      %p243 = scmp.ne.s32.totalorder %s232, %s233
      %p244 = scmp.eq.s32.totalorder %s30, 0
      %p245 = por %p243, %p244
      %p246 = scmp.ne.s32.totalorder %s232, %s233
      %p247 = scmp.eq.s32.totalorder %s31, 1
      %p248 = por %p246, %p247
      %p250 = scmp.ne.s32.totalorder %s233, %s249
      %p251 = scmp.eq.s32.totalorder %s31, 0
      %p252 = por %p250, %p251
      %s253 = ssub.s32 %s25, %s32
      %p254 = scmp.eq.s32.totalorder %s253, 0
      %s256 = sadd.s32 %s255, 1
      %s257 = scalar_select %p254, %s255, %s256
      %p260 = pneg %p254
      %p261 = scmp.eq.s32.totalorder %s25, 1
      %p262 = por %p260, %p261
      %p263 = scmp.ne.s32.totalorder %s255, %s258
      %p264 = scmp.eq.s32.totalorder %s25, 0
      %p265 = por %p263, %p264
      %p266 = scmp.ne.s32.totalorder %s255, %s258
      %p267 = scmp.eq.s32.totalorder %s30, 1
      %p268 = por %p266, %p267
      %p269 = scmp.ne.s32.totalorder %s258, %s259
      %p270 = scmp.eq.s32.totalorder %s30, 0
      %p271 = por %p269, %p270
      %p272 = scmp.ne.s32.totalorder %s258, %s259
      %p273 = scmp.eq.s32.totalorder %s31, 1
      %p274 = por %p272, %p273
      %p276 = scmp.ne.s32.totalorder %s259, %s275
      %p277 = scmp.eq.s32.totalorder %s31, 0
      %p278 = por %p276, %p277
      %p279 = scmp.le.s32.totalorder 1, %s25
      %p280 = scmp.lt.s32.totalorder %s25, 3
      %p281 = pnand %p279, %p280
      %p282 = pneg %p281
      // Predicated region
      $region9: #{tpu_custom_call.1} parent=5 // pred_check
        _
      $region10: #{tpu_custom_call.1} parent=5 // pred_check_branch
        %284 = sbr.rel (%p281) target = $region12
      $region11: #{tpu_custom_call.1} parent=5 // pred_region
        %s285 = ssub.s32 %s25, 1
        // Predicated region
        $region13: #{tpu_custom_call.1} parent=11 // pred_check
          %p286 = pneg %p72
        $region14: #{tpu_custom_call.1} parent=11 // pred_check_branch
          %288 = sbr.rel (%p286) target = $region16
        $region15: #{tpu_custom_call.1} parent=11 // pred_region
          %s290 = ssub.s32 8192, 8192
          %291 = vsyncadd [#allocation6], %s290
          %s292 = sshll.u32 [#allocation5], 4
          %s293 = int_to_ptr.vmem [resolvable:$true] %s292
          %298 = dma.hbm_to_vmem [thread:$0]  %s1, 8192, %s293, [#allocation6], 64, 64, 4
        $region16: #{tpu_custom_call.1} parent=11 // pred_fallthru
          _
        // Predicated region
        $region17: #{tpu_custom_call.1} parent=11 // pred_check
          %p299 = pneg %p93
        $region18: #{tpu_custom_call.1} parent=11 // pred_check_branch
          %301 = sbr.rel (%p299) target = $region20
        $region19: #{tpu_custom_call.1} parent=11 // pred_region
          _
        $region20: #{tpu_custom_call.1} parent=11 // pred_fallthru
          _
        // Predicated region
        $region21: #{tpu_custom_call.1} parent=11 // pred_check
          %p302 = pneg %p114
        $region22: #{tpu_custom_call.1} parent=11 // pred_check_branch
          %304 = sbr.rel (%p302) target = $region24
        $region23: #{tpu_custom_call.1} parent=11 // pred_region
          _
        $region24: #{tpu_custom_call.1} parent=11 // pred_fallthru
          _
        // Predicated region
        $region25: #{tpu_custom_call.1} parent=11 // pred_check
          %p305 = pneg %p135
        $region26: #{tpu_custom_call.1} parent=11 // pred_check_branch
          %307 = sbr.rel (%p305) target = $region28
        $region27: #{tpu_custom_call.1} parent=11 // pred_region
          _
        $region28: #{tpu_custom_call.1} parent=11 // pred_fallthru
          _
        // Predicated region
        $region29: #{tpu_custom_call.1} parent=11 // pred_check
          %p308 = pneg %p156
        $region30: #{tpu_custom_call.1} parent=11 // pred_check_branch
          %310 = sbr.rel (%p308) target = $region32
        $region31: #{tpu_custom_call.1} parent=11 // pred_region
          _
        $region32: #{tpu_custom_call.1} parent=11 // pred_fallthru
          _
        // Predicated region
        $region33: #{tpu_custom_call.1} parent=11 // pred_check
          %p311 = pneg %p177
        $region34: #{tpu_custom_call.1} parent=11 // pred_check_branch
          %313 = sbr.rel (%p311) target = $region36
        $region35: #{tpu_custom_call.1} parent=11 // pred_region
          _
        $region36: #{tpu_custom_call.1} parent=11 // pred_fallthru
          _
        // Predicated region
        $region37: #{tpu_custom_call.1} parent=11 // pred_check
          %p314 = pneg %p198
        $region38: #{tpu_custom_call.1} parent=11 // pred_check_branch
          %316 = sbr.rel (%p314) target = $region40
        $region39: #{tpu_custom_call.1} parent=11 // pred_region
          %s318 = ssub.s32 9216, 9216
          %319 = vsyncadd [#allocation9], %s318
          %s320 = sshll.u32 [#allocation8], 4
          %s321 = int_to_ptr.vmem [resolvable:$true] %s320
          %326 = dma.hbm_to_vmem [thread:$0]  %s7, 9216, %s321, [#allocation9], 64, 64, 4
        $region40: #{tpu_custom_call.1} parent=11 // pred_fallthru
          _
        // Predicated region
        $region41: #{tpu_custom_call.1} parent=11 // pred_check
          %p327 = pneg %p219
        $region42: #{tpu_custom_call.1} parent=11 // pred_check_branch
          %329 = sbr.rel (%p327) target = $region44
        $region43: #{tpu_custom_call.1} parent=11 // pred_region
          _
        $region44: #{tpu_custom_call.1} parent=11 // pred_fallthru
          _
      $region12: #{tpu_custom_call.1} parent=5 // pred_fallthru
        _
      %p330 = scmp.lt.s32.totalorder %s25, 2
      // Predicated region
      $region45: #{tpu_custom_call.1} parent=5 // pred_check
        %p331 = pneg %p330
      $region46: #{tpu_custom_call.1} parent=5 // pred_check_branch
        %333 = sbr.rel (%p331) target = $region48
      $region47: #{tpu_custom_call.1} parent=5 // pred_region
        // Predicated region
        $region49: #{tpu_custom_call.1} parent=47 // pred_check
          %p334 = pneg %p45
        $region50: #{tpu_custom_call.1} parent=47 // pred_check_branch
          %336 = sbr.rel (%p334) target = $region52
        $region51: #{tpu_custom_call.1} parent=47 // pred_region
          %p337 = scmp.lt.s32.totalorder %s25, 1
          %s338 = scalar_select %p337, %s25, 1
          %s339 = smul.addr %s338, 2
          %s340 = smul.addr %s339, 2
          %s341 = scalar_lea.vmem %s0, %s340
        $region52: #{tpu_custom_call.1} parent=47 // pred_fallthru
          _
      $region48: #{tpu_custom_call.1} parent=5 // pred_fallthru
        _
      %p342 = scmp.le.s32.totalorder 1, %s25
      %p343 = scmp.lt.s32.totalorder %s25, 3
      %p344 = pnand %p342, %p343
      %p345 = pneg %p344
      // Predicated region
      $region53: #{tpu_custom_call.1} parent=5 // pred_check
        _
      $region54: #{tpu_custom_call.1} parent=5 // pred_check_branch
        %347 = sbr.rel (%p344) target = $region56
      $region55: #{tpu_custom_call.1} parent=5 // pred_region
        %s348 = ssub.s32 %s25, 1
        // Predicated region
        $region57: #{tpu_custom_call.1} parent=55 // pred_check
          %p349 = pneg %p72
        $region58: #{tpu_custom_call.1} parent=55 // pred_check_branch
          %351 = sbr.rel (%p349) target = $region60
        $region59: #{tpu_custom_call.1} parent=55 // pred_region
          %352 = dma.done [#allocation6], 8192
        $region60: #{tpu_custom_call.1} parent=55 // pred_fallthru
          _
        // Predicated region
        $region61: #{tpu_custom_call.1} parent=55 // pred_check
          %p353 = pneg %p198
        $region62: #{tpu_custom_call.1} parent=55 // pred_check_branch
          %355 = sbr.rel (%p353) target = $region64
        $region63: #{tpu_custom_call.1} parent=55 // pred_region
          %356 = dma.done [#allocation9], 9216
        $region64: #{tpu_custom_call.1} parent=55 // pred_fallthru
          _
        %p357 = scmp.lt.s32.totalorder %s30, 1
        %s358 = scalar_select %p357, %s30, 1
        %s359 = smul.addr %s358, 2
        %s360 = smul.addr %s359, 2
        %s361 = scalar_lea.vmem %s0, %s360
        %p362 = pneg %p51
        %p363 = pneg %p48
        %p364 = pneg %p72
        %p365 = pneg %p69
        %p366 = pneg %p93
        %p367 = pneg %p90
        %p368 = pneg %p114
        %p369 = pneg %p111
        %p370 = pneg %p135
        %p371 = pneg %p132
        %p372 = pneg %p156
        %p373 = pneg %p153
        %p374 = pneg %p177
        %p375 = pneg %p174
        %p376 = pneg %p198
        %p377 = pneg %p195
        %p378 = pneg %p219
        %p379 = pneg %p216
        %p380 = pneg %p245
        %p381 = pneg %p242
        %s382 = sand.u32 %s232, 1
        %s383 = scalar_lea.sflag [#allocation7], %s382
        %s384 = sand.u32 %s232, 1
        %s385 = smul.addr %s384, 4
        %s386 = scalar_lea.vmem [#allocation10], %s385
        %p387 = pneg %p271
        %p388 = pneg %p268
        %s389 = sand.u32 %s258, 1
        %s390 = scalar_lea.sflag [#allocation12], %s389
        %s391 = sand.u32 %s258, 1
        %s392 = smul.addr %s391, 4
        %s393 = scalar_lea.vmem [#allocation11], %s392
        %p394 = scmp.lt.s32.totalorder %s30, 1
        %s395 = scalar_select %p394, %s30, 1
        %s396 = smul.addr %s395, 2
        %s397 = smul.addr %s396, 2
        %s398 = scalar_lea.vmem %s0, %s397
        %400 = vst [vmem:[#allocation2] sm:$0x1f] 0.0
        %401 = vst [vmem:[#allocation2 + $0x8] sm:$0x1f] 0.0
        %vm402 = vcmask 520192
        %403 = vst.msk [vmem:[#allocation2 + $0x10] sm:$0x1f] %vm402, 0.0
        %404 = vst [vmem:[#allocation3] sm:$0x1f] 0.0
        %vm405 = vcmask 258048
        %406 = vst.msk [vmem:[#allocation3 + $0x8] sm:$0x1f] %vm405, 0.0
        %407 = vst [vmem:[#allocation4] sm:$0x3f] 0.0
        %vm408 = vcmask 521216
        %409 = vst.msk [vmem:[#allocation4 + $0x8] sm:$0x3f] %vm408, 0.0
        %v410 = vld [vmem:[%s398] sm:$0xf]
        %v411 = vunpack.c.l.bf16 %v410
        %v413 = vcombine.high %v411, %v411
        %v414 = vrot.slane %v411, 7
        %v415 = vrot.slane %v413, 7
        %416 = vrot.lane.b32.xlu0 %v414, 64
        %v417 = vpop.permute.xlu0 %416
        %418 = vrot.lane.b32.xlu0 %v415, 64
        %v419 = vpop.permute.xlu0 %418
        %vm420 = vcmask 523264
        %v421 = vsel %vm420, %v417, %v419
        %vm425 = vcmask 1044993
        %426 = vst.msk [vmem:[#allocation2] sm:$0x1e] %vm425, %v417
        %427 = vst [vmem:[#allocation2 + $0x8] sm:$0x1e] %v421
        %vm428 = vcmask 520193
        %429 = vst.msk [vmem:[#allocation2 + $0x10] sm:$0x1e] %vm428, %v419
        %v430 = vld [vmem:[#allocation2] sm:$0xf]
        %v431 = vld [vmem:[#allocation2 + $0x8] sm:$0xf]
        %v432 = vpack.c.bf16 %v430, %v430
        %v433 = vpack.c.bf16 %v431, %v431
        %v434 = vld [vmem:[#allocation5] sm:$0xf]
        %v435 = vld [vmem:[#allocation5 + $0x4] sm:$0xf]
        %v436 = vld [vmem:[#allocation5 + $0x8] sm:$0xf]
        %v437 = vld [vmem:[#allocation5 + $0xc] sm:$0xf]
        %v438 = vld [vmem:[#allocation5 + $0x10] sm:$0xf]
        %v439 = vld [vmem:[#allocation5 + $0x14] sm:$0xf]
        %v440 = vld [vmem:[#allocation5 + $0x18] sm:$0xf]
        %v441 = vld [vmem:[#allocation5 + $0x1c] sm:$0xf]
        %v442 = vld [vmem:[#allocation5 + $0x20] sm:$0xf]
        %v443 = vld [vmem:[#allocation5 + $0x24] sm:$0xf]
        %v444 = vld [vmem:[#allocation5 + $0x28] sm:$0xf]
        %v445 = vld [vmem:[#allocation5 + $0x2c] sm:$0xf]
        %v446 = vld [vmem:[#allocation5 + $0x30] sm:$0xf]
        %v447 = vld [vmem:[#allocation5 + $0x34] sm:$0xf]
        %v448 = vld [vmem:[#allocation5 + $0x38] sm:$0xf]
        %v449 = vld [vmem:[#allocation5 + $0x3c] sm:$0xf]
        %v450 = vld [vmem:[#allocation5 + $0x40] sm:$0xf]
        %v451 = vld [vmem:[#allocation5 + $0x44] sm:$0xf]
        %v452 = vld [vmem:[#allocation5 + $0x48] sm:$0xf]
        %v453 = vld [vmem:[#allocation5 + $0x4c] sm:$0xf]
        %v454 = vld [vmem:[#allocation5 + $0x50] sm:$0xf]
        %v455 = vld [vmem:[#allocation5 + $0x54] sm:$0xf]
        %v456 = vld [vmem:[#allocation5 + $0x58] sm:$0xf]
        %v457 = vld [vmem:[#allocation5 + $0x5c] sm:$0xf]
        %v458 = vld [vmem:[#allocation5 + $0x60] sm:$0xf]
        %v459 = vld [vmem:[#allocation5 + $0x64] sm:$0xf]
        %v460 = vld [vmem:[#allocation5 + $0x68] sm:$0xf]
        %v461 = vld [vmem:[#allocation5 + $0x6c] sm:$0xf]
        %v462 = vld [vmem:[#allocation5 + $0x70] sm:$0xf]
        %v463 = vld [vmem:[#allocation5 + $0x74] sm:$0xf]
        %v464 = vld [vmem:[#allocation5 + $0x78] sm:$0xf]
        %v465 = vld [vmem:[#allocation5 + $0x7c] sm:$0xf]
        %v466 = vld [vmem:[#allocation2 + $0x10] sm:$0xf]
        %v467 = vpack.c.bf16 %v466, %v466
        %s468 = scalar_lea.vmem [#allocation5], 128
        %v469 = vld [vmem:[%s468] sm:$0xf]
        %v470 = vld [vmem:[%s468 + $0x4] sm:$0xf]
        %v471 = vld [vmem:[%s468 + $0x8] sm:$0xf]
        %v472 = vld [vmem:[%s468 + $0xc] sm:$0xf]
        %v473 = vld [vmem:[%s468 + $0x10] sm:$0xf]
        %v474 = vld [vmem:[%s468 + $0x14] sm:$0xf]
        %v475 = vld [vmem:[%s468 + $0x18] sm:$0xf]
        %v476 = vld [vmem:[%s468 + $0x1c] sm:$0xf]
        %v477 = vld [vmem:[%s468 + $0x20] sm:$0xf]
        %v478 = vld [vmem:[%s468 + $0x24] sm:$0xf]
        %v479 = vld [vmem:[%s468 + $0x28] sm:$0xf]
        %v480 = vld [vmem:[%s468 + $0x2c] sm:$0xf]
        %v481 = vld [vmem:[%s468 + $0x30] sm:$0xf]
        %v482 = vld [vmem:[%s468 + $0x34] sm:$0xf]
        %v483 = vld [vmem:[%s468 + $0x38] sm:$0xf]
        %v484 = vld [vmem:[%s468 + $0x3c] sm:$0xf]
        %v485 = vld [vmem:[%s468 + $0x40] sm:$0xf]
        %v486 = vld [vmem:[%s468 + $0x44] sm:$0xf]
        %v487 = vld [vmem:[%s468 + $0x48] sm:$0xf]
        %v488 = vld [vmem:[%s468 + $0x4c] sm:$0xf]
        %v489 = vld [vmem:[%s468 + $0x50] sm:$0xf]
        %v490 = vld [vmem:[%s468 + $0x54] sm:$0xf]
        %v491 = vld [vmem:[%s468 + $0x58] sm:$0xf]
        %v492 = vld [vmem:[%s468 + $0x5c] sm:$0xf]
        %v493 = vld [vmem:[%s468 + $0x60] sm:$0xf]
        %v494 = vld [vmem:[%s468 + $0x64] sm:$0xf]
        %v495 = vld [vmem:[%s468 + $0x68] sm:$0xf]
        %v496 = vld [vmem:[%s468 + $0x6c] sm:$0xf]
        %v497 = vld [vmem:[%s468 + $0x70] sm:$0xf]
        %v498 = vld [vmem:[%s468 + $0x74] sm:$0xf]
        %v499 = vld [vmem:[%s468 + $0x78] sm:$0xf]
        %v500 = vld [vmem:[%s468 + $0x7c] sm:$0xf]
        %504 = vrot.lane.b32.xlu0 %v432, 64
        %v505 = vpop.permute.xlu0 %504
        %506 = vrot.lane.b32.xlu0 %v433, 64
        %v507 = vpop.permute.xlu0 %506
        %508 = vrot.lane.b32.xlu0 %v467, 64
        %v509 = vpop.permute.xlu0 %508
        %vm510 = vcmask 523264
        %v511 = vsel %vm510, %v505, %v507
        %v512 = vsel %vm510, %v507, %v509
        %v547 = vunpack.c.l.b16 %v469
        %v548 = vunpack.c.l.b16 %v470
        %v549 = vunpack.c.l.b16 %v471
        %v550 = vunpack.c.l.b16 %v472
        %v551 = vunpack.c.l.b16 %v473
        %v552 = vunpack.c.l.b16 %v474
        %v553 = vunpack.c.l.b16 %v475
        %v554 = vunpack.c.l.b16 %v476
        %v555 = vunpack.c.l.b16 %v477
        %v556 = vunpack.c.l.b16 %v478
        %v557 = vunpack.c.l.b16 %v479
        %v558 = vunpack.c.l.b16 %v480
        %v559 = vunpack.c.l.b16 %v481
        %v560 = vunpack.c.l.b16 %v482
        %v561 = vunpack.c.l.b16 %v483
        %v562 = vunpack.c.l.b16 %v484
        %v563 = vunpack.c.l.b16 %v485
        %v564 = vunpack.c.l.b16 %v486
        %v565 = vunpack.c.l.b16 %v487
        %v566 = vunpack.c.l.b16 %v488
        %v567 = vunpack.c.l.b16 %v489
        %v568 = vunpack.c.l.b16 %v490
        %v569 = vunpack.c.l.b16 %v491
        %v570 = vunpack.c.l.b16 %v492
        %v571 = vunpack.c.l.b16 %v493
        %v572 = vunpack.c.l.b16 %v494
        %v573 = vunpack.c.l.b16 %v495
        %v574 = vunpack.c.l.b16 %v496
        %v575 = vunpack.c.l.b16 %v497
        %v576 = vunpack.c.l.b16 %v498
        %v577 = vunpack.c.l.b16 %v499
        %v578 = vunpack.c.l.b16 %v500
        %v579 = vpack.c.b16 %v548, %v547
        %v580 = vpack.c.b16 %v550, %v549
        %v581 = vpack.c.b16 %v552, %v551
        %v582 = vpack.c.b16 %v554, %v553
        %v583 = vpack.c.b16 %v556, %v555
        %v584 = vpack.c.b16 %v558, %v557
        %v585 = vpack.c.b16 %v560, %v559
        %v586 = vpack.c.b16 %v562, %v561
        %v587 = vpack.c.b16 %v564, %v563
        %v588 = vpack.c.b16 %v566, %v565
        %v589 = vpack.c.b16 %v568, %v567
        %v590 = vpack.c.b16 %v570, %v569
        %v591 = vpack.c.b16 %v572, %v571
        %v592 = vpack.c.b16 %v574, %v573
        %v593 = vpack.c.b16 %v576, %v575
        %v594 = vpack.c.b16 %v578, %v577
        %611 = vmatprep.subr.bf16.mxu0 0
        %612 = vmatpush1.bf16.msra.mxu0 %v579
        %613 = vmatprep.subr.bf16.mxu0 0
        %614 = vmatpush1.bf16.msra.mxu0 %v580
        %615 = vmatprep.subr.bf16.mxu0 0
        %616 = vmatpush1.bf16.msra.mxu0 %v581
        %617 = vmatprep.subr.bf16.mxu0 0
        %618 = vmatpush1.bf16.msra.mxu0 %v582
        %619 = vmatprep.subr.bf16.mxu0 0
        %620 = vmatpush1.bf16.msra.mxu0 %v583
        %621 = vmatprep.subr.bf16.mxu0 0
        %622 = vmatpush1.bf16.msra.mxu0 %v584
        %623 = vmatprep.subr.bf16.mxu0 0
        %624 = vmatpush1.bf16.msra.mxu0 %v585
        %625 = vmatprep.subr.bf16.mxu0 0
        %626 = vmatpush1.bf16.msra.mxu0 %v586
        %627 = vmatprep.subr.bf16.mxu0 0
        %628 = vmatpush1.bf16.msra.mxu0 %v587
        %629 = vmatprep.subr.bf16.mxu0 0
        %630 = vmatpush1.bf16.msra.mxu0 %v588
        %631 = vmatprep.subr.bf16.mxu0 0
        %632 = vmatpush1.bf16.msra.mxu0 %v589
        %633 = vmatprep.subr.bf16.mxu0 0
        %634 = vmatpush1.bf16.msra.mxu0 %v590
        %635 = vmatprep.subr.bf16.mxu0 0
        %636 = vmatpush1.bf16.msra.mxu0 %v591
        %637 = vmatprep.subr.bf16.mxu0 0
        %638 = vmatpush1.bf16.msra.mxu0 %v592
        %639 = vmatprep.subr.bf16.mxu0 0
        %640 = vmatpush1.bf16.msra.mxu0 %v593
        %641 = vmatprep.subr.bf16.mxu0 0
        %642 = vmatpush1.bf16.msra.mxu0 %v594
        %643 = vmatprep.mubr.bf16.mxu0 %v512
        %644 = vmatmul.mubr.bf16.gmra.mrb[0].mxu0 %v511
        %v645 = vpop.f32.mrb[0].mxu0
        %v646 = vadd.f32 0.0, %v645
        %v647 = vpop.f32.mrb[0].mxu0
        %v648 = vpop.f32.mrb[0].mxu0
        %v649 = vpop.f32.mrb[0].mxu0
        %650 = vdwg.mxu0
        %v683 = vunpack.c.l.b16 %v434
        %v684 = vunpack.c.l.b16 %v435
        %v685 = vunpack.c.l.b16 %v436
        %v686 = vunpack.c.l.b16 %v437
        %v687 = vunpack.c.l.b16 %v438
        %v688 = vunpack.c.l.b16 %v439
        %v689 = vunpack.c.l.b16 %v440
        %v690 = vunpack.c.l.b16 %v441
        %v691 = vunpack.c.l.b16 %v442
        %v692 = vunpack.c.l.b16 %v443
        %v693 = vunpack.c.l.b16 %v444
        %v694 = vunpack.c.l.b16 %v445
        %v695 = vunpack.c.l.b16 %v446
        %v696 = vunpack.c.l.b16 %v447
        %v697 = vunpack.c.l.b16 %v448
        %v698 = vunpack.c.l.b16 %v449
        %v699 = vunpack.c.l.b16 %v450
        %v700 = vunpack.c.l.b16 %v451
        %v701 = vunpack.c.l.b16 %v452
        %v702 = vunpack.c.l.b16 %v453
        %v703 = vunpack.c.l.b16 %v454
        %v704 = vunpack.c.l.b16 %v455
        %v705 = vunpack.c.l.b16 %v456
        %v706 = vunpack.c.l.b16 %v457
        %v707 = vunpack.c.l.b16 %v458
        %v708 = vunpack.c.l.b16 %v459
        %v709 = vunpack.c.l.b16 %v460
        %v710 = vunpack.c.l.b16 %v461
        %v711 = vunpack.c.l.b16 %v462
        %v712 = vunpack.c.l.b16 %v463
        %v713 = vunpack.c.l.b16 %v464
        %v714 = vunpack.c.l.b16 %v465
        %v715 = vpack.c.b16 %v684, %v683
        %v716 = vpack.c.b16 %v686, %v685
        %v717 = vpack.c.b16 %v688, %v687
        %v718 = vpack.c.b16 %v690, %v689
        %v719 = vpack.c.b16 %v692, %v691
        %v720 = vpack.c.b16 %v694, %v693
        %v721 = vpack.c.b16 %v696, %v695
        %v722 = vpack.c.b16 %v698, %v697
        %v723 = vpack.c.b16 %v700, %v699
        %v724 = vpack.c.b16 %v702, %v701
        %v725 = vpack.c.b16 %v704, %v703
        %v726 = vpack.c.b16 %v706, %v705
        %v727 = vpack.c.b16 %v708, %v707
        %v728 = vpack.c.b16 %v710, %v709
        %v729 = vpack.c.b16 %v712, %v711
        %v730 = vpack.c.b16 %v714, %v713
        %747 = vmatprep.subr.bf16.mxu0 0
        %748 = vmatpush1.bf16.msra.mxu0 %v715
        %749 = vmatprep.subr.bf16.mxu0 0
        %750 = vmatpush1.bf16.msra.mxu0 %v716
        %751 = vmatprep.subr.bf16.mxu0 0
        %752 = vmatpush1.bf16.msra.mxu0 %v717
        %753 = vmatprep.subr.bf16.mxu0 0
        %754 = vmatpush1.bf16.msra.mxu0 %v718
        %755 = vmatprep.subr.bf16.mxu0 0
        %756 = vmatpush1.bf16.msra.mxu0 %v719
        %757 = vmatprep.subr.bf16.mxu0 0
        %758 = vmatpush1.bf16.msra.mxu0 %v720
        %759 = vmatprep.subr.bf16.mxu0 0
        %760 = vmatpush1.bf16.msra.mxu0 %v721
        %761 = vmatprep.subr.bf16.mxu0 0
        %762 = vmatpush1.bf16.msra.mxu0 %v722
        %763 = vmatprep.subr.bf16.mxu0 0
        %764 = vmatpush1.bf16.msra.mxu0 %v723
        %765 = vmatprep.subr.bf16.mxu0 0
        %766 = vmatpush1.bf16.msra.mxu0 %v724
        %767 = vmatprep.subr.bf16.mxu0 0
        %768 = vmatpush1.bf16.msra.mxu0 %v725
        %769 = vmatprep.subr.bf16.mxu0 0
        %770 = vmatpush1.bf16.msra.mxu0 %v726
        %771 = vmatprep.subr.bf16.mxu0 0
        %772 = vmatpush1.bf16.msra.mxu0 %v727
        %773 = vmatprep.subr.bf16.mxu0 0
        %774 = vmatpush1.bf16.msra.mxu0 %v728
        %775 = vmatprep.subr.bf16.mxu0 0
        %776 = vmatpush1.bf16.msra.mxu0 %v729
        %777 = vmatprep.subr.bf16.mxu0 0
        %778 = vmatpush1.bf16.msra.mxu0 %v730
        %779 = vmatprep.mubr.bf16.mxu0 %v433
        %780 = vmatmul.mubr.bf16.gmra.mrb[0].mxu0 %v432
        %v781 = vpop.f32.mrb[0].mxu0
        %v782 = vadd.f32 %v646, %v781
        %v783 = vpop.f32.mrb[0].mxu0
        %v784 = vpop.f32.mrb[0].mxu0
        %v785 = vpop.f32.mrb[0].mxu0
        %786 = vdwg.mxu0
        %v787 = vld [vmem:[#allocation2] sm:$0x1e]
        %v788 = vld [vmem:[#allocation2 + $0x8] sm:$0x1e]
        %v789 = vpack.c.bf16 %v787, %v787
        %v790 = vpack.c.bf16 %v788, %v788
        %s791 = scalar_lea.vmem [#allocation5], 256
        %v792 = vld [vmem:[%s791] sm:$0xf]
        %v793 = vld [vmem:[%s791 + $0x4] sm:$0xf]
        %v794 = vld [vmem:[%s791 + $0x8] sm:$0xf]
        %v795 = vld [vmem:[%s791 + $0xc] sm:$0xf]
        %v796 = vld [vmem:[%s791 + $0x10] sm:$0xf]
        %v797 = vld [vmem:[%s791 + $0x14] sm:$0xf]
        %v798 = vld [vmem:[%s791 + $0x18] sm:$0xf]
        %v799 = vld [vmem:[%s791 + $0x1c] sm:$0xf]
        %v800 = vld [vmem:[%s791 + $0x20] sm:$0xf]
        %v801 = vld [vmem:[%s791 + $0x24] sm:$0xf]
        %v802 = vld [vmem:[%s791 + $0x28] sm:$0xf]
        %v803 = vld [vmem:[%s791 + $0x2c] sm:$0xf]
        %v804 = vld [vmem:[%s791 + $0x30] sm:$0xf]
        %v805 = vld [vmem:[%s791 + $0x34] sm:$0xf]
        %v806 = vld [vmem:[%s791 + $0x38] sm:$0xf]
        %v807 = vld [vmem:[%s791 + $0x3c] sm:$0xf]
        %v808 = vld [vmem:[%s791 + $0x40] sm:$0xf]
        %v809 = vld [vmem:[%s791 + $0x44] sm:$0xf]
        %v810 = vld [vmem:[%s791 + $0x48] sm:$0xf]
        %v811 = vld [vmem:[%s791 + $0x4c] sm:$0xf]
        %v812 = vld [vmem:[%s791 + $0x50] sm:$0xf]
        %v813 = vld [vmem:[%s791 + $0x54] sm:$0xf]
        %v814 = vld [vmem:[%s791 + $0x58] sm:$0xf]
        %v815 = vld [vmem:[%s791 + $0x5c] sm:$0xf]
        %v816 = vld [vmem:[%s791 + $0x60] sm:$0xf]
        %v817 = vld [vmem:[%s791 + $0x64] sm:$0xf]
        %v818 = vld [vmem:[%s791 + $0x68] sm:$0xf]
        %v819 = vld [vmem:[%s791 + $0x6c] sm:$0xf]
        %v820 = vld [vmem:[%s791 + $0x70] sm:$0xf]
        %v821 = vld [vmem:[%s791 + $0x74] sm:$0xf]
        %v822 = vld [vmem:[%s791 + $0x78] sm:$0xf]
        %v823 = vld [vmem:[%s791 + $0x7c] sm:$0xf]
        %v825 = vshrl.u32 %v789, 16
        %v827 = vshll.u32 %v789, 16
        %v829 = vrot.slane %v827, 1
        %v830 = vor.u32 %v825, %v829
        %v832 = vshrl.u32 %v790, 16
        %v834 = vshll.u32 %v790, 16
        %v836 = vrot.slane %v834, 1
        %v837 = vor.u32 %v832, %v836
        %v872 = vunpack.c.l.b16 %v792
        %v873 = vunpack.c.l.b16 %v793
        %v874 = vunpack.c.l.b16 %v794
        %v875 = vunpack.c.l.b16 %v795
        %v876 = vunpack.c.l.b16 %v796
        %v877 = vunpack.c.l.b16 %v797
        %v878 = vunpack.c.l.b16 %v798
        %v879 = vunpack.c.l.b16 %v799
        %v880 = vunpack.c.l.b16 %v800
        %v881 = vunpack.c.l.b16 %v801
        %v882 = vunpack.c.l.b16 %v802
        %v883 = vunpack.c.l.b16 %v803
        %v884 = vunpack.c.l.b16 %v804
        %v885 = vunpack.c.l.b16 %v805
        %v886 = vunpack.c.l.b16 %v806
        %v887 = vunpack.c.l.b16 %v807
        %v888 = vunpack.c.l.b16 %v808
        %v889 = vunpack.c.l.b16 %v809
        %v890 = vunpack.c.l.b16 %v810
        %v891 = vunpack.c.l.b16 %v811
        %v892 = vunpack.c.l.b16 %v812
        %v893 = vunpack.c.l.b16 %v813
        %v894 = vunpack.c.l.b16 %v814
        %v895 = vunpack.c.l.b16 %v815
        %v896 = vunpack.c.l.b16 %v816
        %v897 = vunpack.c.l.b16 %v817
        %v898 = vunpack.c.l.b16 %v818
        %v899 = vunpack.c.l.b16 %v819
        %v900 = vunpack.c.l.b16 %v820
        %v901 = vunpack.c.l.b16 %v821
        %v902 = vunpack.c.l.b16 %v822
        %v903 = vunpack.c.l.b16 %v823
        %v904 = vpack.c.b16 %v873, %v872
        %v905 = vpack.c.b16 %v875, %v874
        %v906 = vpack.c.b16 %v877, %v876
        %v907 = vpack.c.b16 %v879, %v878
        %v908 = vpack.c.b16 %v881, %v880
        %v909 = vpack.c.b16 %v883, %v882
        %v910 = vpack.c.b16 %v885, %v884
        %v911 = vpack.c.b16 %v887, %v886
        %v912 = vpack.c.b16 %v889, %v888
        %v913 = vpack.c.b16 %v891, %v890
        %v914 = vpack.c.b16 %v893, %v892
        %v915 = vpack.c.b16 %v895, %v894
        %v916 = vpack.c.b16 %v897, %v896
        %v917 = vpack.c.b16 %v899, %v898
        %v918 = vpack.c.b16 %v901, %v900
        %v919 = vpack.c.b16 %v903, %v902
        %936 = vmatprep.subr.bf16.mxu0 0
        %937 = vmatpush1.bf16.msra.mxu0 %v904
        %938 = vmatprep.subr.bf16.mxu0 0
        %939 = vmatpush1.bf16.msra.mxu0 %v905
        %940 = vmatprep.subr.bf16.mxu0 0
        %941 = vmatpush1.bf16.msra.mxu0 %v906
        %942 = vmatprep.subr.bf16.mxu0 0
        %943 = vmatpush1.bf16.msra.mxu0 %v907
        %944 = vmatprep.subr.bf16.mxu0 0
        %945 = vmatpush1.bf16.msra.mxu0 %v908
        %946 = vmatprep.subr.bf16.mxu0 0
        %947 = vmatpush1.bf16.msra.mxu0 %v909
        %948 = vmatprep.subr.bf16.mxu0 0
        %949 = vmatpush1.bf16.msra.mxu0 %v910
        %950 = vmatprep.subr.bf16.mxu0 0
        %951 = vmatpush1.bf16.msra.mxu0 %v911
        %952 = vmatprep.subr.bf16.mxu0 0
        %953 = vmatpush1.bf16.msra.mxu0 %v912
        %954 = vmatprep.subr.bf16.mxu0 0
        %955 = vmatpush1.bf16.msra.mxu0 %v913
        %956 = vmatprep.subr.bf16.mxu0 0
        %957 = vmatpush1.bf16.msra.mxu0 %v914
        %958 = vmatprep.subr.bf16.mxu0 0
        %959 = vmatpush1.bf16.msra.mxu0 %v915
        %960 = vmatprep.subr.bf16.mxu0 0
        %961 = vmatpush1.bf16.msra.mxu0 %v916
        %962 = vmatprep.subr.bf16.mxu0 0
        %963 = vmatpush1.bf16.msra.mxu0 %v917
        %964 = vmatprep.subr.bf16.mxu0 0
        %965 = vmatpush1.bf16.msra.mxu0 %v918
        %966 = vmatprep.subr.bf16.mxu0 0
        %967 = vmatpush1.bf16.msra.mxu0 %v919
        %968 = vmatprep.mubr.bf16.mxu0 %v837
        %969 = vmatmul.mubr.bf16.gmra.mrb[0].mxu0 %v830
        %v970 = vpop.f32.mrb[0].mxu0
        %v971 = vadd.f32 0.0, %v970
        %v972 = vpop.f32.mrb[0].mxu0
        %v973 = vpop.f32.mrb[0].mxu0
        %v974 = vpop.f32.mrb[0].mxu0
        %975 = vdwg.mxu0
        %v976 = vadd.f32 %v782, %v971
        %v977 = vld [vmem:[#allocation2] sm:$0x1e]
        %v978 = vld [vmem:[#allocation2 + $0x8] sm:$0x1e]
        %v979 = vld [vmem:[#allocation2 + $0x10] sm:$0x1e]
        %v980 = vpack.c.bf16 %v977, %v977
        %v981 = vpack.c.bf16 %v978, %v978
        %v982 = vpack.c.bf16 %v979, %v979
        %s983 = scalar_lea.vmem [#allocation5], 384
        %v984 = vld [vmem:[%s983] sm:$0xf]
        %v985 = vld [vmem:[%s983 + $0x4] sm:$0xf]
        %v986 = vld [vmem:[%s983 + $0x8] sm:$0xf]
        %v987 = vld [vmem:[%s983 + $0xc] sm:$0xf]
        %v988 = vld [vmem:[%s983 + $0x10] sm:$0xf]
        %v989 = vld [vmem:[%s983 + $0x14] sm:$0xf]
        %v990 = vld [vmem:[%s983 + $0x18] sm:$0xf]
        %v991 = vld [vmem:[%s983 + $0x1c] sm:$0xf]
        %v992 = vld [vmem:[%s983 + $0x20] sm:$0xf]
        %v993 = vld [vmem:[%s983 + $0x24] sm:$0xf]
        %v994 = vld [vmem:[%s983 + $0x28] sm:$0xf]
        %v995 = vld [vmem:[%s983 + $0x2c] sm:$0xf]
        %v996 = vld [vmem:[%s983 + $0x30] sm:$0xf]
        %v997 = vld [vmem:[%s983 + $0x34] sm:$0xf]
        %v998 = vld [vmem:[%s983 + $0x38] sm:$0xf]
        %v999 = vld [vmem:[%s983 + $0x3c] sm:$0xf]
        %v1000 = vld [vmem:[%s983 + $0x40] sm:$0xf]
        %v1001 = vld [vmem:[%s983 + $0x44] sm:$0xf]
        %v1002 = vld [vmem:[%s983 + $0x48] sm:$0xf]
        %v1003 = vld [vmem:[%s983 + $0x4c] sm:$0xf]
        %v1004 = vld [vmem:[%s983 + $0x50] sm:$0xf]
        %v1005 = vld [vmem:[%s983 + $0x54] sm:$0xf]
        %v1006 = vld [vmem:[%s983 + $0x58] sm:$0xf]
        %v1007 = vld [vmem:[%s983 + $0x5c] sm:$0xf]
        %v1008 = vld [vmem:[%s983 + $0x60] sm:$0xf]
        %v1009 = vld [vmem:[%s983 + $0x64] sm:$0xf]
        %v1010 = vld [vmem:[%s983 + $0x68] sm:$0xf]
        %v1011 = vld [vmem:[%s983 + $0x6c] sm:$0xf]
        %v1012 = vld [vmem:[%s983 + $0x70] sm:$0xf]
        %v1013 = vld [vmem:[%s983 + $0x74] sm:$0xf]
        %v1014 = vld [vmem:[%s983 + $0x78] sm:$0xf]
        %v1015 = vld [vmem:[%s983 + $0x7c] sm:$0xf]
        %v1017 = vshrl.u32 %v980, 16
        %v1019 = vshll.u32 %v980, 16
        %v1021 = vrot.slane %v1019, 1
        %v1022 = vor.u32 %v1017, %v1021
        %v1024 = vshrl.u32 %v981, 16
        %v1026 = vshll.u32 %v981, 16
        %v1028 = vrot.slane %v1026, 1
        %v1029 = vor.u32 %v1024, %v1028
        %v1031 = vshrl.u32 %v982, 16
        %v1033 = vshll.u32 %v982, 16
        %v1035 = vrot.slane %v1033, 1
        %v1036 = vor.u32 %v1031, %v1035
        %1037 = vrot.lane.b32.xlu0 %v1022, 64
        %v1038 = vpop.permute.xlu0 %1037
        %1039 = vrot.lane.b32.xlu0 %v1029, 64
        %v1040 = vpop.permute.xlu0 %1039
        %1041 = vrot.lane.b32.xlu0 %v1036, 64
        %v1042 = vpop.permute.xlu0 %1041
        %v1043 = vsel %vm510, %v1038, %v1040
        %v1044 = vsel %vm510, %v1040, %v1042
        %v1079 = vunpack.c.l.b16 %v984
        %v1080 = vunpack.c.l.b16 %v985
        %v1081 = vunpack.c.l.b16 %v986
        %v1082 = vunpack.c.l.b16 %v987
        %v1083 = vunpack.c.l.b16 %v988
        %v1084 = vunpack.c.l.b16 %v989
        %v1085 = vunpack.c.l.b16 %v990
        %v1086 = vunpack.c.l.b16 %v991
        %v1087 = vunpack.c.l.b16 %v992
        %v1088 = vunpack.c.l.b16 %v993
        %v1089 = vunpack.c.l.b16 %v994
        %v1090 = vunpack.c.l.b16 %v995
        %v1091 = vunpack.c.l.b16 %v996
        %v1092 = vunpack.c.l.b16 %v997
        %v1093 = vunpack.c.l.b16 %v998
        %v1094 = vunpack.c.l.b16 %v999
        %v1095 = vunpack.c.l.b16 %v1000
        %v1096 = vunpack.c.l.b16 %v1001
        %v1097 = vunpack.c.l.b16 %v1002
        %v1098 = vunpack.c.l.b16 %v1003
        %v1099 = vunpack.c.l.b16 %v1004
        %v1100 = vunpack.c.l.b16 %v1005
        %v1101 = vunpack.c.l.b16 %v1006
        %v1102 = vunpack.c.l.b16 %v1007
        %v1103 = vunpack.c.l.b16 %v1008
        %v1104 = vunpack.c.l.b16 %v1009
        %v1105 = vunpack.c.l.b16 %v1010
        %v1106 = vunpack.c.l.b16 %v1011
        %v1107 = vunpack.c.l.b16 %v1012
        %v1108 = vunpack.c.l.b16 %v1013
        %v1109 = vunpack.c.l.b16 %v1014
        %v1110 = vunpack.c.l.b16 %v1015
        %v1111 = vpack.c.b16 %v1080, %v1079
        %v1112 = vpack.c.b16 %v1082, %v1081
        %v1113 = vpack.c.b16 %v1084, %v1083
        %v1114 = vpack.c.b16 %v1086, %v1085
        %v1115 = vpack.c.b16 %v1088, %v1087
        %v1116 = vpack.c.b16 %v1090, %v1089
        %v1117 = vpack.c.b16 %v1092, %v1091
        %v1118 = vpack.c.b16 %v1094, %v1093
        %v1119 = vpack.c.b16 %v1096, %v1095
        %v1120 = vpack.c.b16 %v1098, %v1097
        %v1121 = vpack.c.b16 %v1100, %v1099
        %v1122 = vpack.c.b16 %v1102, %v1101
        %v1123 = vpack.c.b16 %v1104, %v1103
        %v1124 = vpack.c.b16 %v1106, %v1105
        %v1125 = vpack.c.b16 %v1108, %v1107
        %v1126 = vpack.c.b16 %v1110, %v1109
        %1143 = vmatprep.subr.bf16.mxu0 0
        %1144 = vmatpush1.bf16.msra.mxu0 %v1111
        %1145 = vmatprep.subr.bf16.mxu0 0
        %1146 = vmatpush1.bf16.msra.mxu0 %v1112
        %1147 = vmatprep.subr.bf16.mxu0 0
        %1148 = vmatpush1.bf16.msra.mxu0 %v1113
        %1149 = vmatprep.subr.bf16.mxu0 0
        %1150 = vmatpush1.bf16.msra.mxu0 %v1114
        %1151 = vmatprep.subr.bf16.mxu0 0
        %1152 = vmatpush1.bf16.msra.mxu0 %v1115
        %1153 = vmatprep.subr.bf16.mxu0 0
        %1154 = vmatpush1.bf16.msra.mxu0 %v1116
        %1155 = vmatprep.subr.bf16.mxu0 0
        %1156 = vmatpush1.bf16.msra.mxu0 %v1117
        %1157 = vmatprep.subr.bf16.mxu0 0
        %1158 = vmatpush1.bf16.msra.mxu0 %v1118
        %1159 = vmatprep.subr.bf16.mxu0 0
        %1160 = vmatpush1.bf16.msra.mxu0 %v1119
        %1161 = vmatprep.subr.bf16.mxu0 0
        %1162 = vmatpush1.bf16.msra.mxu0 %v1120
        %1163 = vmatprep.subr.bf16.mxu0 0
        %1164 = vmatpush1.bf16.msra.mxu0 %v1121
        %1165 = vmatprep.subr.bf16.mxu0 0
        %1166 = vmatpush1.bf16.msra.mxu0 %v1122
        %1167 = vmatprep.subr.bf16.mxu0 0
        %1168 = vmatpush1.bf16.msra.mxu0 %v1123
        %1169 = vmatprep.subr.bf16.mxu0 0
        %1170 = vmatpush1.bf16.msra.mxu0 %v1124
        %1171 = vmatprep.subr.bf16.mxu0 0
        %1172 = vmatpush1.bf16.msra.mxu0 %v1125
        %1173 = vmatprep.subr.bf16.mxu0 0
        %1174 = vmatpush1.bf16.msra.mxu0 %v1126
        %1175 = vmatprep.mubr.bf16.mxu0 %v1044
        %1176 = vmatmul.mubr.bf16.gmra.mrb[0].mxu0 %v1043
        %v1177 = vpop.f32.mrb[0].mxu0
        %v1178 = vadd.f32 0.0, %v1177
        %v1179 = vpop.f32.mrb[0].mxu0
        %v1180 = vpop.f32.mrb[0].mxu0
        %v1181 = vpop.f32.mrb[0].mxu0
        %1182 = vdwg.mxu0
        %v1183 = vadd.f32 %v976, %v1178
        %v1184 = vld [vmem:[%s2] sm:$0x1]
        %v1186 = vlaneseq
        %v1187 = vshrl.u32 %v1186, 7
        %v1188 = vsub.s32 0, %v1187
        %v1189 = vrot.slane %v1184, %v1188
        %v1191 = vadd.f32 %v1183, %v1189
        %v1192 = vxor.u32 %v1191, 2147483648
        %v1193 = vmul.f32 %v1192, 1.442695
        %v1194 = vpow.pop %v1193
        %v1195 = vadd.f32 %v1194, 1.0
        %v1196 = vrcp.pop %v1195
        %v1197 = vmul.f32 1.0, %v1196
        %v1198 = vmul.f32 %v1191, %v1197
        %v1200 = vrot.slane %v1198, 7
        %1201 = vrot.lane.b32.xlu0 %v1200, 32
        %v1202 = vpop.permute.xlu0 %1201
        %vm1204 = vcmask 1044737
        %1205 = vst.msk [vmem:[#allocation3] sm:$0x1e] %vm1204, %v1202
        %vm1206 = vcmask 258049
        %1207 = vst.msk [vmem:[#allocation3 + $0x8] sm:$0x1e] %vm1206, %v1202
        %v1208 = vld [vmem:[#allocation3] sm:$0xf]
        %v1209 = vpack.c.bf16 %v1208, %v1208
        %v1210 = vld [vmem:[%s3] sm:$0xf]
        %v1211 = vld [vmem:[%s3 + $0x4] sm:$0xf]
        %v1212 = vld [vmem:[%s3 + $0x8] sm:$0xf]
        %v1213 = vld [vmem:[%s3 + $0xc] sm:$0xf]
        %v1214 = vld [vmem:[%s3 + $0x10] sm:$0xf]
        %v1215 = vld [vmem:[%s3 + $0x14] sm:$0xf]
        %v1216 = vld [vmem:[%s3 + $0x18] sm:$0xf]
        %v1217 = vld [vmem:[%s3 + $0x1c] sm:$0xf]
        %v1218 = vld [vmem:[%s3 + $0x20] sm:$0xf]
        %v1219 = vld [vmem:[%s3 + $0x24] sm:$0xf]
        %v1220 = vld [vmem:[%s3 + $0x28] sm:$0xf]
        %v1221 = vld [vmem:[%s3 + $0x2c] sm:$0xf]
        %v1222 = vld [vmem:[%s3 + $0x30] sm:$0xf]
        %v1223 = vld [vmem:[%s3 + $0x34] sm:$0xf]
        %v1224 = vld [vmem:[%s3 + $0x38] sm:$0xf]
        %v1225 = vld [vmem:[%s3 + $0x3c] sm:$0xf]
        %v1226 = vld [vmem:[#allocation3 + $0x8] sm:$0xf]
        %v1227 = vpack.c.bf16 %v1226, %v1226
        %s1228 = scalar_lea.vmem %s3, 64
        %v1229 = vld [vmem:[%s1228] sm:$0xf]
        %v1230 = vld [vmem:[%s1228 + $0x4] sm:$0xf]
        %v1231 = vld [vmem:[%s1228 + $0x8] sm:$0xf]
        %v1232 = vld [vmem:[%s1228 + $0xc] sm:$0xf]
        %v1233 = vld [vmem:[%s1228 + $0x10] sm:$0xf]
        %v1234 = vld [vmem:[%s1228 + $0x14] sm:$0xf]
        %v1235 = vld [vmem:[%s1228 + $0x18] sm:$0xf]
        %v1236 = vld [vmem:[%s1228 + $0x1c] sm:$0xf]
        %v1237 = vld [vmem:[%s1228 + $0x20] sm:$0xf]
        %v1238 = vld [vmem:[%s1228 + $0x24] sm:$0xf]
        %v1239 = vld [vmem:[%s1228 + $0x28] sm:$0xf]
        %v1240 = vld [vmem:[%s1228 + $0x2c] sm:$0xf]
        %v1241 = vld [vmem:[%s1228 + $0x30] sm:$0xf]
        %v1242 = vld [vmem:[%s1228 + $0x34] sm:$0xf]
        %v1243 = vld [vmem:[%s1228 + $0x38] sm:$0xf]
        %v1244 = vld [vmem:[%s1228 + $0x3c] sm:$0xf]
        %1247 = vrot.lane.b32.xlu0 %v1209, 96
        %v1248 = vpop.permute.xlu0 %1247
        %1249 = vrot.lane.b32.xlu0 %v1227, 96
        %v1250 = vpop.permute.xlu0 %1249
        %vm1251 = vcmask 785408
        %v1252 = vsel %vm1251, %v1248, %v1250
        %v1270 = vunpack.c.l.b16 %v1229
        %v1271 = vunpack.c.l.b16 %v1230
        %v1272 = vunpack.c.l.b16 %v1231
        %v1273 = vunpack.c.l.b16 %v1232
        %v1274 = vunpack.c.l.b16 %v1233
        %v1275 = vunpack.c.l.b16 %v1234
        %v1276 = vunpack.c.l.b16 %v1235
        %v1277 = vunpack.c.l.b16 %v1236
        %v1278 = vunpack.c.l.b16 %v1237
        %v1279 = vunpack.c.l.b16 %v1238
        %v1280 = vunpack.c.l.b16 %v1239
        %v1281 = vunpack.c.l.b16 %v1240
        %v1282 = vunpack.c.l.b16 %v1241
        %v1283 = vunpack.c.l.b16 %v1242
        %v1284 = vunpack.c.l.b16 %v1243
        %v1285 = vunpack.c.l.b16 %v1244
        %v1286 = vpack.c.b16 %v1271, %v1270
        %v1287 = vpack.c.b16 %v1273, %v1272
        %v1288 = vpack.c.b16 %v1275, %v1274
        %v1289 = vpack.c.b16 %v1277, %v1276
        %v1290 = vpack.c.b16 %v1279, %v1278
        %v1291 = vpack.c.b16 %v1281, %v1280
        %v1292 = vpack.c.b16 %v1283, %v1282
        %v1293 = vpack.c.b16 %v1285, %v1284
        %1302 = vmatprep.subr.bf16.mxu0 0
        %1303 = vmatpush1.bf16.msra.mxu0 %v1286
        %1304 = vmatprep.subr.bf16.mxu0 0
        %1305 = vmatpush1.bf16.msra.mxu0 %v1287
        %1306 = vmatprep.subr.bf16.mxu0 0
        %1307 = vmatpush1.bf16.msra.mxu0 %v1288
        %1308 = vmatprep.subr.bf16.mxu0 0
        %1309 = vmatpush1.bf16.msra.mxu0 %v1289
        %1310 = vmatprep.subr.bf16.mxu0 0
        %1311 = vmatpush1.bf16.msra.mxu0 %v1290
        %1312 = vmatprep.subr.bf16.mxu0 0
        %1313 = vmatpush1.bf16.msra.mxu0 %v1291
        %1314 = vmatprep.subr.bf16.mxu0 0
        %1315 = vmatpush1.bf16.msra.mxu0 %v1292
        %1316 = vmatprep.subr.bf16.mxu0 0
        %1317 = vmatpush1.bf16.msra.mxu0 %v1293
        %1318 = vmatprep.subr.bf16.mxu0 0
        %1319 = vmatpush1.bf16.msra.mxu0 0
        %1320 = vmatprep.subr.bf16.mxu0 0
        %1321 = vmatpush1.bf16.msra.mxu0 0
        %1322 = vmatprep.subr.bf16.mxu0 0
        %1323 = vmatpush1.bf16.msra.mxu0 0
        %1324 = vmatprep.subr.bf16.mxu0 0
        %1325 = vmatpush1.bf16.msra.mxu0 0
        %1326 = vmatprep.subr.bf16.mxu0 0
        %1327 = vmatpush1.bf16.msra.mxu0 0
        %1328 = vmatprep.subr.bf16.mxu0 0
        %1329 = vmatpush1.bf16.msra.mxu0 0
        %1330 = vmatprep.subr.bf16.mxu0 0
        %1331 = vmatpush1.bf16.msra.mxu0 0
        %1332 = vmatprep.subr.bf16.mxu0 0
        %1333 = vmatpush1.bf16.msra.mxu0 0
        %1334 = vmatprep.mubr.bf16.mxu0 0
        %1335 = vmatmul.mubr.bf16.gmra.mrb[0].mxu0 %v1252
        %v1336 = vpop.f32.mrb[0].mxu0
        %v1337 = vadd.f32 0.0, %v1336
        %v1338 = vpop.f32.mrb[0].mxu0
        %v1339 = vpop.f32.mrb[0].mxu0
        %v1340 = vpop.f32.mrb[0].mxu0
        %1341 = vdwg.mxu0
        %v1358 = vunpack.c.l.b16 %v1210
        %v1359 = vunpack.c.l.b16 %v1211
        %v1360 = vunpack.c.l.b16 %v1212
        %v1361 = vunpack.c.l.b16 %v1213
        %v1362 = vunpack.c.l.b16 %v1214
        %v1363 = vunpack.c.l.b16 %v1215
        %v1364 = vunpack.c.l.b16 %v1216
        %v1365 = vunpack.c.l.b16 %v1217
        %v1366 = vunpack.c.l.b16 %v1218
        %v1367 = vunpack.c.l.b16 %v1219
        %v1368 = vunpack.c.l.b16 %v1220
        %v1369 = vunpack.c.l.b16 %v1221
        %v1370 = vunpack.c.l.b16 %v1222
        %v1371 = vunpack.c.l.b16 %v1223
        %v1372 = vunpack.c.l.b16 %v1224
        %v1373 = vunpack.c.l.b16 %v1225
        %v1374 = vpack.c.b16 %v1359, %v1358
        %v1375 = vpack.c.b16 %v1361, %v1360
        %v1376 = vpack.c.b16 %v1363, %v1362
        %v1377 = vpack.c.b16 %v1365, %v1364
        %v1378 = vpack.c.b16 %v1367, %v1366
        %v1379 = vpack.c.b16 %v1369, %v1368
        %v1380 = vpack.c.b16 %v1371, %v1370
        %v1381 = vpack.c.b16 %v1373, %v1372
        %1390 = vmatprep.subr.bf16.mxu0 0
        %1391 = vmatpush1.bf16.msra.mxu0 %v1374
        %1392 = vmatprep.subr.bf16.mxu0 0
        %1393 = vmatpush1.bf16.msra.mxu0 %v1375
        %1394 = vmatprep.subr.bf16.mxu0 0
        %1395 = vmatpush1.bf16.msra.mxu0 %v1376
        %1396 = vmatprep.subr.bf16.mxu0 0
        %1397 = vmatpush1.bf16.msra.mxu0 %v1377
        %1398 = vmatprep.subr.bf16.mxu0 0
        %1399 = vmatpush1.bf16.msra.mxu0 %v1378
        %1400 = vmatprep.subr.bf16.mxu0 0
        %1401 = vmatpush1.bf16.msra.mxu0 %v1379
        %1402 = vmatprep.subr.bf16.mxu0 0
        %1403 = vmatpush1.bf16.msra.mxu0 %v1380
        %1404 = vmatprep.subr.bf16.mxu0 0
        %1405 = vmatpush1.bf16.msra.mxu0 %v1381
        %1406 = vmatprep.subr.bf16.mxu0 0
        %1407 = vmatpush1.bf16.msra.mxu0 0
        %1408 = vmatprep.subr.bf16.mxu0 0
        %1409 = vmatpush1.bf16.msra.mxu0 0
        %1410 = vmatprep.subr.bf16.mxu0 0
        %1411 = vmatpush1.bf16.msra.mxu0 0
        %1412 = vmatprep.subr.bf16.mxu0 0
        %1413 = vmatpush1.bf16.msra.mxu0 0
        %1414 = vmatprep.subr.bf16.mxu0 0
        %1415 = vmatpush1.bf16.msra.mxu0 0
        %1416 = vmatprep.subr.bf16.mxu0 0
        %1417 = vmatpush1.bf16.msra.mxu0 0
        %1418 = vmatprep.subr.bf16.mxu0 0
        %1419 = vmatpush1.bf16.msra.mxu0 0
        %1420 = vmatprep.subr.bf16.mxu0 0
        %1421 = vmatpush1.bf16.msra.mxu0 0
        %1422 = vmatprep.mubr.bf16.mxu0 0
        %1423 = vmatmul.mubr.bf16.gmra.mrb[0].mxu0 %v1209
        %v1424 = vpop.f32.mrb[0].mxu0
        %v1425 = vadd.f32 %v1337, %v1424
        %v1426 = vpop.f32.mrb[0].mxu0
        %v1427 = vpop.f32.mrb[0].mxu0
        %v1428 = vpop.f32.mrb[0].mxu0
        %1429 = vdwg.mxu0
        %v1430 = vld [vmem:[#allocation3] sm:$0x1e]
        %v1431 = vpack.c.bf16 %v1430, %v1430
        %s1432 = scalar_lea.vmem %s3, 128
        %v1433 = vld [vmem:[%s1432] sm:$0xf]
        %v1434 = vld [vmem:[%s1432 + $0x4] sm:$0xf]
        %v1435 = vld [vmem:[%s1432 + $0x8] sm:$0xf]
        %v1436 = vld [vmem:[%s1432 + $0xc] sm:$0xf]
        %v1437 = vld [vmem:[%s1432 + $0x10] sm:$0xf]
        %v1438 = vld [vmem:[%s1432 + $0x14] sm:$0xf]
        %v1439 = vld [vmem:[%s1432 + $0x18] sm:$0xf]
        %v1440 = vld [vmem:[%s1432 + $0x1c] sm:$0xf]
        %v1441 = vld [vmem:[%s1432 + $0x20] sm:$0xf]
        %v1442 = vld [vmem:[%s1432 + $0x24] sm:$0xf]
        %v1443 = vld [vmem:[%s1432 + $0x28] sm:$0xf]
        %v1444 = vld [vmem:[%s1432 + $0x2c] sm:$0xf]
        %v1445 = vld [vmem:[%s1432 + $0x30] sm:$0xf]
        %v1446 = vld [vmem:[%s1432 + $0x34] sm:$0xf]
        %v1447 = vld [vmem:[%s1432 + $0x38] sm:$0xf]
        %v1448 = vld [vmem:[%s1432 + $0x3c] sm:$0xf]
        %v1450 = vshrl.u32 %v1431, 16
        %v1452 = vshll.u32 %v1431, 16
        %v1454 = vrot.slane %v1452, 1
        %v1455 = vor.u32 %v1450, %v1454
        %v1473 = vunpack.c.l.b16 %v1433
        %v1474 = vunpack.c.l.b16 %v1434
        %v1475 = vunpack.c.l.b16 %v1435
        %v1476 = vunpack.c.l.b16 %v1436
        %v1477 = vunpack.c.l.b16 %v1437
        %v1478 = vunpack.c.l.b16 %v1438
        %v1479 = vunpack.c.l.b16 %v1439
        %v1480 = vunpack.c.l.b16 %v1440
        %v1481 = vunpack.c.l.b16 %v1441
        %v1482 = vunpack.c.l.b16 %v1442
        %v1483 = vunpack.c.l.b16 %v1443
        %v1484 = vunpack.c.l.b16 %v1444
        %v1485 = vunpack.c.l.b16 %v1445
        %v1486 = vunpack.c.l.b16 %v1446
        %v1487 = vunpack.c.l.b16 %v1447
        %v1488 = vunpack.c.l.b16 %v1448
        %v1489 = vpack.c.b16 %v1474, %v1473
        %v1490 = vpack.c.b16 %v1476, %v1475
        %v1491 = vpack.c.b16 %v1478, %v1477
        %v1492 = vpack.c.b16 %v1480, %v1479
        %v1493 = vpack.c.b16 %v1482, %v1481
        %v1494 = vpack.c.b16 %v1484, %v1483
        %v1495 = vpack.c.b16 %v1486, %v1485
        %v1496 = vpack.c.b16 %v1488, %v1487
        %1505 = vmatprep.subr.bf16.mxu0 0
        %1506 = vmatpush1.bf16.msra.mxu0 %v1489
        %1507 = vmatprep.subr.bf16.mxu0 0
        %1508 = vmatpush1.bf16.msra.mxu0 %v1490
        %1509 = vmatprep.subr.bf16.mxu0 0
        %1510 = vmatpush1.bf16.msra.mxu0 %v1491
        %1511 = vmatprep.subr.bf16.mxu0 0
        %1512 = vmatpush1.bf16.msra.mxu0 %v1492
        %1513 = vmatprep.subr.bf16.mxu0 0
        %1514 = vmatpush1.bf16.msra.mxu0 %v1493
        %1515 = vmatprep.subr.bf16.mxu0 0
        %1516 = vmatpush1.bf16.msra.mxu0 %v1494
        %1517 = vmatprep.subr.bf16.mxu0 0
        %1518 = vmatpush1.bf16.msra.mxu0 %v1495
        %1519 = vmatprep.subr.bf16.mxu0 0
        %1520 = vmatpush1.bf16.msra.mxu0 %v1496
        %1521 = vmatprep.subr.bf16.mxu0 0
        %1522 = vmatpush1.bf16.msra.mxu0 0
        %1523 = vmatprep.subr.bf16.mxu0 0
        %1524 = vmatpush1.bf16.msra.mxu0 0
        %1525 = vmatprep.subr.bf16.mxu0 0
        %1526 = vmatpush1.bf16.msra.mxu0 0
        %1527 = vmatprep.subr.bf16.mxu0 0
        %1528 = vmatpush1.bf16.msra.mxu0 0
        %1529 = vmatprep.subr.bf16.mxu0 0
        %1530 = vmatpush1.bf16.msra.mxu0 0
        %1531 = vmatprep.subr.bf16.mxu0 0
        %1532 = vmatpush1.bf16.msra.mxu0 0
        %1533 = vmatprep.subr.bf16.mxu0 0
        %1534 = vmatpush1.bf16.msra.mxu0 0
        %1535 = vmatprep.subr.bf16.mxu0 0
        %1536 = vmatpush1.bf16.msra.mxu0 0
        %1537 = vmatprep.mubr.bf16.mxu0 0
        %1538 = vmatmul.mubr.bf16.gmra.mrb[0].mxu0 %v1455
        %v1539 = vpop.f32.mrb[0].mxu0
        %v1540 = vadd.f32 0.0, %v1539
        %v1541 = vpop.f32.mrb[0].mxu0
        %v1542 = vpop.f32.mrb[0].mxu0
        %v1543 = vpop.f32.mrb[0].mxu0
        %1544 = vdwg.mxu0
        %v1545 = vadd.f32 %v1425, %v1540
        %v1546 = vld [vmem:[#allocation3] sm:$0x1e]
        %v1547 = vld [vmem:[#allocation3 + $0x8] sm:$0x1e]
        %v1548 = vpack.c.bf16 %v1546, %v1546
        %v1549 = vpack.c.bf16 %v1547, %v1547
        %s1550 = scalar_lea.vmem %s3, 192
        %v1551 = vld [vmem:[%s1550] sm:$0xf]
        %v1552 = vld [vmem:[%s1550 + $0x4] sm:$0xf]
        %v1553 = vld [vmem:[%s1550 + $0x8] sm:$0xf]
        %v1554 = vld [vmem:[%s1550 + $0xc] sm:$0xf]
        %v1555 = vld [vmem:[%s1550 + $0x10] sm:$0xf]
        %v1556 = vld [vmem:[%s1550 + $0x14] sm:$0xf]
        %v1557 = vld [vmem:[%s1550 + $0x18] sm:$0xf]
        %v1558 = vld [vmem:[%s1550 + $0x1c] sm:$0xf]
        %v1559 = vld [vmem:[%s1550 + $0x20] sm:$0xf]
        %v1560 = vld [vmem:[%s1550 + $0x24] sm:$0xf]
        %v1561 = vld [vmem:[%s1550 + $0x28] sm:$0xf]
        %v1562 = vld [vmem:[%s1550 + $0x2c] sm:$0xf]
        %v1563 = vld [vmem:[%s1550 + $0x30] sm:$0xf]
        %v1564 = vld [vmem:[%s1550 + $0x34] sm:$0xf]
        %v1565 = vld [vmem:[%s1550 + $0x38] sm:$0xf]
        %v1566 = vld [vmem:[%s1550 + $0x3c] sm:$0xf]
        %v1568 = vshrl.u32 %v1548, 16
        %v1570 = vshll.u32 %v1548, 16
        %v1572 = vrot.slane %v1570, 1
        %v1573 = vor.u32 %v1568, %v1572
        %v1575 = vshrl.u32 %v1549, 16
        %v1577 = vshll.u32 %v1549, 16
        %v1579 = vrot.slane %v1577, 1
        %v1580 = vor.u32 %v1575, %v1579
        %1581 = vrot.lane.b32.xlu0 %v1573, 96
        %v1582 = vpop.permute.xlu0 %1581
        %1583 = vrot.lane.b32.xlu0 %v1580, 96
        %v1584 = vpop.permute.xlu0 %1583
        %v1585 = vsel %vm1251, %v1582, %v1584
        %v1603 = vunpack.c.l.b16 %v1551
        %v1604 = vunpack.c.l.b16 %v1552
        %v1605 = vunpack.c.l.b16 %v1553
        %v1606 = vunpack.c.l.b16 %v1554
        %v1607 = vunpack.c.l.b16 %v1555
        %v1608 = vunpack.c.l.b16 %v1556
        %v1609 = vunpack.c.l.b16 %v1557
        %v1610 = vunpack.c.l.b16 %v1558
        %v1611 = vunpack.c.l.b16 %v1559
        %v1612 = vunpack.c.l.b16 %v1560
        %v1613 = vunpack.c.l.b16 %v1561
        %v1614 = vunpack.c.l.b16 %v1562
        %v1615 = vunpack.c.l.b16 %v1563
        %v1616 = vunpack.c.l.b16 %v1564
        %v1617 = vunpack.c.l.b16 %v1565
        %v1618 = vunpack.c.l.b16 %v1566
        %v1619 = vpack.c.b16 %v1604, %v1603
        %v1620 = vpack.c.b16 %v1606, %v1605
        %v1621 = vpack.c.b16 %v1608, %v1607
        %v1622 = vpack.c.b16 %v1610, %v1609
        %v1623 = vpack.c.b16 %v1612, %v1611
        %v1624 = vpack.c.b16 %v1614, %v1613
        %v1625 = vpack.c.b16 %v1616, %v1615
        %v1626 = vpack.c.b16 %v1618, %v1617
        %1635 = vmatprep.subr.bf16.mxu0 0
        %1636 = vmatpush1.bf16.msra.mxu0 %v1619
        %1637 = vmatprep.subr.bf16.mxu0 0
        %1638 = vmatpush1.bf16.msra.mxu0 %v1620
        %1639 = vmatprep.subr.bf16.mxu0 0
        %1640 = vmatpush1.bf16.msra.mxu0 %v1621
        %1641 = vmatprep.subr.bf16.mxu0 0
        %1642 = vmatpush1.bf16.msra.mxu0 %v1622
        %1643 = vmatprep.subr.bf16.mxu0 0
        %1644 = vmatpush1.bf16.msra.mxu0 %v1623
        %1645 = vmatprep.subr.bf16.mxu0 0
        %1646 = vmatpush1.bf16.msra.mxu0 %v1624
        %1647 = vmatprep.subr.bf16.mxu0 0
        %1648 = vmatpush1.bf16.msra.mxu0 %v1625
        %1649 = vmatprep.subr.bf16.mxu0 0
        %1650 = vmatpush1.bf16.msra.mxu0 %v1626
        %1651 = vmatprep.subr.bf16.mxu0 0
        %1652 = vmatpush1.bf16.msra.mxu0 0
        %1653 = vmatprep.subr.bf16.mxu0 0
        %1654 = vmatpush1.bf16.msra.mxu0 0
        %1655 = vmatprep.subr.bf16.mxu0 0
        %1656 = vmatpush1.bf16.msra.mxu0 0
        %1657 = vmatprep.subr.bf16.mxu0 0
        %1658 = vmatpush1.bf16.msra.mxu0 0
        %1659 = vmatprep.subr.bf16.mxu0 0
        %1660 = vmatpush1.bf16.msra.mxu0 0
        %1661 = vmatprep.subr.bf16.mxu0 0
        %1662 = vmatpush1.bf16.msra.mxu0 0
        %1663 = vmatprep.subr.bf16.mxu0 0
        %1664 = vmatpush1.bf16.msra.mxu0 0
        %1665 = vmatprep.subr.bf16.mxu0 0
        %1666 = vmatpush1.bf16.msra.mxu0 0
        %1667 = vmatprep.mubr.bf16.mxu0 0
        %1668 = vmatmul.mubr.bf16.gmra.mrb[0].mxu0 %v1585
        %v1669 = vpop.f32.mrb[0].mxu0
        %v1670 = vadd.f32 0.0, %v1669
        %v1671 = vpop.f32.mrb[0].mxu0
        %v1672 = vpop.f32.mrb[0].mxu0
        %v1673 = vpop.f32.mrb[0].mxu0
        %1674 = vdwg.mxu0
        %v1675 = vadd.f32 %v1545, %v1670
        %v1676 = vld [vmem:[%s4] sm:$0x1]
        %v1678 = vlaneseq
        %v1679 = vshrl.u32 %v1678, 7
        %v1680 = vsub.s32 0, %v1679
        %v1681 = vrot.slane %v1676, %v1680
        %v1683 = vadd.f32 %v1675, %v1681
        %v1684 = vxor.u32 %v1683, 2147483648
        %v1685 = vmul.f32 %v1684, 1.442695
        %v1686 = vpow.pop %v1685
        %v1687 = vadd.f32 %v1686, 1.0
        %v1688 = vrcp.pop %v1687
        %v1689 = vmul.f32 1.0, %v1688
        %v1690 = vmul.f32 %v1683, %v1689
        %vm1691 = vcmask 519168
        %1692 = vst.msk [vmem:[%s386] sm:$0xf] %vm1691, %v1690
        %v1694 = vrot.slane %v1690, 7
        %1695 = vrot.lane.b32.xlu0 %v1694, 48
        %v1696 = vpop.permute.xlu0 %1695
        %vm1698 = vcmask 520577
        %1699 = vst.msk [vmem:[#allocation4] sm:$0x1e] %vm1698, %v1696
        %1700 = vrot.lane.b32.xlu0 %v1694, 64
        %v1701 = vpop.permute.xlu0 %1700
        %vm1703 = vcmask 782977
        %1704 = vst.msk [vmem:[#allocation4] sm:$0x1e] %vm1703, %v1701
        %1705 = vrot.lane.b32.xlu0 %v1694, 80
        %v1706 = vpop.permute.xlu0 %1705
        %vm1708 = vcmask 1045377
        %1709 = vst.msk [vmem:[#allocation4] sm:$0x1e] %vm1708, %v1706
        %1710 = vrot.lane.b32.xlu0 %v1694, 96
        %v1711 = vpop.permute.xlu0 %1710
        %vm1713 = vcmask 258177
        %1714 = vst.msk [vmem:[#allocation4 + $0x8] sm:$0x1e] %vm1713, %v1711
        %v1715 = vpack.c.bf16 %v1690, %v1690
        %v1716 = vld [vmem:[%s5] sm:$0xf]
        %v1717 = vld [vmem:[%s5 + $0x4] sm:$0xf]
        %v1718 = vld [vmem:[%s5 + $0x8] sm:$0xf]
        %v1719 = vld [vmem:[%s5 + $0xc] sm:$0xf]
        %v1720 = vld [vmem:[%s5 + $0x10] sm:$0xf]
        %v1721 = vld [vmem:[%s5 + $0x14] sm:$0xf]
        %v1722 = vld [vmem:[%s5 + $0x18] sm:$0xf]
        %v1723 = vld [vmem:[%s5 + $0x1c] sm:$0xf]
        %v1724 = vld [vmem:[%s6] sm:$0x1]
        %v1726 = vlaneseq
        %v1727 = vshrl.u32 %v1726, 7
        %v1728 = vsub.s32 0, %v1727
        %v1729 = vrot.slane %v1724, %v1728
        %v1739 = vunpack.c.l.b16 %v1716
        %v1740 = vunpack.c.l.b16 %v1717
        %v1741 = vunpack.c.l.b16 %v1718
        %v1742 = vunpack.c.l.b16 %v1719
        %v1743 = vunpack.c.l.b16 %v1720
        %v1744 = vunpack.c.l.b16 %v1721
        %v1745 = vunpack.c.l.b16 %v1722
        %v1746 = vunpack.c.l.b16 %v1723
        %v1747 = vpack.c.b16 %v1740, %v1739
        %v1748 = vpack.c.b16 %v1742, %v1741
        %v1749 = vpack.c.b16 %v1744, %v1743
        %v1750 = vpack.c.b16 %v1746, %v1745
        %v1756 = vsel %vm420, %v1715, 0
        %1758 = vmatprep.subr.bf16.mxu0 0
        %1759 = vmatpush1.bf16.msra.mxu0 %v1747
        %1760 = vmatprep.subr.bf16.mxu0 0
        %1761 = vmatpush1.bf16.msra.mxu0 %v1748
        %1762 = vmatprep.subr.bf16.mxu0 0
        %1763 = vmatpush1.bf16.msra.mxu0 %v1749
        %1764 = vmatprep.subr.bf16.mxu0 0
        %1765 = vmatpush1.bf16.msra.mxu0 %v1750
        %1766 = vmatprep.subr.bf16.mxu0 0
        %1767 = vmatpush1.bf16.msra.mxu0 0
        %1768 = vmatprep.subr.bf16.mxu0 0
        %1769 = vmatpush1.bf16.msra.mxu0 0
        %1770 = vmatprep.subr.bf16.mxu0 0
        %1771 = vmatpush1.bf16.msra.mxu0 0
        %1772 = vmatprep.subr.bf16.mxu0 0
        %1773 = vmatpush1.bf16.msra.mxu0 0
        %1774 = vmatprep.subr.bf16.mxu0 0
        %1775 = vmatpush1.bf16.msra.mxu0 0
        %1776 = vmatprep.subr.bf16.mxu0 0
        %1777 = vmatpush1.bf16.msra.mxu0 0
        %1778 = vmatprep.subr.bf16.mxu0 0
        %1779 = vmatpush1.bf16.msra.mxu0 0
        %1780 = vmatprep.subr.bf16.mxu0 0
        %1781 = vmatpush1.bf16.msra.mxu0 0
        %1782 = vmatprep.subr.bf16.mxu0 0
        %1783 = vmatpush1.bf16.msra.mxu0 0
        %1784 = vmatprep.subr.bf16.mxu0 0
        %1785 = vmatpush1.bf16.msra.mxu0 0
        %1786 = vmatprep.subr.bf16.mxu0 0
        %1787 = vmatpush1.bf16.msra.mxu0 0
        %1788 = vmatprep.subr.bf16.mxu0 0
        %1789 = vmatpush1.bf16.msra.mxu0 0
        %1790 = vmatprep.mubr.bf16.mxu0 0
        %1791 = vmatmul.mubr.bf16.gmra.mrb[0].mxu0 %v1756
        %v1792 = vpop.f32.mrb[0].mxu0
        %v1793 = vadd.f32 %v1729, %v1792
        %v1794 = vpop.f32.mrb[0].mxu0
        %v1795 = vpop.f32.mrb[0].mxu0
        %v1796 = vpop.f32.mrb[0].mxu0
        %1797 = vdwg.mxu0
        %v1798 = vxor.u32 %v1793, 2147483648
        %v1799 = vmul.f32 %v1798, 1.442695
        %v1800 = vpow.pop %v1799
        %v1801 = vadd.f32 %v1800, 1.0
        %v1802 = vrcp.pop %v1801
        %v1803 = vmul.f32 1.0, %v1802
        %v1804 = vmul.f32 %v1793, %v1803
        %v1806 = vrot.slane %v1804, 7
        %1807 = vrot.lane.b32.xlu0 %v1806, 32
        %v1808 = vpop.permute.xlu0 %1807
        %vm1810 = vcmask 389377
        %1811 = vst.msk [vmem:[#allocation4] sm:$0x1e] %vm1810, %v1808
        %1812 = vrot.lane.b32.xlu0 %v1806, 48
        %v1813 = vpop.permute.xlu0 %1812
        %vm1815 = vcmask 651777
        %1816 = vst.msk [vmem:[#allocation4] sm:$0x1e] %vm1815, %v1813
        %1817 = vrot.lane.b32.xlu0 %v1806, 64
        %v1818 = vpop.permute.xlu0 %1817
        %vm1820 = vcmask 914177
        %1821 = vst.msk [vmem:[#allocation4] sm:$0x1e] %vm1820, %v1818
        %1822 = vrot.lane.b32.xlu0 %v1806, 80
        %v1823 = vpop.permute.xlu0 %1822
        %vm1825 = vcmask 126977
        %1826 = vst.msk [vmem:[#allocation4 + $0x8] sm:$0x1e] %vm1825, %v1823
        %v1827 = vld [vmem:[#allocation4] sm:$0xf]
        %v1828 = vpack.c.bf16 %v1827, %v1827
        %v1829 = vld [vmem:[#allocation8] sm:$0xf]
        %v1830 = vld [vmem:[#allocation8 + $0x4] sm:$0xf]
        %v1831 = vld [vmem:[#allocation8 + $0x8] sm:$0xf]
        %v1832 = vld [vmem:[#allocation8 + $0xc] sm:$0xf]
        %v1833 = vld [vmem:[#allocation8 + $0x10] sm:$0xf]
        %v1834 = vld [vmem:[#allocation8 + $0x14] sm:$0xf]
        %v1835 = vld [vmem:[#allocation8 + $0x18] sm:$0xf]
        %v1836 = vld [vmem:[#allocation8 + $0x1c] sm:$0xf]
        %v1837 = vld [vmem:[#allocation8 + $0x20] sm:$0xf]
        %v1838 = vld [vmem:[#allocation8 + $0x24] sm:$0xf]
        %v1839 = vld [vmem:[#allocation8 + $0x28] sm:$0xf]
        %v1840 = vld [vmem:[#allocation8 + $0x2c] sm:$0xf]
        %v1841 = vld [vmem:[#allocation8 + $0x30] sm:$0xf]
        %v1842 = vld [vmem:[#allocation8 + $0x34] sm:$0xf]
        %v1843 = vld [vmem:[#allocation8 + $0x38] sm:$0xf]
        %v1844 = vld [vmem:[#allocation8 + $0x3c] sm:$0xf]
        %v1845 = vld [vmem:[#allocation4 + $0x8] sm:$0xf]
        %v1846 = vpack.c.bf16 %v1845, %v1845
        %s1847 = scalar_lea.vmem [#allocation8], 64
        %v1848 = vld [vmem:[%s1847] sm:$0xf]
        %v1849 = vld [vmem:[%s1847 + $0x4] sm:$0xf]
        %v1850 = vld [vmem:[%s1847 + $0x8] sm:$0xf]
        %v1851 = vld [vmem:[%s1847 + $0xc] sm:$0xf]
        %v1852 = vld [vmem:[%s1847 + $0x10] sm:$0xf]
        %v1853 = vld [vmem:[%s1847 + $0x14] sm:$0xf]
        %v1854 = vld [vmem:[%s1847 + $0x18] sm:$0xf]
        %v1855 = vld [vmem:[%s1847 + $0x1c] sm:$0xf]
        %v1856 = vld [vmem:[%s1847 + $0x20] sm:$0xf]
        %v1857 = vld [vmem:[%s1847 + $0x24] sm:$0xf]
        %v1858 = vld [vmem:[%s1847 + $0x28] sm:$0xf]
        %v1859 = vld [vmem:[%s1847 + $0x2c] sm:$0xf]
        %v1860 = vld [vmem:[%s1847 + $0x30] sm:$0xf]
        %v1861 = vld [vmem:[%s1847 + $0x34] sm:$0xf]
        %v1862 = vld [vmem:[%s1847 + $0x38] sm:$0xf]
        %v1863 = vld [vmem:[%s1847 + $0x3c] sm:$0xf]
        %1866 = vrot.lane.b32.xlu0 %v1828, 96
        %v1867 = vpop.permute.xlu0 %1866
        %1868 = vrot.lane.b32.xlu0 %v1846, 96
        %v1869 = vpop.permute.xlu0 %1868
        %v1870 = vsel %vm1251, %v1867, %v1869
        %v1888 = vunpack.c.l.b16 %v1848
        %v1889 = vunpack.c.l.b16 %v1849
        %v1890 = vunpack.c.l.b16 %v1850
        %v1891 = vunpack.c.l.b16 %v1851
        %v1892 = vunpack.c.l.b16 %v1852
        %v1893 = vunpack.c.l.b16 %v1853
        %v1894 = vunpack.c.l.b16 %v1854
        %v1895 = vunpack.c.l.b16 %v1855
        %v1896 = vunpack.c.l.b16 %v1856
        %v1897 = vunpack.c.l.b16 %v1857
        %v1898 = vunpack.c.l.b16 %v1858
        %v1899 = vunpack.c.l.b16 %v1859
        %v1900 = vunpack.c.l.b16 %v1860
        %v1901 = vunpack.c.l.b16 %v1861
        %v1902 = vunpack.c.l.b16 %v1862
        %v1903 = vunpack.c.l.b16 %v1863
        %v1904 = vpack.c.b16 %v1889, %v1888
        %v1905 = vpack.c.b16 %v1891, %v1890
        %v1906 = vpack.c.b16 %v1893, %v1892
        %v1907 = vpack.c.b16 %v1895, %v1894
        %v1908 = vpack.c.b16 %v1897, %v1896
        %v1909 = vpack.c.b16 %v1899, %v1898
        %v1910 = vpack.c.b16 %v1901, %v1900
        %v1911 = vpack.c.b16 %v1903, %v1902
        %1920 = vmatprep.subr.bf16.mxu0 0
        %1921 = vmatpush1.bf16.msra.mxu0 %v1904
        %1922 = vmatprep.subr.bf16.mxu0 0
        %1923 = vmatpush1.bf16.msra.mxu0 %v1905
        %1924 = vmatprep.subr.bf16.mxu0 0
        %1925 = vmatpush1.bf16.msra.mxu0 %v1906
        %1926 = vmatprep.subr.bf16.mxu0 0
        %1927 = vmatpush1.bf16.msra.mxu0 %v1907
        %1928 = vmatprep.subr.bf16.mxu0 0
        %1929 = vmatpush1.bf16.msra.mxu0 %v1908
        %1930 = vmatprep.subr.bf16.mxu0 0
        %1931 = vmatpush1.bf16.msra.mxu0 %v1909
        %1932 = vmatprep.subr.bf16.mxu0 0
        %1933 = vmatpush1.bf16.msra.mxu0 %v1910
        %1934 = vmatprep.subr.bf16.mxu0 0
        %1935 = vmatpush1.bf16.msra.mxu0 %v1911
        %1936 = vmatprep.subr.bf16.mxu0 0
        %1937 = vmatpush1.bf16.msra.mxu0 0
        %1938 = vmatprep.subr.bf16.mxu0 0
        %1939 = vmatpush1.bf16.msra.mxu0 0
        %1940 = vmatprep.subr.bf16.mxu0 0
        %1941 = vmatpush1.bf16.msra.mxu0 0
        %1942 = vmatprep.subr.bf16.mxu0 0
        %1943 = vmatpush1.bf16.msra.mxu0 0
        %1944 = vmatprep.subr.bf16.mxu0 0
        %1945 = vmatpush1.bf16.msra.mxu0 0
        %1946 = vmatprep.subr.bf16.mxu0 0
        %1947 = vmatpush1.bf16.msra.mxu0 0
        %1948 = vmatprep.subr.bf16.mxu0 0
        %1949 = vmatpush1.bf16.msra.mxu0 0
        %1950 = vmatprep.subr.bf16.mxu0 0
        %1951 = vmatpush1.bf16.msra.mxu0 0
        %1952 = vmatprep.mubr.bf16.mxu0 0
        %1953 = vmatmul.mubr.bf16.gmra.mrb[0].mxu0 %v1870
        %v1954 = vpop.f32.mrb[0].mxu0
        %v1955 = vadd.f32 0.0, %v1954
        %v1956 = vpop.f32.mrb[0].mxu0
        %v1957 = vpop.f32.mrb[0].mxu0
        %v1958 = vpop.f32.mrb[0].mxu0
        %1959 = vdwg.mxu0
        %v1976 = vunpack.c.l.b16 %v1829
        %v1977 = vunpack.c.l.b16 %v1830
        %v1978 = vunpack.c.l.b16 %v1831
        %v1979 = vunpack.c.l.b16 %v1832
        %v1980 = vunpack.c.l.b16 %v1833
        %v1981 = vunpack.c.l.b16 %v1834
        %v1982 = vunpack.c.l.b16 %v1835
        %v1983 = vunpack.c.l.b16 %v1836
        %v1984 = vunpack.c.l.b16 %v1837
        %v1985 = vunpack.c.l.b16 %v1838
        %v1986 = vunpack.c.l.b16 %v1839
        %v1987 = vunpack.c.l.b16 %v1840
        %v1988 = vunpack.c.l.b16 %v1841
        %v1989 = vunpack.c.l.b16 %v1842
        %v1990 = vunpack.c.l.b16 %v1843
        %v1991 = vunpack.c.l.b16 %v1844
        %v1992 = vpack.c.b16 %v1977, %v1976
        %v1993 = vpack.c.b16 %v1979, %v1978
        %v1994 = vpack.c.b16 %v1981, %v1980
        %v1995 = vpack.c.b16 %v1983, %v1982
        %v1996 = vpack.c.b16 %v1985, %v1984
        %v1997 = vpack.c.b16 %v1987, %v1986
        %v1998 = vpack.c.b16 %v1989, %v1988
        %v1999 = vpack.c.b16 %v1991, %v1990
        %2008 = vmatprep.subr.bf16.mxu0 0
        %2009 = vmatpush1.bf16.msra.mxu0 %v1992
        %2010 = vmatprep.subr.bf16.mxu0 0
        %2011 = vmatpush1.bf16.msra.mxu0 %v1993
        %2012 = vmatprep.subr.bf16.mxu0 0
        %2013 = vmatpush1.bf16.msra.mxu0 %v1994
        %2014 = vmatprep.subr.bf16.mxu0 0
        %2015 = vmatpush1.bf16.msra.mxu0 %v1995
        %2016 = vmatprep.subr.bf16.mxu0 0
        %2017 = vmatpush1.bf16.msra.mxu0 %v1996
        %2018 = vmatprep.subr.bf16.mxu0 0
        %2019 = vmatpush1.bf16.msra.mxu0 %v1997
        %2020 = vmatprep.subr.bf16.mxu0 0
        %2021 = vmatpush1.bf16.msra.mxu0 %v1998
        %2022 = vmatprep.subr.bf16.mxu0 0
        %2023 = vmatpush1.bf16.msra.mxu0 %v1999
        %2024 = vmatprep.subr.bf16.mxu0 0
        %2025 = vmatpush1.bf16.msra.mxu0 0
        %2026 = vmatprep.subr.bf16.mxu0 0
        %2027 = vmatpush1.bf16.msra.mxu0 0
        %2028 = vmatprep.subr.bf16.mxu0 0
        %2029 = vmatpush1.bf16.msra.mxu0 0
        %2030 = vmatprep.subr.bf16.mxu0 0
        %2031 = vmatpush1.bf16.msra.mxu0 0
        %2032 = vmatprep.subr.bf16.mxu0 0
        %2033 = vmatpush1.bf16.msra.mxu0 0
        %2034 = vmatprep.subr.bf16.mxu0 0
        %2035 = vmatpush1.bf16.msra.mxu0 0
        %2036 = vmatprep.subr.bf16.mxu0 0
        %2037 = vmatpush1.bf16.msra.mxu0 0
        %2038 = vmatprep.subr.bf16.mxu0 0
        %2039 = vmatpush1.bf16.msra.mxu0 0
        %2040 = vmatprep.mubr.bf16.mxu0 0
        %2041 = vmatmul.mubr.bf16.gmra.mrb[0].mxu0 %v1828
        %v2042 = vpop.f32.mrb[0].mxu0
        %v2043 = vadd.f32 %v1955, %v2042
        %v2044 = vpop.f32.mrb[0].mxu0
        %v2045 = vpop.f32.mrb[0].mxu0
        %v2046 = vpop.f32.mrb[0].mxu0
        %2047 = vdwg.mxu0
        %s2048 = scalar_lea.vmem [#allocation8], 128
        %v2049 = vld [vmem:[%s2048] sm:$0xf]
        %v2050 = vld [vmem:[%s2048 + $0x4] sm:$0xf]
        %v2051 = vld [vmem:[%s2048 + $0x8] sm:$0xf]
        %v2052 = vld [vmem:[%s2048 + $0xc] sm:$0xf]
        %v2053 = vld [vmem:[%s2048 + $0x10] sm:$0xf]
        %v2054 = vld [vmem:[%s2048 + $0x14] sm:$0xf]
        %v2055 = vld [vmem:[%s2048 + $0x18] sm:$0xf]
        %v2056 = vld [vmem:[%s2048 + $0x1c] sm:$0xf]
        %v2057 = vld [vmem:[%s2048 + $0x20] sm:$0xf]
        %v2058 = vld [vmem:[%s2048 + $0x24] sm:$0xf]
        %v2059 = vld [vmem:[%s2048 + $0x28] sm:$0xf]
        %v2060 = vld [vmem:[%s2048 + $0x2c] sm:$0xf]
        %v2061 = vld [vmem:[%s2048 + $0x30] sm:$0xf]
        %v2062 = vld [vmem:[%s2048 + $0x34] sm:$0xf]
        %v2063 = vld [vmem:[%s2048 + $0x38] sm:$0xf]
        %v2064 = vld [vmem:[%s2048 + $0x3c] sm:$0xf]
        %2065 = vrot.lane.b32.xlu0 %v1828, 64
        %v2066 = vpop.permute.xlu0 %2065
        %2067 = vrot.lane.b32.xlu0 %v1846, 64
        %v2068 = vpop.permute.xlu0 %2067
        %v2069 = vsel %vm510, %v2066, %v2068
        %v2087 = vunpack.c.l.b16 %v2049
        %v2088 = vunpack.c.l.b16 %v2050
        %v2089 = vunpack.c.l.b16 %v2051
        %v2090 = vunpack.c.l.b16 %v2052
        %v2091 = vunpack.c.l.b16 %v2053
        %v2092 = vunpack.c.l.b16 %v2054
        %v2093 = vunpack.c.l.b16 %v2055
        %v2094 = vunpack.c.l.b16 %v2056
        %v2095 = vunpack.c.l.b16 %v2057
        %v2096 = vunpack.c.l.b16 %v2058
        %v2097 = vunpack.c.l.b16 %v2059
        %v2098 = vunpack.c.l.b16 %v2060
        %v2099 = vunpack.c.l.b16 %v2061
        %v2100 = vunpack.c.l.b16 %v2062
        %v2101 = vunpack.c.l.b16 %v2063
        %v2102 = vunpack.c.l.b16 %v2064
        %v2103 = vpack.c.b16 %v2088, %v2087
        %v2104 = vpack.c.b16 %v2090, %v2089
        %v2105 = vpack.c.b16 %v2092, %v2091
        %v2106 = vpack.c.b16 %v2094, %v2093
        %v2107 = vpack.c.b16 %v2096, %v2095
        %v2108 = vpack.c.b16 %v2098, %v2097
        %v2109 = vpack.c.b16 %v2100, %v2099
        %v2110 = vpack.c.b16 %v2102, %v2101
        %2119 = vmatprep.subr.bf16.mxu0 0
        %2120 = vmatpush1.bf16.msra.mxu0 %v2103
        %2121 = vmatprep.subr.bf16.mxu0 0
        %2122 = vmatpush1.bf16.msra.mxu0 %v2104
        %2123 = vmatprep.subr.bf16.mxu0 0
        %2124 = vmatpush1.bf16.msra.mxu0 %v2105
        %2125 = vmatprep.subr.bf16.mxu0 0
        %2126 = vmatpush1.bf16.msra.mxu0 %v2106
        %2127 = vmatprep.subr.bf16.mxu0 0
        %2128 = vmatpush1.bf16.msra.mxu0 %v2107
        %2129 = vmatprep.subr.bf16.mxu0 0
        %2130 = vmatpush1.bf16.msra.mxu0 %v2108
        %2131 = vmatprep.subr.bf16.mxu0 0
        %2132 = vmatpush1.bf16.msra.mxu0 %v2109
        %2133 = vmatprep.subr.bf16.mxu0 0
        %2134 = vmatpush1.bf16.msra.mxu0 %v2110
        %2135 = vmatprep.subr.bf16.mxu0 0
        %2136 = vmatpush1.bf16.msra.mxu0 0
        %2137 = vmatprep.subr.bf16.mxu0 0
        %2138 = vmatpush1.bf16.msra.mxu0 0
        %2139 = vmatprep.subr.bf16.mxu0 0
        %2140 = vmatpush1.bf16.msra.mxu0 0
        %2141 = vmatprep.subr.bf16.mxu0 0
        %2142 = vmatpush1.bf16.msra.mxu0 0
        %2143 = vmatprep.subr.bf16.mxu0 0
        %2144 = vmatpush1.bf16.msra.mxu0 0
        %2145 = vmatprep.subr.bf16.mxu0 0
        %2146 = vmatpush1.bf16.msra.mxu0 0
        %2147 = vmatprep.subr.bf16.mxu0 0
        %2148 = vmatpush1.bf16.msra.mxu0 0
        %2149 = vmatprep.subr.bf16.mxu0 0
        %2150 = vmatpush1.bf16.msra.mxu0 0
        %2151 = vmatprep.mubr.bf16.mxu0 0
        %2152 = vmatmul.mubr.bf16.gmra.mrb[0].mxu0 %v2069
        %v2153 = vpop.f32.mrb[0].mxu0
        %v2154 = vadd.f32 0.0, %v2153
        %v2155 = vpop.f32.mrb[0].mxu0
        %v2156 = vpop.f32.mrb[0].mxu0
        %v2157 = vpop.f32.mrb[0].mxu0
        %2158 = vdwg.mxu0
        %v2159 = vadd.f32 %v2043, %v2154
        %v2160 = vld [vmem:[#allocation4] sm:$0x1e]
        %v2161 = vpack.c.bf16 %v2160, %v2160
        %s2162 = scalar_lea.vmem [#allocation8], 192
        %v2163 = vld [vmem:[%s2162] sm:$0xf]
        %v2164 = vld [vmem:[%s2162 + $0x4] sm:$0xf]
        %v2165 = vld [vmem:[%s2162 + $0x8] sm:$0xf]
        %v2166 = vld [vmem:[%s2162 + $0xc] sm:$0xf]
        %v2167 = vld [vmem:[%s2162 + $0x10] sm:$0xf]
        %v2168 = vld [vmem:[%s2162 + $0x14] sm:$0xf]
        %v2169 = vld [vmem:[%s2162 + $0x18] sm:$0xf]
        %v2170 = vld [vmem:[%s2162 + $0x1c] sm:$0xf]
        %v2171 = vld [vmem:[%s2162 + $0x20] sm:$0xf]
        %v2172 = vld [vmem:[%s2162 + $0x24] sm:$0xf]
        %v2173 = vld [vmem:[%s2162 + $0x28] sm:$0xf]
        %v2174 = vld [vmem:[%s2162 + $0x2c] sm:$0xf]
        %v2175 = vld [vmem:[%s2162 + $0x30] sm:$0xf]
        %v2176 = vld [vmem:[%s2162 + $0x34] sm:$0xf]
        %v2177 = vld [vmem:[%s2162 + $0x38] sm:$0xf]
        %v2178 = vld [vmem:[%s2162 + $0x3c] sm:$0xf]
        %v2180 = vshrl.u32 %v2161, 16
        %v2182 = vshll.u32 %v2161, 16
        %v2184 = vrot.slane %v2182, 1
        %v2185 = vor.u32 %v2180, %v2184
        %v2203 = vunpack.c.l.b16 %v2163
        %v2204 = vunpack.c.l.b16 %v2164
        %v2205 = vunpack.c.l.b16 %v2165
        %v2206 = vunpack.c.l.b16 %v2166
        %v2207 = vunpack.c.l.b16 %v2167
        %v2208 = vunpack.c.l.b16 %v2168
        %v2209 = vunpack.c.l.b16 %v2169
        %v2210 = vunpack.c.l.b16 %v2170
        %v2211 = vunpack.c.l.b16 %v2171
        %v2212 = vunpack.c.l.b16 %v2172
        %v2213 = vunpack.c.l.b16 %v2173
        %v2214 = vunpack.c.l.b16 %v2174
        %v2215 = vunpack.c.l.b16 %v2175
        %v2216 = vunpack.c.l.b16 %v2176
        %v2217 = vunpack.c.l.b16 %v2177
        %v2218 = vunpack.c.l.b16 %v2178
        %v2219 = vpack.c.b16 %v2204, %v2203
        %v2220 = vpack.c.b16 %v2206, %v2205
        %v2221 = vpack.c.b16 %v2208, %v2207
        %v2222 = vpack.c.b16 %v2210, %v2209
        %v2223 = vpack.c.b16 %v2212, %v2211
        %v2224 = vpack.c.b16 %v2214, %v2213
        %v2225 = vpack.c.b16 %v2216, %v2215
        %v2226 = vpack.c.b16 %v2218, %v2217
        %2235 = vmatprep.subr.bf16.mxu0 0
        %2236 = vmatpush1.bf16.msra.mxu0 %v2219
        %2237 = vmatprep.subr.bf16.mxu0 0
        %2238 = vmatpush1.bf16.msra.mxu0 %v2220
        %2239 = vmatprep.subr.bf16.mxu0 0
        %2240 = vmatpush1.bf16.msra.mxu0 %v2221
        %2241 = vmatprep.subr.bf16.mxu0 0
        %2242 = vmatpush1.bf16.msra.mxu0 %v2222
        %2243 = vmatprep.subr.bf16.mxu0 0
        %2244 = vmatpush1.bf16.msra.mxu0 %v2223
        %2245 = vmatprep.subr.bf16.mxu0 0
        %2246 = vmatpush1.bf16.msra.mxu0 %v2224
        %2247 = vmatprep.subr.bf16.mxu0 0
        %2248 = vmatpush1.bf16.msra.mxu0 %v2225
        %2249 = vmatprep.subr.bf16.mxu0 0
        %2250 = vmatpush1.bf16.msra.mxu0 %v2226
        %2251 = vmatprep.subr.bf16.mxu0 0
        %2252 = vmatpush1.bf16.msra.mxu0 0
        %2253 = vmatprep.subr.bf16.mxu0 0
        %2254 = vmatpush1.bf16.msra.mxu0 0
        %2255 = vmatprep.subr.bf16.mxu0 0
        %2256 = vmatpush1.bf16.msra.mxu0 0
        %2257 = vmatprep.subr.bf16.mxu0 0
        %2258 = vmatpush1.bf16.msra.mxu0 0
        %2259 = vmatprep.subr.bf16.mxu0 0
        %2260 = vmatpush1.bf16.msra.mxu0 0
        %2261 = vmatprep.subr.bf16.mxu0 0
        %2262 = vmatpush1.bf16.msra.mxu0 0
        %2263 = vmatprep.subr.bf16.mxu0 0
        %2264 = vmatpush1.bf16.msra.mxu0 0
        %2265 = vmatprep.subr.bf16.mxu0 0
        %2266 = vmatpush1.bf16.msra.mxu0 0
        %2267 = vmatprep.mubr.bf16.mxu0 0
        %2268 = vmatmul.mubr.bf16.gmra.mrb[0].mxu0 %v2185
        %v2269 = vpop.f32.mrb[0].mxu0
        %v2270 = vadd.f32 0.0, %v2269
        %v2271 = vpop.f32.mrb[0].mxu0
        %v2272 = vpop.f32.mrb[0].mxu0
        %v2273 = vpop.f32.mrb[0].mxu0
        %2274 = vdwg.mxu0
        %v2275 = vadd.f32 %v2159, %v2270
        %v2276 = vld [vmem:[#allocation4] sm:$0x1e]
        %v2277 = vld [vmem:[#allocation4 + $0x8] sm:$0x1e]
        %v2278 = vpack.c.bf16 %v2276, %v2276
        %v2279 = vpack.c.bf16 %v2277, %v2277
        %s2280 = scalar_lea.vmem [#allocation8], 256
        %v2281 = vld [vmem:[%s2280] sm:$0xf]
        %v2282 = vld [vmem:[%s2280 + $0x4] sm:$0xf]
        %v2283 = vld [vmem:[%s2280 + $0x8] sm:$0xf]
        %v2284 = vld [vmem:[%s2280 + $0xc] sm:$0xf]
        %v2285 = vld [vmem:[%s2280 + $0x10] sm:$0xf]
        %v2286 = vld [vmem:[%s2280 + $0x14] sm:$0xf]
        %v2287 = vld [vmem:[%s2280 + $0x18] sm:$0xf]
        %v2288 = vld [vmem:[%s2280 + $0x1c] sm:$0xf]
        %v2289 = vld [vmem:[%s2280 + $0x20] sm:$0xf]
        %v2290 = vld [vmem:[%s2280 + $0x24] sm:$0xf]
        %v2291 = vld [vmem:[%s2280 + $0x28] sm:$0xf]
        %v2292 = vld [vmem:[%s2280 + $0x2c] sm:$0xf]
        %v2293 = vld [vmem:[%s2280 + $0x30] sm:$0xf]
        %v2294 = vld [vmem:[%s2280 + $0x34] sm:$0xf]
        %v2295 = vld [vmem:[%s2280 + $0x38] sm:$0xf]
        %v2296 = vld [vmem:[%s2280 + $0x3c] sm:$0xf]
        %v2298 = vshrl.u32 %v2278, 16
        %v2300 = vshll.u32 %v2278, 16
        %v2302 = vrot.slane %v2300, 1
        %v2303 = vor.u32 %v2298, %v2302
        %v2305 = vshrl.u32 %v2279, 16
        %v2307 = vshll.u32 %v2279, 16
        %v2309 = vrot.slane %v2307, 1
        %v2310 = vor.u32 %v2305, %v2309
        %2311 = vrot.lane.b32.xlu0 %v2303, 96
        %v2312 = vpop.permute.xlu0 %2311
        %2313 = vrot.lane.b32.xlu0 %v2310, 96
        %v2314 = vpop.permute.xlu0 %2313
        %v2315 = vsel %vm1251, %v2312, %v2314
        %v2333 = vunpack.c.l.b16 %v2281
        %v2334 = vunpack.c.l.b16 %v2282
        %v2335 = vunpack.c.l.b16 %v2283
        %v2336 = vunpack.c.l.b16 %v2284
        %v2337 = vunpack.c.l.b16 %v2285
        %v2338 = vunpack.c.l.b16 %v2286
        %v2339 = vunpack.c.l.b16 %v2287
        %v2340 = vunpack.c.l.b16 %v2288
        %v2341 = vunpack.c.l.b16 %v2289
        %v2342 = vunpack.c.l.b16 %v2290
        %v2343 = vunpack.c.l.b16 %v2291
        %v2344 = vunpack.c.l.b16 %v2292
        %v2345 = vunpack.c.l.b16 %v2293
        %v2346 = vunpack.c.l.b16 %v2294
        %v2347 = vunpack.c.l.b16 %v2295
        %v2348 = vunpack.c.l.b16 %v2296
        %v2349 = vpack.c.b16 %v2334, %v2333
        %v2350 = vpack.c.b16 %v2336, %v2335
        %v2351 = vpack.c.b16 %v2338, %v2337
        %v2352 = vpack.c.b16 %v2340, %v2339
        %v2353 = vpack.c.b16 %v2342, %v2341
        %v2354 = vpack.c.b16 %v2344, %v2343
        %v2355 = vpack.c.b16 %v2346, %v2345
        %v2356 = vpack.c.b16 %v2348, %v2347
        %2365 = vmatprep.subr.bf16.mxu0 0
        %2366 = vmatpush1.bf16.msra.mxu0 %v2349
        %2367 = vmatprep.subr.bf16.mxu0 0
        %2368 = vmatpush1.bf16.msra.mxu0 %v2350
        %2369 = vmatprep.subr.bf16.mxu0 0
        %2370 = vmatpush1.bf16.msra.mxu0 %v2351
        %2371 = vmatprep.subr.bf16.mxu0 0
        %2372 = vmatpush1.bf16.msra.mxu0 %v2352
        %2373 = vmatprep.subr.bf16.mxu0 0
        %2374 = vmatpush1.bf16.msra.mxu0 %v2353
        %2375 = vmatprep.subr.bf16.mxu0 0
        %2376 = vmatpush1.bf16.msra.mxu0 %v2354
        %2377 = vmatprep.subr.bf16.mxu0 0
        %2378 = vmatpush1.bf16.msra.mxu0 %v2355
        %2379 = vmatprep.subr.bf16.mxu0 0
        %2380 = vmatpush1.bf16.msra.mxu0 %v2356
        %2381 = vmatprep.subr.bf16.mxu0 0
        %2382 = vmatpush1.bf16.msra.mxu0 0
        %2383 = vmatprep.subr.bf16.mxu0 0
        %2384 = vmatpush1.bf16.msra.mxu0 0
        %2385 = vmatprep.subr.bf16.mxu0 0
        %2386 = vmatpush1.bf16.msra.mxu0 0
        %2387 = vmatprep.subr.bf16.mxu0 0
        %2388 = vmatpush1.bf16.msra.mxu0 0
        %2389 = vmatprep.subr.bf16.mxu0 0
        %2390 = vmatpush1.bf16.msra.mxu0 0
        %2391 = vmatprep.subr.bf16.mxu0 0
        %2392 = vmatpush1.bf16.msra.mxu0 0
        %2393 = vmatprep.subr.bf16.mxu0 0
        %2394 = vmatpush1.bf16.msra.mxu0 0
        %2395 = vmatprep.subr.bf16.mxu0 0
        %2396 = vmatpush1.bf16.msra.mxu0 0
        %2397 = vmatprep.mubr.bf16.mxu0 0
        %2398 = vmatmul.mubr.bf16.gmra.mrb[0].mxu0 %v2315
        %v2399 = vpop.f32.mrb[0].mxu0
        %v2400 = vadd.f32 0.0, %v2399
        %v2401 = vpop.f32.mrb[0].mxu0
        %v2402 = vpop.f32.mrb[0].mxu0
        %v2403 = vpop.f32.mrb[0].mxu0
        %2404 = vdwg.mxu0
        %v2405 = vadd.f32 %v2275, %v2400
        %s2406 = scalar_lea.vmem [#allocation8], 320
        %v2407 = vld [vmem:[%s2406] sm:$0xf]
        %v2408 = vld [vmem:[%s2406 + $0x4] sm:$0xf]
        %v2409 = vld [vmem:[%s2406 + $0x8] sm:$0xf]
        %v2410 = vld [vmem:[%s2406 + $0xc] sm:$0xf]
        %v2411 = vld [vmem:[%s2406 + $0x10] sm:$0xf]
        %v2412 = vld [vmem:[%s2406 + $0x14] sm:$0xf]
        %v2413 = vld [vmem:[%s2406 + $0x18] sm:$0xf]
        %v2414 = vld [vmem:[%s2406 + $0x1c] sm:$0xf]
        %v2415 = vld [vmem:[%s2406 + $0x20] sm:$0xf]
        %v2416 = vld [vmem:[%s2406 + $0x24] sm:$0xf]
        %v2417 = vld [vmem:[%s2406 + $0x28] sm:$0xf]
        %v2418 = vld [vmem:[%s2406 + $0x2c] sm:$0xf]
        %v2419 = vld [vmem:[%s2406 + $0x30] sm:$0xf]
        %v2420 = vld [vmem:[%s2406 + $0x34] sm:$0xf]
        %v2421 = vld [vmem:[%s2406 + $0x38] sm:$0xf]
        %v2422 = vld [vmem:[%s2406 + $0x3c] sm:$0xf]
        %2423 = vrot.lane.b32.xlu0 %v2303, 64
        %v2424 = vpop.permute.xlu0 %2423
        %2425 = vrot.lane.b32.xlu0 %v2310, 64
        %v2426 = vpop.permute.xlu0 %2425
        %v2427 = vsel %vm510, %v2424, %v2426
        %v2445 = vunpack.c.l.b16 %v2407
        %v2446 = vunpack.c.l.b16 %v2408
        %v2447 = vunpack.c.l.b16 %v2409
        %v2448 = vunpack.c.l.b16 %v2410
        %v2449 = vunpack.c.l.b16 %v2411
        %v2450 = vunpack.c.l.b16 %v2412
        %v2451 = vunpack.c.l.b16 %v2413
        %v2452 = vunpack.c.l.b16 %v2414
        %v2453 = vunpack.c.l.b16 %v2415
        %v2454 = vunpack.c.l.b16 %v2416
        %v2455 = vunpack.c.l.b16 %v2417
        %v2456 = vunpack.c.l.b16 %v2418
        %v2457 = vunpack.c.l.b16 %v2419
        %v2458 = vunpack.c.l.b16 %v2420
        %v2459 = vunpack.c.l.b16 %v2421
        %v2460 = vunpack.c.l.b16 %v2422
        %v2461 = vpack.c.b16 %v2446, %v2445
        %v2462 = vpack.c.b16 %v2448, %v2447
        %v2463 = vpack.c.b16 %v2450, %v2449
        %v2464 = vpack.c.b16 %v2452, %v2451
        %v2465 = vpack.c.b16 %v2454, %v2453
        %v2466 = vpack.c.b16 %v2456, %v2455
        %v2467 = vpack.c.b16 %v2458, %v2457
        %v2468 = vpack.c.b16 %v2460, %v2459
        %2477 = vmatprep.subr.bf16.mxu0 0
        %2478 = vmatpush1.bf16.msra.mxu0 %v2461
        %2479 = vmatprep.subr.bf16.mxu0 0
        %2480 = vmatpush1.bf16.msra.mxu0 %v2462
        %2481 = vmatprep.subr.bf16.mxu0 0
        %2482 = vmatpush1.bf16.msra.mxu0 %v2463
        %2483 = vmatprep.subr.bf16.mxu0 0
        %2484 = vmatpush1.bf16.msra.mxu0 %v2464
        %2485 = vmatprep.subr.bf16.mxu0 0
        %2486 = vmatpush1.bf16.msra.mxu0 %v2465
        %2487 = vmatprep.subr.bf16.mxu0 0
        %2488 = vmatpush1.bf16.msra.mxu0 %v2466
        %2489 = vmatprep.subr.bf16.mxu0 0
        %2490 = vmatpush1.bf16.msra.mxu0 %v2467
        %2491 = vmatprep.subr.bf16.mxu0 0
        %2492 = vmatpush1.bf16.msra.mxu0 %v2468
        %2493 = vmatprep.subr.bf16.mxu0 0
        %2494 = vmatpush1.bf16.msra.mxu0 0
        %2495 = vmatprep.subr.bf16.mxu0 0
        %2496 = vmatpush1.bf16.msra.mxu0 0
        %2497 = vmatprep.subr.bf16.mxu0 0
        %2498 = vmatpush1.bf16.msra.mxu0 0
        %2499 = vmatprep.subr.bf16.mxu0 0
        %2500 = vmatpush1.bf16.msra.mxu0 0
        %2501 = vmatprep.subr.bf16.mxu0 0
        %2502 = vmatpush1.bf16.msra.mxu0 0
        %2503 = vmatprep.subr.bf16.mxu0 0
        %2504 = vmatpush1.bf16.msra.mxu0 0
        %2505 = vmatprep.subr.bf16.mxu0 0
        %2506 = vmatpush1.bf16.msra.mxu0 0
        %2507 = vmatprep.subr.bf16.mxu0 0
        %2508 = vmatpush1.bf16.msra.mxu0 0
        %2509 = vmatprep.mubr.bf16.mxu0 0
        %2510 = vmatmul.mubr.bf16.gmra.mrb[0].mxu0 %v2427
        %v2511 = vpop.f32.mrb[0].mxu0
        %v2512 = vadd.f32 0.0, %v2511
        %v2513 = vpop.f32.mrb[0].mxu0
        %v2514 = vpop.f32.mrb[0].mxu0
        %v2515 = vpop.f32.mrb[0].mxu0
        %2516 = vdwg.mxu0
        %v2517 = vadd.f32 %v2405, %v2512
        %v2518 = vld [vmem:[#allocation4] sm:$0x3c]
        %v2519 = vpack.c.bf16 %v2518, %v2518
        %s2520 = scalar_lea.vmem [#allocation8], 384
        %v2521 = vld [vmem:[%s2520] sm:$0xf]
        %v2522 = vld [vmem:[%s2520 + $0x4] sm:$0xf]
        %v2523 = vld [vmem:[%s2520 + $0x8] sm:$0xf]
        %v2524 = vld [vmem:[%s2520 + $0xc] sm:$0xf]
        %v2525 = vld [vmem:[%s2520 + $0x10] sm:$0xf]
        %v2526 = vld [vmem:[%s2520 + $0x14] sm:$0xf]
        %v2527 = vld [vmem:[%s2520 + $0x18] sm:$0xf]
        %v2528 = vld [vmem:[%s2520 + $0x1c] sm:$0xf]
        %v2529 = vld [vmem:[%s2520 + $0x20] sm:$0xf]
        %v2530 = vld [vmem:[%s2520 + $0x24] sm:$0xf]
        %v2531 = vld [vmem:[%s2520 + $0x28] sm:$0xf]
        %v2532 = vld [vmem:[%s2520 + $0x2c] sm:$0xf]
        %v2533 = vld [vmem:[%s2520 + $0x30] sm:$0xf]
        %v2534 = vld [vmem:[%s2520 + $0x34] sm:$0xf]
        %v2535 = vld [vmem:[%s2520 + $0x38] sm:$0xf]
        %v2536 = vld [vmem:[%s2520 + $0x3c] sm:$0xf]
        %v2538 = vrot.slane %v2519, 1
        %v2556 = vunpack.c.l.b16 %v2521
        %v2557 = vunpack.c.l.b16 %v2522
        %v2558 = vunpack.c.l.b16 %v2523
        %v2559 = vunpack.c.l.b16 %v2524
        %v2560 = vunpack.c.l.b16 %v2525
        %v2561 = vunpack.c.l.b16 %v2526
        %v2562 = vunpack.c.l.b16 %v2527
        %v2563 = vunpack.c.l.b16 %v2528
        %v2564 = vunpack.c.l.b16 %v2529
        %v2565 = vunpack.c.l.b16 %v2530
        %v2566 = vunpack.c.l.b16 %v2531
        %v2567 = vunpack.c.l.b16 %v2532
        %v2568 = vunpack.c.l.b16 %v2533
        %v2569 = vunpack.c.l.b16 %v2534
        %v2570 = vunpack.c.l.b16 %v2535
        %v2571 = vunpack.c.l.b16 %v2536
        %v2572 = vpack.c.b16 %v2557, %v2556
        %v2573 = vpack.c.b16 %v2559, %v2558
        %v2574 = vpack.c.b16 %v2561, %v2560
        %v2575 = vpack.c.b16 %v2563, %v2562
        %v2576 = vpack.c.b16 %v2565, %v2564
        %v2577 = vpack.c.b16 %v2567, %v2566
        %v2578 = vpack.c.b16 %v2569, %v2568
        %v2579 = vpack.c.b16 %v2571, %v2570
        %2588 = vmatprep.subr.bf16.mxu0 0
        %2589 = vmatpush1.bf16.msra.mxu0 %v2572
        %2590 = vmatprep.subr.bf16.mxu0 0
        %2591 = vmatpush1.bf16.msra.mxu0 %v2573
        %2592 = vmatprep.subr.bf16.mxu0 0
        %2593 = vmatpush1.bf16.msra.mxu0 %v2574
        %2594 = vmatprep.subr.bf16.mxu0 0
        %2595 = vmatpush1.bf16.msra.mxu0 %v2575
        %2596 = vmatprep.subr.bf16.mxu0 0
        %2597 = vmatpush1.bf16.msra.mxu0 %v2576
        %2598 = vmatprep.subr.bf16.mxu0 0
        %2599 = vmatpush1.bf16.msra.mxu0 %v2577
        %2600 = vmatprep.subr.bf16.mxu0 0
        %2601 = vmatpush1.bf16.msra.mxu0 %v2578
        %2602 = vmatprep.subr.bf16.mxu0 0
        %2603 = vmatpush1.bf16.msra.mxu0 %v2579
        %2604 = vmatprep.subr.bf16.mxu0 0
        %2605 = vmatpush1.bf16.msra.mxu0 0
        %2606 = vmatprep.subr.bf16.mxu0 0
        %2607 = vmatpush1.bf16.msra.mxu0 0
        %2608 = vmatprep.subr.bf16.mxu0 0
        %2609 = vmatpush1.bf16.msra.mxu0 0
        %2610 = vmatprep.subr.bf16.mxu0 0
        %2611 = vmatpush1.bf16.msra.mxu0 0
        %2612 = vmatprep.subr.bf16.mxu0 0
        %2613 = vmatpush1.bf16.msra.mxu0 0
        %2614 = vmatprep.subr.bf16.mxu0 0
        %2615 = vmatpush1.bf16.msra.mxu0 0
        %2616 = vmatprep.subr.bf16.mxu0 0
        %2617 = vmatpush1.bf16.msra.mxu0 0
        %2618 = vmatprep.subr.bf16.mxu0 0
        %2619 = vmatpush1.bf16.msra.mxu0 0
        %2620 = vmatprep.mubr.bf16.mxu0 0
        %2621 = vmatmul.mubr.bf16.gmra.mrb[0].mxu0 %v2538
        %v2622 = vpop.f32.mrb[0].mxu0
        %v2623 = vadd.f32 0.0, %v2622
        %v2624 = vpop.f32.mrb[0].mxu0
        %v2625 = vpop.f32.mrb[0].mxu0
        %v2626 = vpop.f32.mrb[0].mxu0
        %2627 = vdwg.mxu0
        %v2628 = vadd.f32 %v2517, %v2623
        %v2629 = vld [vmem:[#allocation4] sm:$0x3c]
        %v2630 = vld [vmem:[#allocation4 + $0x8] sm:$0x3c]
        %v2631 = vpack.c.bf16 %v2629, %v2629
        %v2632 = vpack.c.bf16 %v2630, %v2630
        %s2633 = scalar_lea.vmem [#allocation8], 448
        %v2634 = vld [vmem:[%s2633] sm:$0xf]
        %v2635 = vld [vmem:[%s2633 + $0x4] sm:$0xf]
        %v2636 = vld [vmem:[%s2633 + $0x8] sm:$0xf]
        %v2637 = vld [vmem:[%s2633 + $0xc] sm:$0xf]
        %v2638 = vld [vmem:[%s2633 + $0x10] sm:$0xf]
        %v2639 = vld [vmem:[%s2633 + $0x14] sm:$0xf]
        %v2640 = vld [vmem:[%s2633 + $0x18] sm:$0xf]
        %v2641 = vld [vmem:[%s2633 + $0x1c] sm:$0xf]
        %v2642 = vld [vmem:[%s2633 + $0x20] sm:$0xf]
        %v2643 = vld [vmem:[%s2633 + $0x24] sm:$0xf]
        %v2644 = vld [vmem:[%s2633 + $0x28] sm:$0xf]
        %v2645 = vld [vmem:[%s2633 + $0x2c] sm:$0xf]
        %v2646 = vld [vmem:[%s2633 + $0x30] sm:$0xf]
        %v2647 = vld [vmem:[%s2633 + $0x34] sm:$0xf]
        %v2648 = vld [vmem:[%s2633 + $0x38] sm:$0xf]
        %v2649 = vld [vmem:[%s2633 + $0x3c] sm:$0xf]
        %v2652 = vrot.slane %v2631, 1
        %v2653 = vrot.slane %v2632, 1
        %2654 = vrot.lane.b32.xlu0 %v2652, 96
        %v2655 = vpop.permute.xlu0 %2654
        %2656 = vrot.lane.b32.xlu0 %v2653, 96
        %v2657 = vpop.permute.xlu0 %2656
        %v2658 = vsel %vm1251, %v2655, %v2657
        %v2676 = vunpack.c.l.b16 %v2634
        %v2677 = vunpack.c.l.b16 %v2635
        %v2678 = vunpack.c.l.b16 %v2636
        %v2679 = vunpack.c.l.b16 %v2637
        %v2680 = vunpack.c.l.b16 %v2638
        %v2681 = vunpack.c.l.b16 %v2639
        %v2682 = vunpack.c.l.b16 %v2640
        %v2683 = vunpack.c.l.b16 %v2641
        %v2684 = vunpack.c.l.b16 %v2642
        %v2685 = vunpack.c.l.b16 %v2643
        %v2686 = vunpack.c.l.b16 %v2644
        %v2687 = vunpack.c.l.b16 %v2645
        %v2688 = vunpack.c.l.b16 %v2646
        %v2689 = vunpack.c.l.b16 %v2647
        %v2690 = vunpack.c.l.b16 %v2648
        %v2691 = vunpack.c.l.b16 %v2649
        %v2692 = vpack.c.b16 %v2677, %v2676
        %v2693 = vpack.c.b16 %v2679, %v2678
        %v2694 = vpack.c.b16 %v2681, %v2680
        %v2695 = vpack.c.b16 %v2683, %v2682
        %v2696 = vpack.c.b16 %v2685, %v2684
        %v2697 = vpack.c.b16 %v2687, %v2686
        %v2698 = vpack.c.b16 %v2689, %v2688
        %v2699 = vpack.c.b16 %v2691, %v2690
        %2708 = vmatprep.subr.bf16.mxu0 0
        %2709 = vmatpush1.bf16.msra.mxu0 %v2692
        %2710 = vmatprep.subr.bf16.mxu0 0
        %2711 = vmatpush1.bf16.msra.mxu0 %v2693
        %2712 = vmatprep.subr.bf16.mxu0 0
        %2713 = vmatpush1.bf16.msra.mxu0 %v2694
        %2714 = vmatprep.subr.bf16.mxu0 0
        %2715 = vmatpush1.bf16.msra.mxu0 %v2695
        %2716 = vmatprep.subr.bf16.mxu0 0
        %2717 = vmatpush1.bf16.msra.mxu0 %v2696
        %2718 = vmatprep.subr.bf16.mxu0 0
        %2719 = vmatpush1.bf16.msra.mxu0 %v2697
        %2720 = vmatprep.subr.bf16.mxu0 0
        %2721 = vmatpush1.bf16.msra.mxu0 %v2698
        %2722 = vmatprep.subr.bf16.mxu0 0
        %2723 = vmatpush1.bf16.msra.mxu0 %v2699
        %2724 = vmatprep.subr.bf16.mxu0 0
        %2725 = vmatpush1.bf16.msra.mxu0 0
        %2726 = vmatprep.subr.bf16.mxu0 0
        %2727 = vmatpush1.bf16.msra.mxu0 0
        %2728 = vmatprep.subr.bf16.mxu0 0
        %2729 = vmatpush1.bf16.msra.mxu0 0
        %2730 = vmatprep.subr.bf16.mxu0 0
        %2731 = vmatpush1.bf16.msra.mxu0 0
        %2732 = vmatprep.subr.bf16.mxu0 0
        %2733 = vmatpush1.bf16.msra.mxu0 0
        %2734 = vmatprep.subr.bf16.mxu0 0
        %2735 = vmatpush1.bf16.msra.mxu0 0
        %2736 = vmatprep.subr.bf16.mxu0 0
        %2737 = vmatpush1.bf16.msra.mxu0 0
        %2738 = vmatprep.subr.bf16.mxu0 0
        %2739 = vmatpush1.bf16.msra.mxu0 0
        %2740 = vmatprep.mubr.bf16.mxu0 0
        %2741 = vmatmul.mubr.bf16.gmra.mrb[0].mxu0 %v2658
        %v2742 = vpop.f32.mrb[0].mxu0
        %v2743 = vadd.f32 0.0, %v2742
        %v2744 = vpop.f32.mrb[0].mxu0
        %v2745 = vpop.f32.mrb[0].mxu0
        %v2746 = vpop.f32.mrb[0].mxu0
        %2747 = vdwg.mxu0
        %v2748 = vadd.f32 %v2628, %v2743
        %s2749 = scalar_lea.vmem [#allocation8], 512
        %v2750 = vld [vmem:[%s2749] sm:$0xf]
        %v2751 = vld [vmem:[%s2749 + $0x4] sm:$0xf]
        %v2752 = vld [vmem:[%s2749 + $0x8] sm:$0xf]
        %v2753 = vld [vmem:[%s2749 + $0xc] sm:$0xf]
        %v2754 = vld [vmem:[%s2749 + $0x10] sm:$0xf]
        %v2755 = vld [vmem:[%s2749 + $0x14] sm:$0xf]
        %v2756 = vld [vmem:[%s2749 + $0x18] sm:$0xf]
        %v2757 = vld [vmem:[%s2749 + $0x1c] sm:$0xf]
        %v2758 = vld [vmem:[%s2749 + $0x20] sm:$0xf]
        %v2759 = vld [vmem:[%s2749 + $0x24] sm:$0xf]
        %v2760 = vld [vmem:[%s2749 + $0x28] sm:$0xf]
        %v2761 = vld [vmem:[%s2749 + $0x2c] sm:$0xf]
        %v2762 = vld [vmem:[%s2749 + $0x30] sm:$0xf]
        %v2763 = vld [vmem:[%s2749 + $0x34] sm:$0xf]
        %v2764 = vld [vmem:[%s2749 + $0x38] sm:$0xf]
        %v2765 = vld [vmem:[%s2749 + $0x3c] sm:$0xf]
        %2766 = vrot.lane.b32.xlu0 %v2652, 64
        %v2767 = vpop.permute.xlu0 %2766
        %2768 = vrot.lane.b32.xlu0 %v2653, 64
        %v2769 = vpop.permute.xlu0 %2768
        %v2770 = vsel %vm510, %v2767, %v2769
        %v2788 = vunpack.c.l.b16 %v2750
        %v2789 = vunpack.c.l.b16 %v2751
        %v2790 = vunpack.c.l.b16 %v2752
        %v2791 = vunpack.c.l.b16 %v2753
        %v2792 = vunpack.c.l.b16 %v2754
        %v2793 = vunpack.c.l.b16 %v2755
        %v2794 = vunpack.c.l.b16 %v2756
        %v2795 = vunpack.c.l.b16 %v2757
        %v2796 = vunpack.c.l.b16 %v2758
        %v2797 = vunpack.c.l.b16 %v2759
        %v2798 = vunpack.c.l.b16 %v2760
        %v2799 = vunpack.c.l.b16 %v2761
        %v2800 = vunpack.c.l.b16 %v2762
        %v2801 = vunpack.c.l.b16 %v2763
        %v2802 = vunpack.c.l.b16 %v2764
        %v2803 = vunpack.c.l.b16 %v2765
        %v2804 = vpack.c.b16 %v2789, %v2788
        %v2805 = vpack.c.b16 %v2791, %v2790
        %v2806 = vpack.c.b16 %v2793, %v2792
        %v2807 = vpack.c.b16 %v2795, %v2794
        %v2808 = vpack.c.b16 %v2797, %v2796
        %v2809 = vpack.c.b16 %v2799, %v2798
        %v2810 = vpack.c.b16 %v2801, %v2800
        %v2811 = vpack.c.b16 %v2803, %v2802
        %2820 = vmatprep.subr.bf16.mxu0 0
        %2821 = vmatpush1.bf16.msra.mxu0 %v2804
        %2822 = vmatprep.subr.bf16.mxu0 0
        %2823 = vmatpush1.bf16.msra.mxu0 %v2805
        %2824 = vmatprep.subr.bf16.mxu0 0
        %2825 = vmatpush1.bf16.msra.mxu0 %v2806
        %2826 = vmatprep.subr.bf16.mxu0 0
        %2827 = vmatpush1.bf16.msra.mxu0 %v2807
        %2828 = vmatprep.subr.bf16.mxu0 0
        %2829 = vmatpush1.bf16.msra.mxu0 %v2808
        %2830 = vmatprep.subr.bf16.mxu0 0
        %2831 = vmatpush1.bf16.msra.mxu0 %v2809
        %2832 = vmatprep.subr.bf16.mxu0 0
        %2833 = vmatpush1.bf16.msra.mxu0 %v2810
        %2834 = vmatprep.subr.bf16.mxu0 0
        %2835 = vmatpush1.bf16.msra.mxu0 %v2811
        %2836 = vmatprep.subr.bf16.mxu0 0
        %2837 = vmatpush1.bf16.msra.mxu0 0
        %2838 = vmatprep.subr.bf16.mxu0 0
        %2839 = vmatpush1.bf16.msra.mxu0 0
        %2840 = vmatprep.subr.bf16.mxu0 0
        %2841 = vmatpush1.bf16.msra.mxu0 0
        %2842 = vmatprep.subr.bf16.mxu0 0
        %2843 = vmatpush1.bf16.msra.mxu0 0
        %2844 = vmatprep.subr.bf16.mxu0 0
        %2845 = vmatpush1.bf16.msra.mxu0 0
        %2846 = vmatprep.subr.bf16.mxu0 0
        %2847 = vmatpush1.bf16.msra.mxu0 0
        %2848 = vmatprep.subr.bf16.mxu0 0
        %2849 = vmatpush1.bf16.msra.mxu0 0
        %2850 = vmatprep.subr.bf16.mxu0 0
        %2851 = vmatpush1.bf16.msra.mxu0 0
        %2852 = vmatprep.mubr.bf16.mxu0 0
        %2853 = vmatmul.mubr.bf16.gmra.mrb[0].mxu0 %v2770
        %v2854 = vpop.f32.mrb[0].mxu0
        %v2855 = vadd.f32 0.0, %v2854
        %v2856 = vpop.f32.mrb[0].mxu0
        %v2857 = vpop.f32.mrb[0].mxu0
        %v2858 = vpop.f32.mrb[0].mxu0
        %2859 = vdwg.mxu0
        %v2860 = vadd.f32 %v2748, %v2855
        %v2861 = vld [vmem:[%s8] sm:$0x1]
        %v2863 = vlaneseq
        %v2864 = vshrl.u32 %v2863, 7
        %v2865 = vsub.s32 0, %v2864
        %v2866 = vrot.slane %v2861, %v2865
        %v2868 = vadd.f32 %v2860, %v2866
        %v2869 = vxor.u32 %v2868, 2147483648
        %v2870 = vmul.f32 %v2869, 1.442695
        %v2871 = vpow.pop %v2870
        %v2872 = vadd.f32 %v2871, 1.0
        %v2873 = vrcp.pop %v2872
        %v2874 = vmul.f32 1.0, %v2873
        %v2875 = vmul.f32 %v2868, %v2874
        %2876 = vst [vmem:[%s393] sm:$0xf] %v2875
        %s2877 = sand.u32 %s232, 1
        %s2878 = scalar_lea.sflag [#allocation7], %s2877
        %s2879 = sand.u32 %s232, 1
        %s2880 = smul.addr %s2879, 4
        %s2881 = scalar_lea.vmem [#allocation10], %s2880
        %s2882 = sand.u32 %s258, 1
        %s2883 = scalar_lea.sflag [#allocation12], %s2882
        %s2884 = sand.u32 %s258, 1
        %s2885 = smul.addr %s2884, 4
        %s2886 = scalar_lea.vmem [#allocation11], %s2885
        // Predicated region
        $region65: #{tpu_custom_call.1} parent=55 // pred_check
          %p2887 = pneg %p242
        $region66: #{tpu_custom_call.1} parent=55 // pred_check_branch
          %2889 = sbr.rel (%p2887) target = $region68
        $region67: #{tpu_custom_call.1} parent=55 // pred_region
          %s2891 = ssub.s32 64, 64
          %2892 = vsyncadd %s2878, %s2891
          %s2893 = smul.addr %s30, 64
          %s2894 = scalar_lea.hbm %s9, %s2893
          %s2896 = sshll.u32 %s2881, 4
          %s2897 = int_to_ptr.vmem [resolvable:$true] %s2896
          %2899 = dma.vmem_to_hbm [thread:$0]  %s2897, 64, %s2894, %s2878
        $region68: #{tpu_custom_call.1} parent=55 // pred_fallthru
          _
        // Predicated region
        $region69: #{tpu_custom_call.1} parent=55 // pred_check
          %p2900 = pneg %p268
        $region70: #{tpu_custom_call.1} parent=55 // pred_check_branch
          %2902 = sbr.rel (%p2900) target = $region72
        $region71: #{tpu_custom_call.1} parent=55 // pred_region
          %s2904 = ssub.s32 64, 64
          %2905 = vsyncadd %s2883, %s2904
          %s2906 = smul.addr %s30, 64
          %s2907 = scalar_lea.hbm %s10, %s2906
          %s2909 = sshll.u32 %s2886, 4
          %s2910 = int_to_ptr.vmem [resolvable:$true] %s2909
          %2912 = dma.vmem_to_hbm [thread:$0]  %s2910, 64, %s2907, %s2883
        $region72: #{tpu_custom_call.1} parent=55 // pred_fallthru
          _
      $region56: #{tpu_custom_call.1} parent=5 // pred_fallthru
        _
      %p2913 = scmp.le.s32.totalorder 2, %s25
      // Predicated region
      $region73: #{tpu_custom_call.1} parent=5 // pred_check
        %p2914 = pneg %p2913
      $region74: #{tpu_custom_call.1} parent=5 // pred_check_branch
        %2916 = sbr.rel (%p2914) target = $region76
      $region75: #{tpu_custom_call.1} parent=5 // pred_region
        %s2917 = ssub.s32 %s25, 2
        // Predicated region
        $region77: #{tpu_custom_call.1} parent=75 // pred_check
          %p2918 = pneg %p248
        $region78: #{tpu_custom_call.1} parent=75 // pred_check_branch
          %2920 = sbr.rel (%p2918) target = $region80
        $region79: #{tpu_custom_call.1} parent=75 // pred_region
          %s2921 = sand.u32 %s233, 1
          %s2922 = scalar_lea.sflag [#allocation7], %s2921
          %s2923 = sand.u32 %s233, 1
          %s2924 = smul.addr %s2923, 4
          %s2925 = scalar_lea.vmem [#allocation10], %s2924
          %2926 = dma.done %s2922, 64
        $region80: #{tpu_custom_call.1} parent=75 // pred_fallthru
          _
        // Predicated region
        $region81: #{tpu_custom_call.1} parent=75 // pred_check
          %p2927 = pneg %p274
        $region82: #{tpu_custom_call.1} parent=75 // pred_check_branch
          %2929 = sbr.rel (%p2927) target = $region84
        $region83: #{tpu_custom_call.1} parent=75 // pred_region
          %s2930 = sand.u32 %s259, 1
          %s2931 = scalar_lea.sflag [#allocation12], %s2930
          %s2932 = sand.u32 %s259, 1
          %s2933 = smul.addr %s2932, 4
          %s2934 = scalar_lea.vmem [#allocation11], %s2933
          %2935 = dma.done %s2931, 64
        $region84: #{tpu_custom_call.1} parent=75 // pred_fallthru
          _
      $region76: #{tpu_custom_call.1} parent=5 // pred_fallthru
        _
    $region6: #{tpu_custom_call.1} parent=1 // loop_footer
      %s29 = sadd.s32 1, %s25
    $region7: #{tpu_custom_call.1} parent=1 // loop_footer_branch
      %24 = sbr.rel target = $region3
    $region8: #{tpu_custom_call.1} parent=1 // loop_exit
      _
    %2936 = vsyncpa [#allocation6], 1
    %s2937 = scalar_lea.sflag [#allocation6], 1
    %2938 = vsyncpa %s2937, 1
    %2939 = vsyncpa [#allocation9], 1
    %2940 = vsyncpa [#allocation7], 1
    %s2941 = scalar_lea.sflag [#allocation7], 1
    %2942 = vsyncpa %s2941, 1
    %2943 = vsyncpa [#allocation12], 1
    %s2944 = scalar_lea.sflag [#allocation12], 1
    %2945 = vsyncpa %s2944, 1

</llo_original>
